<compile_context>
chip_gen: v5e
topology: v5e:2x2
jax: 0.10.0
libtpu: 0.0.40
codegen_flags: <defaults>
</compile_context>

<pallas_src>
import functools

import jax
import jax.numpy as jnp
from jax import lax
from jax.experimental import pallas as pl
from jax.experimental.pallas import tpu as pltpu

HIGH = jax.lax.Precision.HIGHEST
EPS = 1e-7


def _dtln_kernel(y_ref, st_ref, encw_ref, gamma_ref, beta_ref,
                 wih1_ref, whh1_ref, b1_ref,
                 w2cat_ref, b2_ref,
                 dw_ref, db_ref, decw_ref,
                 out_ref, ost_ref, x2_scr, *, T, BB, H):
    """One batch-block of the DTLN-P2 forward pass.

    y_ref:     [T*BB, F]   input frames, time-major / batch-merged (padded)
    st_ref:    [4*BB, H]   rows = (h1[BB], c1[BB], h2[BB], c2[BB])
    encw_ref:  [F, E]      encoder conv weight (k=1), transposed, bf16
    gamma/beta:[1, E]      instant layer-norm params, f32
    wih1_ref:  [E, 4H]     layer-1 input weights, gate order (i,f,o,g), bf16
    whh1_ref:  [H, 4H]     layer-1 recurrent weights, (i,f,o,g), bf16
    b1_ref:    [1, 4H]     b_ih1 + b_hh1, (i,f,o,g), f32
    w2cat_ref: [2H, 4H]    [wih2; whh2] K-fused, (i,f,o,g), bf16
    b2_ref:    [1, 4H]     b_ih2 + b_hh2, (i,f,o,g), f32
    dw_ref:    [H, E]      dense weight, transposed, bf16;  db_ref: [1, E] f32
    decw_ref:  [E, F]      decoder conv weight (k=1), transposed, bf16
    out_ref:   [T*BB, F]   decoded frames
    ost_ref:   [4*BB, H]   rows = (h1_out, c1_out, h2_out, c2_out)
    x2_scr:    [T*BB, H]   VMEM scratch for the layer-2 hidden sequence
    """
    f32 = jnp.float32

    # ---- widen bf16 weights once per invocation (hoisted, negligible VPU) ----
    encw = encw_ref[...].astype(f32)
    wih1 = wih1_ref[...].astype(f32)
    whh1 = whh1_ref[...].astype(f32)
    w2cat = w2cat_ref[...].astype(f32)
    dw = dw_ref[...].astype(f32)
    decw = decw_ref[...].astype(f32)

    # ---- encoder conv (kernel_size=1 -> matmul), M = T*BB ----
    y = y_ref[...]                                                     # [TB, F]
    enc = jnp.dot(y, encw, preferred_element_type=f32)                 # [TB, E]

    # ---- instant layer normalization (over channel dim) ----
    mean = jnp.mean(enc, axis=-1, keepdims=True)
    var = jnp.mean(jnp.square(enc - mean), axis=-1, keepdims=True)
    xn = (enc - mean) * lax.rsqrt(var + EPS)
    xn = xn * gamma_ref[...] + beta_ref[...]                           # [TB, E]

    # ---- hoisted layer-1 input projection for all timesteps at once ----
    g1_all = jnp.dot(xn, wih1, preferred_element_type=f32) + b1_ref[...]  # [TB, 4H]

    # ---- hoisted loop invariants ----
    b2b = jnp.broadcast_to(b2_ref[...], (BB, 4 * H))                   # [BB, 4H]

    # ---- initial LSTM states (8-aligned static slices of [4BB, H]) ----
    st = st_ref[...]
    h1 = st[0 * BB:1 * BB, :]
    c1 = st[1 * BB:2 * BB, :]
    h2 = st[2 * BB:3 * BB, :]
    c2 = st[3 * BB:4 * BB, :]

    def gates_to_hc(g, c):
        # gate order (i, f, o, g): one sigmoid over 3H, one tanh over H
        sig = jax.nn.sigmoid(g[:, :3 * H])
        i_g = sig[:, 0:H]
        f_g = sig[:, H:2 * H]
        o_g = sig[:, 2 * H:3 * H]
        g_g = jnp.tanh(g[:, 3 * H:4 * H])
        c_n = f_g * c + i_g * g_g
        h_n = o_g * jnp.tanh(c_n)
        return h_n, c_n

    # ---- fully unrolled recurrence over time (two stacked LSTMs) ----
    for t in range(T):                                                 # static unroll
        g1 = (g1_all[t * BB:(t + 1) * BB, :]
              + jnp.dot(h1, whh1, preferred_element_type=f32))
        h1, c1 = gates_to_hc(g1, c1)
        # TODO(synk): dropout (p=0.25) between LSTM layers skipped (eval mode).
        # K-fused layer-2 gates: [h1 | h2] @ [wih2; whh2]
        x12 = jnp.concatenate([h1, h2], axis=-1)                       # [BB, 2H]
        g2 = jnp.dot(x12, w2cat, preferred_element_type=f32) + b2b
        h2, c2 = gates_to_hc(g2, c2)
        x2_scr[t * BB:(t + 1) * BB, :] = h2                            # aligned store

    x2 = x2_scr[...]                                                   # [TB, H]

    # ---- dense + sigmoid mask, apply mask, decoder conv ----
    mask = jax.nn.sigmoid(
        jnp.dot(x2, dw, preferred_element_type=f32) + db_ref[...])     # [TB, E]
    est = mask * enc                                                   # [TB, E]
    dec = jnp.dot(est, decw, preferred_element_type=f32)               # [TB, F]

    out_ref[...] = dec.astype(out_ref.dtype)
    ost_ref[0 * BB:1 * BB, :] = h1
    ost_ref[1 * BB:2 * BB, :] = c1
    ost_ref[2 * BB:3 * BB, :] = h2
    ost_ref[3 * BB:4 * BB, :] = c2


def dtln_p2_forward(y1, in_state2, p, *, bb=8):
    """y1: [B, F, T] (PyTorch NCW), in_state2: [2, B, H, 2] -> same as torch."""
    B, F, T = y1.shape
    E = p["enc_wT"].shape[1]
    H = p["whh1T"].shape[0]

    num_bb = (B + bb - 1) // bb            # batch blocks (grid axis, parallel)
    B_pad = num_bb * bb

    # ---- permute LSTM gate columns (i,f,g,o) -> (i,f,o,g) ----
    def gate_perm(w):
        i, f, g, o = jnp.split(w, 4, axis=-1)
        return jnp.concatenate([i, f, o, g], axis=-1)

    bf16 = jnp.bfloat16
    f32 = jnp.float32
    encw = p["enc_wT"].astype(bf16)
    gamma = p["gamma"].astype(f32)
    beta = p["beta"].astype(f32)
    wih1 = gate_perm(p["wih1T"]).astype(bf16)
    whh1 = gate_perm(p["whh1T"]).astype(bf16)
    b1 = gate_perm(p["b1"]).astype(f32)
    # K-fuse layer-2 input/recurrent weights along K: [2H, 4H]
    w2cat = jnp.concatenate(
        [gate_perm(p["wih2T"]), gate_perm(p["whh2T"])], axis=0).astype(bf16)
    b2 = gate_perm(p["b2"]).astype(f32)
    dw = p["dense_wT"].astype(bf16)
    db = p["dense_b"].astype(f32)
    decw = p["dec_wT"].astype(bf16)

    # ---- re-layout input: pad batch to B_pad, block over batch, then
    #      time-major / batch-merged [num_bb, T*bb, F] ----
    y = y1.astype(f32)
    if B_pad != B:
        y = jnp.pad(y, ((0, B_pad - B), (0, 0), (0, 0)))
    y_blk = (jnp.transpose(y, (2, 0, 1))               # [T, B_pad, F]
             .reshape(T, num_bb, bb, F)
             .transpose(1, 0, 2, 3)
             .reshape(num_bb, T * bb, F))

    h1_in = in_state2[0, :, :, 0].astype(f32)
    c1_in = in_state2[0, :, :, 1].astype(f32)
    h2_in = in_state2[1, :, :, 0].astype(f32)
    c2_in = in_state2[1, :, :, 1].astype(f32)

    def blk_state(a):                                  # [B, H] -> [num_bb, bb, H]
        if B_pad != B:
            a = jnp.pad(a, ((0, B_pad - B), (0, 0)))
        return a.reshape(num_bb, bb, H)

    st_blk = jnp.concatenate(
        [blk_state(h1_in), blk_state(c1_in), blk_state(h2_in), blk_state(c2_in)],
        axis=1)                                        # [num_bb, 4*bb, H]

    operands = (y_blk, st_blk, encw, gamma, beta,
                wih1, whh1, b1, w2cat, b2, dw, db, decw)

    def const_spec(shape):
        zeros = (0,) * len(shape)
        return pl.BlockSpec(shape, lambda i, _z=zeros: _z)

    in_specs = [
        pl.BlockSpec((None, T * bb, F), lambda i: (i, 0, 0)),   # y (per block)
        pl.BlockSpec((None, 4 * bb, H), lambda i: (i, 0, 0)),   # states
    ] + [const_spec(op.shape) for op in operands[2:]]           # weights/biases

    out_specs = [
        pl.BlockSpec((None, T * bb, F), lambda i: (i, 0, 0)),
        pl.BlockSpec((None, 4 * bb, H), lambda i: (i, 0, 0)),
    ]

    kernel = functools.partial(_dtln_kernel, T=T, BB=bb, H=H)

    dec_blk, ost_blk = pl.pallas_call(
        kernel,
        grid=(num_bb,),
        in_specs=in_specs,
        out_specs=out_specs,
        out_shape=[
            jax.ShapeDtypeStruct((num_bb, T * bb, F), jnp.float32),
            jax.ShapeDtypeStruct((num_bb, 4 * bb, H), jnp.float32),
        ],
        scratch_shapes=[pltpu.VMEM((T * bb, H), jnp.float32)],
        compiler_params=pltpu.CompilerParams(
            dimension_semantics=("parallel",)),
    )(*operands)

    # ---- back to PyTorch conventions ----
    dec = (dec_blk.reshape(num_bb, T, bb, F)
           .transpose(1, 0, 2, 3)
           .reshape(T, B_pad, F)[:, :B, :])
    decoded_frame = jnp.transpose(dec, (1, 2, 0))                  # [B, F, T]

    def unblk(k):
        return ost_blk[:, k * bb:(k + 1) * bb, :].reshape(B_pad, H)[:B]

    h1f, c1f, h2f, c2f = unblk(0), unblk(1), unblk(2), unblk(3)
    h = jnp.stack([h1f, h2f], axis=0)                              # [2, B, H]
    c = jnp.stack([c1f, c2f], axis=0)                              # [2, B, H]
    out_state2 = jnp.stack([h, c], axis=-1)                        # [2, B, H, 2]
    return decoded_frame, out_state2


# ---------------------------- pure-JAX reference ----------------------------
def _lstm_ref(x, h0, c0, wihT, whhT, b):
    H = h0.shape[-1]

    def step(carry, x_t):
        h, c = carry
        g = (jnp.dot(x_t, wihT, precision=HIGH)
             + jnp.dot(h, whhT, precision=HIGH) + b)
        i = jax.nn.sigmoid(g[:, :H])
        f = jax.nn.sigmoid(g[:, H:2 * H])
        gg = jnp.tanh(g[:, 2 * H:3 * H])
        o = jax.nn.sigmoid(g[:, 3 * H:])
        c = f * c + i * gg
        h = o * jnp.tanh(c)
        return (h, c), h

    (hT, cT), ys = lax.scan(step, (h0, c0), jnp.transpose(x, (1, 0, 2)))
    return jnp.transpose(ys, (1, 0, 2)), hT, cT


def dtln_p2_reference(y1, in_state2, p):
    enc = jnp.einsum("bft,fe->bte", y1, p["enc_wT"], precision=HIGH)   # [B,T,E]
    mean = jnp.mean(enc, -1, keepdims=True)
    var = jnp.mean(jnp.square(enc - mean), -1, keepdims=True)
    xn = (enc - mean) / jnp.sqrt(var + EPS)
    xn = xn * p["gamma"][None] + p["beta"][None]

    h1_in, c1_in = in_state2[0, :, :, 0], in_state2[0, :, :, 1]
    h2_in, c2_in = in_state2[1, :, :, 0], in_state2[1, :, :, 1]
    x1, h1, c1 = _lstm_ref(xn, h1_in, c1_in, p["wih1T"], p["whh1T"], p["b1"][0])
    x2, h2, c2 = _lstm_ref(x1, h2_in, c2_in, p["wih2T"], p["whh2T"], p["b2"][0])
    mask = jax.nn.sigmoid(
        jnp.einsum("bth,he->bte", x2, p["dense_wT"], precision=HIGH)
        + p["dense_b"][None])
    est = mask * enc
    dec = jnp.einsum("bte,ef->btf", est, p["dec_wT"], precision=HIGH)
    decoded_frame = jnp.transpose(dec, (0, 2, 1))
    h = jnp.stack([h1, h2], axis=0)
    c = jnp.stack([c1, c2], axis=0)
    return decoded_frame, jnp.stack([h, c], axis=-1)


# ------------------------------- setup / main --------------------------------
def init_params(key, frame_len, enc_size=256, hidden=128):
    ks = jax.random.split(key, 10)
    s = 0.1
    F, E, H = frame_len, enc_size, hidden
    return {
        "enc_wT":   jax.random.normal(ks[0], (F, E), jnp.float32) * s,
        "gamma":    jnp.ones((1, E), jnp.float32),
        "beta":     jnp.zeros((1, E), jnp.float32),
        "wih1T":    jax.random.normal(ks[1], (E, 4 * H), jnp.float32) * s,
        "whh1T":    jax.random.normal(ks[2], (H, 4 * H), jnp.float32) * s,
        "b1":       jax.random.normal(ks[3], (1, 4 * H), jnp.float32) * s,
        "wih2T":    jax.random.normal(ks[4], (H, 4 * H), jnp.float32) * s,
        "whh2T":    jax.random.normal(ks[5], (H, 4 * H), jnp.float32) * s,
        "b2":       jax.random.normal(ks[6], (1, 4 * H), jnp.float32) * s,
        "dense_wT": jax.random.normal(ks[7], (H, E), jnp.float32) * s,
        "dense_b":  jax.random.normal(ks[8], (1, E), jnp.float32) * s,
        "dec_wT":   jax.random.normal(ks[9], (E, F), jnp.float32) * s,
    }


if __name__ == "__main__":
    B, FRAME_LEN, T, H = 2, 128, 8, 128
    key = jax.random.PRNGKey(0)
    kx, ks, kp = jax.random.split(key, 3)

    y1 = jax.random.normal(kx, (B, FRAME_LEN, T), jnp.float32)
    in_state2 = jax.random.normal(ks, (2, B, H, 2), jnp.float32) * 0.1
    params = init_params(kp, FRAME_LEN)

    fwd = jax.jit(functools.partial(dtln_p2_forward, p=params))
    decoded, out_state = fwd(y1, in_state2)
    jax.block_until_ready((decoded, out_state))

    ref_dec, ref_st = dtln_p2_reference(y1, in_state2, params)
    assert decoded.shape == (B, FRAME_LEN, T)
    assert out_state.shape == (2, B, H, 2)
    # kernel uses bf16 weights + default (bf16-pass) MXU precision; reference
    # is f32 / HIGHEST, so allow a slightly wider tolerance.
    assert jnp.allclose(decoded, ref_dec, atol=3e-2, rtol=3e-2)
    assert jnp.allclose(out_state, ref_st, atol=3e-2, rtol=3e-2)

    print("KERNEL_OK")
</pallas_src>

<mosaic_0001>
module attributes {stable_mosaic.version = 11 : i64} {
  func.func @_dtln_kernel(%arg0: i32, %arg1: memref<1x64x128xf32, #tpu.memory_space<vmem>>, %arg2: memref<1x32x128xf32, #tpu.memory_space<vmem>>, %arg3: memref<128x256xbf16, #tpu.memory_space<vmem>>, %arg4: memref<1x256xf32, #tpu.memory_space<vmem>>, %arg5: memref<1x256xf32, #tpu.memory_space<vmem>>, %arg6: memref<256x512xbf16, #tpu.memory_space<vmem>>, %arg7: memref<128x512xbf16, #tpu.memory_space<vmem>>, %arg8: memref<1x512xf32, #tpu.memory_space<vmem>>, %arg9: memref<256x512xbf16, #tpu.memory_space<vmem>>, %arg10: memref<1x512xf32, #tpu.memory_space<vmem>>, %arg11: memref<128x256xbf16, #tpu.memory_space<vmem>>, %arg12: memref<1x256xf32, #tpu.memory_space<vmem>>, %arg13: memref<256x128xbf16, #tpu.memory_space<vmem>>, %arg14: memref<1x64x128xf32, #tpu.memory_space<vmem>>, %arg15: memref<1x32x128xf32, #tpu.memory_space<vmem>>, %arg16: memref<64x128xf32, #tpu.memory_space<vmem>>) attributes {dimension_semantics = [#tpu.dimension_semantics<parallel>], iteration_bounds = array<i64: 1>, scalar_prefetch = 0 : i64, scratch_operands = 1 : i64, tpu.core_type = #tpu.core_type<tc>, window_params = [{transform_indices = @transform_0, window_bounds = array<i64: 1, 64, 128>}, {transform_indices = @transform_1, window_bounds = array<i64: 1, 32, 128>}, {pipeline_mode = #tpu.pipeline_mode<synchronous>, transform_indices = @transform_2, window_bounds = array<i64: 128, 256>}, {pipeline_mode = #tpu.pipeline_mode<synchronous>, transform_indices = @transform_3, window_bounds = array<i64: 1, 256>}, {pipeline_mode = #tpu.pipeline_mode<synchronous>, transform_indices = @transform_4, window_bounds = array<i64: 1, 256>}, {pipeline_mode = #tpu.pipeline_mode<synchronous>, transform_indices = @transform_5, window_bounds = array<i64: 256, 512>}, {pipeline_mode = #tpu.pipeline_mode<synchronous>, transform_indices = @transform_6, window_bounds = array<i64: 128, 512>}, {pipeline_mode = #tpu.pipeline_mode<synchronous>, transform_indices = @transform_7, window_bounds = array<i64: 1, 512>}, {pipeline_mode = #tpu.pipeline_mode<synchronous>, transform_indices = @transform_8, window_bounds = array<i64: 256, 512>}, {pipeline_mode = #tpu.pipeline_mode<synchronous>, transform_indices = @transform_9, window_bounds = array<i64: 1, 512>}, {pipeline_mode = #tpu.pipeline_mode<synchronous>, transform_indices = @transform_10, window_bounds = array<i64: 128, 256>}, {pipeline_mode = #tpu.pipeline_mode<synchronous>, transform_indices = @transform_11, window_bounds = array<i64: 1, 256>}, {pipeline_mode = #tpu.pipeline_mode<synchronous>, transform_indices = @transform_12, window_bounds = array<i64: 256, 128>}, {transform_indices = @transform_13, window_bounds = array<i64: 1, 64, 128>}, {transform_indices = @transform_14, window_bounds = array<i64: 1, 32, 128>}]} {
    %c0 = arith.constant 0 : index
    %c0_0 = arith.constant 0 : index
    %0 = vector.load %arg3[%c0, %c0_0] : memref<128x256xbf16, #tpu.memory_space<vmem>>, vector<128x256xbf16>
    %1 = arith.extf %0 : vector<128x256xbf16> to vector<128x256xf32>
    %c0_1 = arith.constant 0 : index
    %c0_2 = arith.constant 0 : index
    %2 = vector.load %arg6[%c0_1, %c0_2] : memref<256x512xbf16, #tpu.memory_space<vmem>>, vector<256x512xbf16>
    %3 = arith.extf %2 : vector<256x512xbf16> to vector<256x512xf32>
    %c0_3 = arith.constant 0 : index
    %c0_4 = arith.constant 0 : index
    %4 = vector.load %arg7[%c0_3, %c0_4] : memref<128x512xbf16, #tpu.memory_space<vmem>>, vector<128x512xbf16>
    %5 = arith.extf %4 : vector<128x512xbf16> to vector<128x512xf32>
    %c0_5 = arith.constant 0 : index
    %c0_6 = arith.constant 0 : index
    %6 = vector.load %arg9[%c0_5, %c0_6] : memref<256x512xbf16, #tpu.memory_space<vmem>>, vector<256x512xbf16>
    %7 = arith.extf %6 : vector<256x512xbf16> to vector<256x512xf32>
    %c0_7 = arith.constant 0 : index
    %c0_8 = arith.constant 0 : index
    %8 = vector.load %arg11[%c0_7, %c0_8] : memref<128x256xbf16, #tpu.memory_space<vmem>>, vector<128x256xbf16>
    %9 = arith.extf %8 : vector<128x256xbf16> to vector<128x256xf32>
    %c0_9 = arith.constant 0 : index
    %c0_10 = arith.constant 0 : index
    %10 = vector.load %arg13[%c0_9, %c0_10] : memref<256x128xbf16, #tpu.memory_space<vmem>>, vector<256x128xbf16>
    %11 = arith.extf %10 : vector<256x128xbf16> to vector<256x128xf32>
    %c0_11 = arith.constant 0 : index
    %c0_12 = arith.constant 0 : index
    %c0_13 = arith.constant 0 : index
    %12 = vector.load %arg1[%c0_11, %c0_12, %c0_13] : memref<1x64x128xf32, #tpu.memory_space<vmem>>, vector<1x64x128xf32>
    %13 = vector.shape_cast %12 : vector<1x64x128xf32> to vector<64x128xf32>
    %cst = arith.constant dense<0.000000e+00> : vector<64x256xf32>
    %14 = tpu.matmul %13, %1, %cst {dimension_numbers = #tpu.dot_dimension_numbers<[1], [0], [0], [1], [0, 0, 1, 1], [], []>} : vector<64x128xf32>, vector<128x256xf32>, vector<64x256xf32> -> vector<64x256xf32>
    %cst_14 = arith.constant dense<0.000000e+00> : vector<64xf32>
    %15 = vector.multi_reduction <add>, %14, %cst_14 [1] : vector<64x256xf32> to vector<64xf32>
    %16 = vector.shape_cast %15 : vector<64xf32> to vector<64x1xf32>
    %cst_15 = arith.constant 2.560000e+02 : f32
    %17 = vector.broadcast %cst_15 : f32 to vector<64x1xf32>
    %18 = arith.divf %16, %17 : vector<64x1xf32>
    %19 = vector.broadcast %18 : vector<64x1xf32> to vector<64x256xf32>
    %20 = arith.subf %14, %19 : vector<64x256xf32>
    %21 = arith.mulf %20, %20 : vector<64x256xf32>
    %cst_16 = arith.constant dense<0.000000e+00> : vector<64xf32>
    %22 = vector.multi_reduction <add>, %21, %cst_16 [1] : vector<64x256xf32> to vector<64xf32>
    %23 = vector.shape_cast %22 : vector<64xf32> to vector<64x1xf32>
    %cst_17 = arith.constant 2.560000e+02 : f32
    %24 = vector.broadcast %cst_17 : f32 to vector<64x1xf32>
    %25 = arith.divf %23, %24 : vector<64x1xf32>
    %26 = vector.broadcast %18 : vector<64x1xf32> to vector<64x256xf32>
    %27 = arith.subf %14, %26 : vector<64x256xf32>
    %cst_18 = arith.constant 1.000000e-07 : f32
    %28 = vector.broadcast %cst_18 : f32 to vector<64x1xf32>
    %29 = arith.addf %25, %28 : vector<64x1xf32>
    %30 = math.rsqrt %29 : vector<64x1xf32>
    %31 = vector.broadcast %30 : vector<64x1xf32> to vector<64x256xf32>
    %32 = arith.mulf %27, %31 : vector<64x256xf32>
    %c0_19 = arith.constant 0 : index
    %c0_20 = arith.constant 0 : index
    %33 = vector.load %arg4[%c0_19, %c0_20] : memref<1x256xf32, #tpu.memory_space<vmem>>, vector<1x256xf32>
    %34 = vector.broadcast %33 : vector<1x256xf32> to vector<64x256xf32>
    %35 = arith.mulf %32, %34 : vector<64x256xf32>
    %c0_21 = arith.constant 0 : index
    %c0_22 = arith.constant 0 : index
    %36 = vector.load %arg5[%c0_21, %c0_22] : memref<1x256xf32, #tpu.memory_space<vmem>>, vector<1x256xf32>
    %37 = vector.broadcast %36 : vector<1x256xf32> to vector<64x256xf32>
    %38 = arith.addf %35, %37 : vector<64x256xf32>
    %cst_23 = arith.constant dense<0.000000e+00> : vector<64x512xf32>
    %39 = tpu.matmul %38, %3, %cst_23 {dimension_numbers = #tpu.dot_dimension_numbers<[1], [0], [0], [1], [0, 0, 1, 1], [], []>} : vector<64x256xf32>, vector<256x512xf32>, vector<64x512xf32> -> vector<64x512xf32>
    %c0_24 = arith.constant 0 : index
    %c0_25 = arith.constant 0 : index
    %40 = vector.load %arg8[%c0_24, %c0_25] : memref<1x512xf32, #tpu.memory_space<vmem>>, vector<1x512xf32>
    %41 = vector.broadcast %40 : vector<1x512xf32> to vector<64x512xf32>
    %42 = arith.addf %39, %41 : vector<64x512xf32>
    %c0_26 = arith.constant 0 : index
    %c0_27 = arith.constant 0 : index
    %43 = vector.load %arg10[%c0_26, %c0_27] : memref<1x512xf32, #tpu.memory_space<vmem>>, vector<1x512xf32>
    %44 = vector.shape_cast %43 : vector<1x512xf32> to vector<1x512xf32>
    %45 = vector.broadcast %44 : vector<1x512xf32> to vector<8x512xf32>
    %c0_28 = arith.constant 0 : index
    %c0_29 = arith.constant 0 : index
    %c0_30 = arith.constant 0 : index
    %46 = vector.load %arg2[%c0_28, %c0_29, %c0_30] : memref<1x32x128xf32, #tpu.memory_space<vmem>>, vector<1x32x128xf32>
    %47 = vector.shape_cast %46 : vector<1x32x128xf32> to vector<32x128xf32>
    %48 = vector.extract_strided_slice %47 {offsets = [0, 0], sizes = [8, 128], strides = [1, 1]} : vector<32x128xf32> to vector<8x128xf32>
    %49 = vector.extract_strided_slice %47 {offsets = [8, 0], sizes = [8, 128], strides = [1, 1]} : vector<32x128xf32> to vector<8x128xf32>
    %50 = vector.extract_strided_slice %47 {offsets = [16, 0], sizes = [8, 128], strides = [1, 1]} : vector<32x128xf32> to vector<8x128xf32>
    %51 = vector.extract_strided_slice %47 {offsets = [24, 0], sizes = [8, 128], strides = [1, 1]} : vector<32x128xf32> to vector<8x128xf32>
    %52 = vector.extract_strided_slice %42 {offsets = [0, 0], sizes = [8, 512], strides = [1, 1]} : vector<64x512xf32> to vector<8x512xf32>
    %cst_31 = arith.constant dense<0.000000e+00> : vector<8x512xf32>
    %53 = tpu.matmul %48, %5, %cst_31 {dimension_numbers = #tpu.dot_dimension_numbers<[1], [0], [0], [1], [0, 0, 1, 1], [], []>} : vector<8x128xf32>, vector<128x512xf32>, vector<8x512xf32> -> vector<8x512xf32>
    %54 = arith.addf %52, %53 : vector<8x512xf32>
    %55 = vector.extract_strided_slice %54 {offsets = [0, 0], sizes = [8, 384], strides = [1, 1]} : vector<8x512xf32> to vector<8x384xf32>
    %56 = arith.negf %55 : vector<8x384xf32>
    %57 = math.exp %56 : vector<8x384xf32>
    %cst_32 = arith.constant 1.000000e+00 : f32
    %58 = vector.broadcast %cst_32 : f32 to vector<8x384xf32>
    %59 = arith.addf %58, %57 : vector<8x384xf32>
    %60 = arith.divf %58, %59 : vector<8x384xf32>
    %61 = vector.extract_strided_slice %60 {offsets = [0, 0], sizes = [8, 128], strides = [1, 1]} : vector<8x384xf32> to vector<8x128xf32>
    %62 = vector.extract_strided_slice %60 {offsets = [0, 128], sizes = [8, 128], strides = [1, 1]} : vector<8x384xf32> to vector<8x128xf32>
    %63 = vector.extract_strided_slice %60 {offsets = [0, 256], sizes = [8, 128], strides = [1, 1]} : vector<8x384xf32> to vector<8x128xf32>
    %64 = vector.extract_strided_slice %54 {offsets = [0, 384], sizes = [8, 128], strides = [1, 1]} : vector<8x512xf32> to vector<8x128xf32>
    %65 = math.tanh %64 : vector<8x128xf32>
    %66 = arith.mulf %62, %49 : vector<8x128xf32>
    %67 = arith.mulf %61, %65 : vector<8x128xf32>
    %68 = arith.addf %66, %67 : vector<8x128xf32>
    %69 = math.tanh %68 : vector<8x128xf32>
    %70 = arith.mulf %63, %69 : vector<8x128xf32>
    %71 = tpu.concatenate %70, %50 in 1 : vector<8x128xf32>, vector<8x128xf32> -> vector<8x256xf32>
    %cst_33 = arith.constant dense<0.000000e+00> : vector<8x512xf32>
    %72 = tpu.matmul %71, %7, %cst_33 {dimension_numbers = #tpu.dot_dimension_numbers<[1], [0], [0], [1], [0, 0, 1, 1], [], []>} : vector<8x256xf32>, vector<256x512xf32>, vector<8x512xf32> -> vector<8x512xf32>
    %73 = arith.addf %72, %45 : vector<8x512xf32>
    %74 = vector.extract_strided_slice %73 {offsets = [0, 0], sizes = [8, 384], strides = [1, 1]} : vector<8x512xf32> to vector<8x384xf32>
    %75 = arith.negf %74 : vector<8x384xf32>
    %76 = math.exp %75 : vector<8x384xf32>
    %cst_34 = arith.constant 1.000000e+00 : f32
    %77 = vector.broadcast %cst_34 : f32 to vector<8x384xf32>
    %78 = arith.addf %77, %76 : vector<8x384xf32>
    %79 = arith.divf %77, %78 : vector<8x384xf32>
    %80 = vector.extract_strided_slice %79 {offsets = [0, 0], sizes = [8, 128], strides = [1, 1]} : vector<8x384xf32> to vector<8x128xf32>
    %81 = vector.extract_strided_slice %79 {offsets = [0, 128], sizes = [8, 128], strides = [1, 1]} : vector<8x384xf32> to vector<8x128xf32>
    %82 = vector.extract_strided_slice %79 {offsets = [0, 256], sizes = [8, 128], strides = [1, 1]} : vector<8x384xf32> to vector<8x128xf32>
    %83 = vector.extract_strided_slice %73 {offsets = [0, 384], sizes = [8, 128], strides = [1, 1]} : vector<8x512xf32> to vector<8x128xf32>
    %84 = math.tanh %83 : vector<8x128xf32>
    %85 = arith.mulf %81, %51 : vector<8x128xf32>
    %86 = arith.mulf %80, %84 : vector<8x128xf32>
    %87 = arith.addf %85, %86 : vector<8x128xf32>
    %88 = math.tanh %87 : vector<8x128xf32>
    %89 = arith.mulf %82, %88 : vector<8x128xf32>
    %c0_35 = arith.constant 0 : index
    %c0_36 = arith.constant 0 : index
    %90 = vector.load %arg16[%c0_35, %c0_36] : memref<64x128xf32, #tpu.memory_space<vmem>>, vector<8x128xf32>
    tpu.vector_store %arg16[%c0_35, %c0_36], %89 {strides = array<i32>} : memref<64x128xf32, #tpu.memory_space<vmem>>, vector<8x128xf32>,
    %91 = vector.extract_strided_slice %42 {offsets = [8, 0], sizes = [8, 512], strides = [1, 1]} : vector<64x512xf32> to vector<8x512xf32>
    %cst_37 = arith.constant dense<0.000000e+00> : vector<8x512xf32>
    %92 = tpu.matmul %70, %5, %cst_37 {dimension_numbers = #tpu.dot_dimension_numbers<[1], [0], [0], [1], [0, 0, 1, 1], [], []>} : vector<8x128xf32>, vector<128x512xf32>, vector<8x512xf32> -> vector<8x512xf32>
    %93 = arith.addf %91, %92 : vector<8x512xf32>
    %94 = vector.extract_strided_slice %93 {offsets = [0, 0], sizes = [8, 384], strides = [1, 1]} : vector<8x512xf32> to vector<8x384xf32>
    %95 = arith.negf %94 : vector<8x384xf32>
    %96 = math.exp %95 : vector<8x384xf32>
    %cst_38 = arith.constant 1.000000e+00 : f32
    %97 = vector.broadcast %cst_38 : f32 to vector<8x384xf32>
    %98 = arith.addf %97, %96 : vector<8x384xf32>
    %99 = arith.divf %97, %98 : vector<8x384xf32>
    %100 = vector.extract_strided_slice %99 {offsets = [0, 0], sizes = [8, 128], strides = [1, 1]} : vector<8x384xf32> to vector<8x128xf32>
    %101 = vector.extract_strided_slice %99 {offsets = [0, 128], sizes = [8, 128], strides = [1, 1]} : vector<8x384xf32> to vector<8x128xf32>
    %102 = vector.extract_strided_slice %99 {offsets = [0, 256], sizes = [8, 128], strides = [1, 1]} : vector<8x384xf32> to vector<8x128xf32>
    %103 = vector.extract_strided_slice %93 {offsets = [0, 384], sizes = [8, 128], strides = [1, 1]} : vector<8x512xf32> to vector<8x128xf32>
    %104 = math.tanh %103 : vector<8x128xf32>
    %105 = arith.mulf %101, %68 : vector<8x128xf32>
    %106 = arith.mulf %100, %104 : vector<8x128xf32>
    %107 = arith.addf %105, %106 : vector<8x128xf32>
    %108 = math.tanh %107 : vector<8x128xf32>
    %109 = arith.mulf %102, %108 : vector<8x128xf32>
    %110 = tpu.concatenate %109, %89 in 1 : vector<8x128xf32>, vector<8x128xf32> -> vector<8x256xf32>
    %cst_39 = arith.constant dense<0.000000e+00> : vector<8x512xf32>
    %111 = tpu.matmul %110, %7, %cst_39 {dimension_numbers = #tpu.dot_dimension_numbers<[1], [0], [0], [1], [0, 0, 1, 1], [], []>} : vector<8x256xf32>, vector<256x512xf32>, vector<8x512xf32> -> vector<8x512xf32>
    %112 = arith.addf %111, %45 : vector<8x512xf32>
    %113 = vector.extract_strided_slice %112 {offsets = [0, 0], sizes = [8, 384], strides = [1, 1]} : vector<8x512xf32> to vector<8x384xf32>
    %114 = arith.negf %113 : vector<8x384xf32>
    %115 = math.exp %114 : vector<8x384xf32>
    %cst_40 = arith.constant 1.000000e+00 : f32
    %116 = vector.broadcast %cst_40 : f32 to vector<8x384xf32>
    %117 = arith.addf %116, %115 : vector<8x384xf32>
    %118 = arith.divf %116, %117 : vector<8x384xf32>
    %119 = vector.extract_strided_slice %118 {offsets = [0, 0], sizes = [8, 128], strides = [1, 1]} : vector<8x384xf32> to vector<8x128xf32>
    %120 = vector.extract_strided_slice %118 {offsets = [0, 128], sizes = [8, 128], strides = [1, 1]} : vector<8x384xf32> to vector<8x128xf32>
    %121 = vector.extract_strided_slice %118 {offsets = [0, 256], sizes = [8, 128], strides = [1, 1]} : vector<8x384xf32> to vector<8x128xf32>
    %122 = vector.extract_strided_slice %112 {offsets = [0, 384], sizes = [8, 128], strides = [1, 1]} : vector<8x512xf32> to vector<8x128xf32>
    %123 = math.tanh %122 : vector<8x128xf32>
    %124 = arith.mulf %120, %87 : vector<8x128xf32>
    %125 = arith.mulf %119, %123 : vector<8x128xf32>
    %126 = arith.addf %124, %125 : vector<8x128xf32>
    %127 = math.tanh %126 : vector<8x128xf32>
    %128 = arith.mulf %121, %127 : vector<8x128xf32>
    %c8 = arith.constant 8 : index
    %c0_41 = arith.constant 0 : index
    %129 = vector.load %arg16[%c8, %c0_41] : memref<64x128xf32, #tpu.memory_space<vmem>>, vector<8x128xf32>
    tpu.vector_store %arg16[%c8, %c0_41], %128 {strides = array<i32>} : memref<64x128xf32, #tpu.memory_space<vmem>>, vector<8x128xf32>,
    %130 = vector.extract_strided_slice %42 {offsets = [16, 0], sizes = [8, 512], strides = [1, 1]} : vector<64x512xf32> to vector<8x512xf32>
    %cst_42 = arith.constant dense<0.000000e+00> : vector<8x512xf32>
    %131 = tpu.matmul %109, %5, %cst_42 {dimension_numbers = #tpu.dot_dimension_numbers<[1], [0], [0], [1], [0, 0, 1, 1], [], []>} : vector<8x128xf32>, vector<128x512xf32>, vector<8x512xf32> -> vector<8x512xf32>
    %132 = arith.addf %130, %131 : vector<8x512xf32>
    %133 = vector.extract_strided_slice %132 {offsets = [0, 0], sizes = [8, 384], strides = [1, 1]} : vector<8x512xf32> to vector<8x384xf32>
    %134 = arith.negf %133 : vector<8x384xf32>
    %135 = math.exp %134 : vector<8x384xf32>
    %cst_43 = arith.constant 1.000000e+00 : f32
    %136 = vector.broadcast %cst_43 : f32 to vector<8x384xf32>
    %137 = arith.addf %136, %135 : vector<8x384xf32>
    %138 = arith.divf %136, %137 : vector<8x384xf32>
    %139 = vector.extract_strided_slice %138 {offsets = [0, 0], sizes = [8, 128], strides = [1, 1]} : vector<8x384xf32> to vector<8x128xf32>
    %140 = vector.extract_strided_slice %138 {offsets = [0, 128], sizes = [8, 128], strides = [1, 1]} : vector<8x384xf32> to vector<8x128xf32>
    %141 = vector.extract_strided_slice %138 {offsets = [0, 256], sizes = [8, 128], strides = [1, 1]} : vector<8x384xf32> to vector<8x128xf32>
    %142 = vector.extract_strided_slice %132 {offsets = [0, 384], sizes = [8, 128], strides = [1, 1]} : vector<8x512xf32> to vector<8x128xf32>
    %143 = math.tanh %142 : vector<8x128xf32>
    %144 = arith.mulf %140, %107 : vector<8x128xf32>
    %145 = arith.mulf %139, %143 : vector<8x128xf32>
    %146 = arith.addf %144, %145 : vector<8x128xf32>
    %147 = math.tanh %146 : vector<8x128xf32>
    %148 = arith.mulf %141, %147 : vector<8x128xf32>
    %149 = tpu.concatenate %148, %128 in 1 : vector<8x128xf32>, vector<8x128xf32> -> vector<8x256xf32>
    %cst_44 = arith.constant dense<0.000000e+00> : vector<8x512xf32>
    %150 = tpu.matmul %149, %7, %cst_44 {dimension_numbers = #tpu.dot_dimension_numbers<[1], [0], [0], [1], [0, 0, 1, 1], [], []>} : vector<8x256xf32>, vector<256x512xf32>, vector<8x512xf32> -> vector<8x512xf32>
    %151 = arith.addf %150, %45 : vector<8x512xf32>
    %152 = vector.extract_strided_slice %151 {offsets = [0, 0], sizes = [8, 384], strides = [1, 1]} : vector<8x512xf32> to vector<8x384xf32>
    %153 = arith.negf %152 : vector<8x384xf32>
    %154 = math.exp %153 : vector<8x384xf32>
    %cst_45 = arith.constant 1.000000e+00 : f32
    %155 = vector.broadcast %cst_45 : f32 to vector<8x384xf32>
    %156 = arith.addf %155, %154 : vector<8x384xf32>
    %157 = arith.divf %155, %156 : vector<8x384xf32>
    %158 = vector.extract_strided_slice %157 {offsets = [0, 0], sizes = [8, 128], strides = [1, 1]} : vector<8x384xf32> to vector<8x128xf32>
    %159 = vector.extract_strided_slice %157 {offsets = [0, 128], sizes = [8, 128], strides = [1, 1]} : vector<8x384xf32> to vector<8x128xf32>
    %160 = vector.extract_strided_slice %157 {offsets = [0, 256], sizes = [8, 128], strides = [1, 1]} : vector<8x384xf32> to vector<8x128xf32>
    %161 = vector.extract_strided_slice %151 {offsets = [0, 384], sizes = [8, 128], strides = [1, 1]} : vector<8x512xf32> to vector<8x128xf32>
    %162 = math.tanh %161 : vector<8x128xf32>
    %163 = arith.mulf %159, %126 : vector<8x128xf32>
    %164 = arith.mulf %158, %162 : vector<8x128xf32>
    %165 = arith.addf %163, %164 : vector<8x128xf32>
    %166 = math.tanh %165 : vector<8x128xf32>
    %167 = arith.mulf %160, %166 : vector<8x128xf32>
    %c16 = arith.constant 16 : index
    %c0_46 = arith.constant 0 : index
    %168 = vector.load %arg16[%c16, %c0_46] : memref<64x128xf32, #tpu.memory_space<vmem>>, vector<8x128xf32>
    tpu.vector_store %arg16[%c16, %c0_46], %167 {strides = array<i32>} : memref<64x128xf32, #tpu.memory_space<vmem>>, vector<8x128xf32>,
    %169 = vector.extract_strided_slice %42 {offsets = [24, 0], sizes = [8, 512], strides = [1, 1]} : vector<64x512xf32> to vector<8x512xf32>
    %cst_47 = arith.constant dense<0.000000e+00> : vector<8x512xf32>
    %170 = tpu.matmul %148, %5, %cst_47 {dimension_numbers = #tpu.dot_dimension_numbers<[1], [0], [0], [1], [0, 0, 1, 1], [], []>} : vector<8x128xf32>, vector<128x512xf32>, vector<8x512xf32> -> vector<8x512xf32>
    %171 = arith.addf %169, %170 : vector<8x512xf32>
    %172 = vector.extract_strided_slice %171 {offsets = [0, 0], sizes = [8, 384], strides = [1, 1]} : vector<8x512xf32> to vector<8x384xf32>
    %173 = arith.negf %172 : vector<8x384xf32>
    %174 = math.exp %173 : vector<8x384xf32>
    %cst_48 = arith.constant 1.000000e+00 : f32
    %175 = vector.broadcast %cst_48 : f32 to vector<8x384xf32>
    %176 = arith.addf %175, %174 : vector<8x384xf32>
    %177 = arith.divf %175, %176 : vector<8x384xf32>
    %178 = vector.extract_strided_slice %177 {offsets = [0, 0], sizes = [8, 128], strides = [1, 1]} : vector<8x384xf32> to vector<8x128xf32>
    %179 = vector.extract_strided_slice %177 {offsets = [0, 128], sizes = [8, 128], strides = [1, 1]} : vector<8x384xf32> to vector<8x128xf32>
    %180 = vector.extract_strided_slice %177 {offsets = [0, 256], sizes = [8, 128], strides = [1, 1]} : vector<8x384xf32> to vector<8x128xf32>
    %181 = vector.extract_strided_slice %171 {offsets = [0, 384], sizes = [8, 128], strides = [1, 1]} : vector<8x512xf32> to vector<8x128xf32>
    %182 = math.tanh %181 : vector<8x128xf32>
    %183 = arith.mulf %179, %146 : vector<8x128xf32>
    %184 = arith.mulf %178, %182 : vector<8x128xf32>
    %185 = arith.addf %183, %184 : vector<8x128xf32>
    %186 = math.tanh %185 : vector<8x128xf32>
    %187 = arith.mulf %180, %186 : vector<8x128xf32>
    %188 = tpu.concatenate %187, %167 in 1 : vector<8x128xf32>, vector<8x128xf32> -> vector<8x256xf32>
    %cst_49 = arith.constant dense<0.000000e+00> : vector<8x512xf32>
    %189 = tpu.matmul %188, %7, %cst_49 {dimension_numbers = #tpu.dot_dimension_numbers<[1], [0], [0], [1], [0, 0, 1, 1], [], []>} : vector<8x256xf32>, vector<256x512xf32>, vector<8x512xf32> -> vector<8x512xf32>
    %190 = arith.addf %189, %45 : vector<8x512xf32>
    %191 = vector.extract_strided_slice %190 {offsets = [0, 0], sizes = [8, 384], strides = [1, 1]} : vector<8x512xf32> to vector<8x384xf32>
    %192 = arith.negf %191 : vector<8x384xf32>
    %193 = math.exp %192 : vector<8x384xf32>
    %cst_50 = arith.constant 1.000000e+00 : f32
    %194 = vector.broadcast %cst_50 : f32 to vector<8x384xf32>
    %195 = arith.addf %194, %193 : vector<8x384xf32>
    %196 = arith.divf %194, %195 : vector<8x384xf32>
    %197 = vector.extract_strided_slice %196 {offsets = [0, 0], sizes = [8, 128], strides = [1, 1]} : vector<8x384xf32> to vector<8x128xf32>
    %198 = vector.extract_strided_slice %196 {offsets = [0, 128], sizes = [8, 128], strides = [1, 1]} : vector<8x384xf32> to vector<8x128xf32>
    %199 = vector.extract_strided_slice %196 {offsets = [0, 256], sizes = [8, 128], strides = [1, 1]} : vector<8x384xf32> to vector<8x128xf32>
    %200 = vector.extract_strided_slice %190 {offsets = [0, 384], sizes = [8, 128], strides = [1, 1]} : vector<8x512xf32> to vector<8x128xf32>
    %201 = math.tanh %200 : vector<8x128xf32>
    %202 = arith.mulf %198, %165 : vector<8x128xf32>
    %203 = arith.mulf %197, %201 : vector<8x128xf32>
    %204 = arith.addf %202, %203 : vector<8x128xf32>
    %205 = math.tanh %204 : vector<8x128xf32>
    %206 = arith.mulf %199, %205 : vector<8x128xf32>
    %c24 = arith.constant 24 : index
    %c0_51 = arith.constant 0 : index
    %207 = vector.load %arg16[%c24, %c0_51] : memref<64x128xf32, #tpu.memory_space<vmem>>, vector<8x128xf32>
    tpu.vector_store %arg16[%c24, %c0_51], %206 {strides = array<i32>} : memref<64x128xf32, #tpu.memory_space<vmem>>, vector<8x128xf32>,
    %208 = vector.extract_strided_slice %42 {offsets = [32, 0], sizes = [8, 512], strides = [1, 1]} : vector<64x512xf32> to vector<8x512xf32>
    %cst_52 = arith.constant dense<0.000000e+00> : vector<8x512xf32>
    %209 = tpu.matmul %187, %5, %cst_52 {dimension_numbers = #tpu.dot_dimension_numbers<[1], [0], [0], [1], [0, 0, 1, 1], [], []>} : vector<8x128xf32>, vector<128x512xf32>, vector<8x512xf32> -> vector<8x512xf32>
    %210 = arith.addf %208, %209 : vector<8x512xf32>
    %211 = vector.extract_strided_slice %210 {offsets = [0, 0], sizes = [8, 384], strides = [1, 1]} : vector<8x512xf32> to vector<8x384xf32>
    %212 = arith.negf %211 : vector<8x384xf32>
    %213 = math.exp %212 : vector<8x384xf32>
    %cst_53 = arith.constant 1.000000e+00 : f32
    %214 = vector.broadcast %cst_53 : f32 to vector<8x384xf32>
    %215 = arith.addf %214, %213 : vector<8x384xf32>
    %216 = arith.divf %214, %215 : vector<8x384xf32>
    %217 = vector.extract_strided_slice %216 {offsets = [0, 0], sizes = [8, 128], strides = [1, 1]} : vector<8x384xf32> to vector<8x128xf32>
    %218 = vector.extract_strided_slice %216 {offsets = [0, 128], sizes = [8, 128], strides = [1, 1]} : vector<8x384xf32> to vector<8x128xf32>
    %219 = vector.extract_strided_slice %216 {offsets = [0, 256], sizes = [8, 128], strides = [1, 1]} : vector<8x384xf32> to vector<8x128xf32>
    %220 = vector.extract_strided_slice %210 {offsets = [0, 384], sizes = [8, 128], strides = [1, 1]} : vector<8x512xf32> to vector<8x128xf32>
    %221 = math.tanh %220 : vector<8x128xf32>
    %222 = arith.mulf %218, %185 : vector<8x128xf32>
    %223 = arith.mulf %217, %221 : vector<8x128xf32>
    %224 = arith.addf %222, %223 : vector<8x128xf32>
    %225 = math.tanh %224 : vector<8x128xf32>
    %226 = arith.mulf %219, %225 : vector<8x128xf32>
    %227 = tpu.concatenate %226, %206 in 1 : vector<8x128xf32>, vector<8x128xf32> -> vector<8x256xf32>
    %cst_54 = arith.constant dense<0.000000e+00> : vector<8x512xf32>
    %228 = tpu.matmul %227, %7, %cst_54 {dimension_numbers = #tpu.dot_dimension_numbers<[1], [0], [0], [1], [0, 0, 1, 1], [], []>} : vector<8x256xf32>, vector<256x512xf32>, vector<8x512xf32> -> vector<8x512xf32>
    %229 = arith.addf %228, %45 : vector<8x512xf32>
    %230 = vector.extract_strided_slice %229 {offsets = [0, 0], sizes = [8, 384], strides = [1, 1]} : vector<8x512xf32> to vector<8x384xf32>
    %231 = arith.negf %230 : vector<8x384xf32>
    %232 = math.exp %231 : vector<8x384xf32>
    %cst_55 = arith.constant 1.000000e+00 : f32
    %233 = vector.broadcast %cst_55 : f32 to vector<8x384xf32>
    %234 = arith.addf %233, %232 : vector<8x384xf32>
    %235 = arith.divf %233, %234 : vector<8x384xf32>
    %236 = vector.extract_strided_slice %235 {offsets = [0, 0], sizes = [8, 128], strides = [1, 1]} : vector<8x384xf32> to vector<8x128xf32>
    %237 = vector.extract_strided_slice %235 {offsets = [0, 128], sizes = [8, 128], strides = [1, 1]} : vector<8x384xf32> to vector<8x128xf32>
    %238 = vector.extract_strided_slice %235 {offsets = [0, 256], sizes = [8, 128], strides = [1, 1]} : vector<8x384xf32> to vector<8x128xf32>
    %239 = vector.extract_strided_slice %229 {offsets = [0, 384], sizes = [8, 128], strides = [1, 1]} : vector<8x512xf32> to vector<8x128xf32>
    %240 = math.tanh %239 : vector<8x128xf32>
    %241 = arith.mulf %237, %204 : vector<8x128xf32>
    %242 = arith.mulf %236, %240 : vector<8x128xf32>
    %243 = arith.addf %241, %242 : vector<8x128xf32>
    %244 = math.tanh %243 : vector<8x128xf32>
    %245 = arith.mulf %238, %244 : vector<8x128xf32>
    %c32 = arith.constant 32 : index
    %c0_56 = arith.constant 0 : index
    %246 = vector.load %arg16[%c32, %c0_56] : memref<64x128xf32, #tpu.memory_space<vmem>>, vector<8x128xf32>
    tpu.vector_store %arg16[%c32, %c0_56], %245 {strides = array<i32>} : memref<64x128xf32, #tpu.memory_space<vmem>>, vector<8x128xf32>,
    %247 = vector.extract_strided_slice %42 {offsets = [40, 0], sizes = [8, 512], strides = [1, 1]} : vector<64x512xf32> to vector<8x512xf32>
    %cst_57 = arith.constant dense<0.000000e+00> : vector<8x512xf32>
    %248 = tpu.matmul %226, %5, %cst_57 {dimension_numbers = #tpu.dot_dimension_numbers<[1], [0], [0], [1], [0, 0, 1, 1], [], []>} : vector<8x128xf32>, vector<128x512xf32>, vector<8x512xf32> -> vector<8x512xf32>
    %249 = arith.addf %247, %248 : vector<8x512xf32>
    %250 = vector.extract_strided_slice %249 {offsets = [0, 0], sizes = [8, 384], strides = [1, 1]} : vector<8x512xf32> to vector<8x384xf32>
    %251 = arith.negf %250 : vector<8x384xf32>
    %252 = math.exp %251 : vector<8x384xf32>
    %cst_58 = arith.constant 1.000000e+00 : f32
    %253 = vector.broadcast %cst_58 : f32 to vector<8x384xf32>
    %254 = arith.addf %253, %252 : vector<8x384xf32>
    %255 = arith.divf %253, %254 : vector<8x384xf32>
    %256 = vector.extract_strided_slice %255 {offsets = [0, 0], sizes = [8, 128], strides = [1, 1]} : vector<8x384xf32> to vector<8x128xf32>
    %257 = vector.extract_strided_slice %255 {offsets = [0, 128], sizes = [8, 128], strides = [1, 1]} : vector<8x384xf32> to vector<8x128xf32>
    %258 = vector.extract_strided_slice %255 {offsets = [0, 256], sizes = [8, 128], strides = [1, 1]} : vector<8x384xf32> to vector<8x128xf32>
    %259 = vector.extract_strided_slice %249 {offsets = [0, 384], sizes = [8, 128], strides = [1, 1]} : vector<8x512xf32> to vector<8x128xf32>
    %260 = math.tanh %259 : vector<8x128xf32>
    %261 = arith.mulf %257, %224 : vector<8x128xf32>
    %262 = arith.mulf %256, %260 : vector<8x128xf32>
    %263 = arith.addf %261, %262 : vector<8x128xf32>
    %264 = math.tanh %263 : vector<8x128xf32>
    %265 = arith.mulf %258, %264 : vector<8x128xf32>
    %266 = tpu.concatenate %265, %245 in 1 : vector<8x128xf32>, vector<8x128xf32> -> vector<8x256xf32>
    %cst_59 = arith.constant dense<0.000000e+00> : vector<8x512xf32>
    %267 = tpu.matmul %266, %7, %cst_59 {dimension_numbers = #tpu.dot_dimension_numbers<[1], [0], [0], [1], [0, 0, 1, 1], [], []>} : vector<8x256xf32>, vector<256x512xf32>, vector<8x512xf32> -> vector<8x512xf32>
    %268 = arith.addf %267, %45 : vector<8x512xf32>
    %269 = vector.extract_strided_slice %268 {offsets = [0, 0], sizes = [8, 384], strides = [1, 1]} : vector<8x512xf32> to vector<8x384xf32>
    %270 = arith.negf %269 : vector<8x384xf32>
    %271 = math.exp %270 : vector<8x384xf32>
    %cst_60 = arith.constant 1.000000e+00 : f32
    %272 = vector.broadcast %cst_60 : f32 to vector<8x384xf32>
    %273 = arith.addf %272, %271 : vector<8x384xf32>
    %274 = arith.divf %272, %273 : vector<8x384xf32>
    %275 = vector.extract_strided_slice %274 {offsets = [0, 0], sizes = [8, 128], strides = [1, 1]} : vector<8x384xf32> to vector<8x128xf32>
    %276 = vector.extract_strided_slice %274 {offsets = [0, 128], sizes = [8, 128], strides = [1, 1]} : vector<8x384xf32> to vector<8x128xf32>
    %277 = vector.extract_strided_slice %274 {offsets = [0, 256], sizes = [8, 128], strides = [1, 1]} : vector<8x384xf32> to vector<8x128xf32>
    %278 = vector.extract_strided_slice %268 {offsets = [0, 384], sizes = [8, 128], strides = [1, 1]} : vector<8x512xf32> to vector<8x128xf32>
    %279 = math.tanh %278 : vector<8x128xf32>
    %280 = arith.mulf %276, %243 : vector<8x128xf32>
    %281 = arith.mulf %275, %279 : vector<8x128xf32>
    %282 = arith.addf %280, %281 : vector<8x128xf32>
    %283 = math.tanh %282 : vector<8x128xf32>
    %284 = arith.mulf %277, %283 : vector<8x128xf32>
    %c40 = arith.constant 40 : index
    %c0_61 = arith.constant 0 : index
    %285 = vector.load %arg16[%c40, %c0_61] : memref<64x128xf32, #tpu.memory_space<vmem>>, vector<8x128xf32>
    tpu.vector_store %arg16[%c40, %c0_61], %284 {strides = array<i32>} : memref<64x128xf32, #tpu.memory_space<vmem>>, vector<8x128xf32>,
    %286 = vector.extract_strided_slice %42 {offsets = [48, 0], sizes = [8, 512], strides = [1, 1]} : vector<64x512xf32> to vector<8x512xf32>
    %cst_62 = arith.constant dense<0.000000e+00> : vector<8x512xf32>
    %287 = tpu.matmul %265, %5, %cst_62 {dimension_numbers = #tpu.dot_dimension_numbers<[1], [0], [0], [1], [0, 0, 1, 1], [], []>} : vector<8x128xf32>, vector<128x512xf32>, vector<8x512xf32> -> vector<8x512xf32>
    %288 = arith.addf %286, %287 : vector<8x512xf32>
    %289 = vector.extract_strided_slice %288 {offsets = [0, 0], sizes = [8, 384], strides = [1, 1]} : vector<8x512xf32> to vector<8x384xf32>
    %290 = arith.negf %289 : vector<8x384xf32>
    %291 = math.exp %290 : vector<8x384xf32>
    %cst_63 = arith.constant 1.000000e+00 : f32
    %292 = vector.broadcast %cst_63 : f32 to vector<8x384xf32>
    %293 = arith.addf %292, %291 : vector<8x384xf32>
    %294 = arith.divf %292, %293 : vector<8x384xf32>
    %295 = vector.extract_strided_slice %294 {offsets = [0, 0], sizes = [8, 128], strides = [1, 1]} : vector<8x384xf32> to vector<8x128xf32>
    %296 = vector.extract_strided_slice %294 {offsets = [0, 128], sizes = [8, 128], strides = [1, 1]} : vector<8x384xf32> to vector<8x128xf32>
    %297 = vector.extract_strided_slice %294 {offsets = [0, 256], sizes = [8, 128], strides = [1, 1]} : vector<8x384xf32> to vector<8x128xf32>
    %298 = vector.extract_strided_slice %288 {offsets = [0, 384], sizes = [8, 128], strides = [1, 1]} : vector<8x512xf32> to vector<8x128xf32>
    %299 = math.tanh %298 : vector<8x128xf32>
    %300 = arith.mulf %296, %263 : vector<8x128xf32>
    %301 = arith.mulf %295, %299 : vector<8x128xf32>
    %302 = arith.addf %300, %301 : vector<8x128xf32>
    %303 = math.tanh %302 : vector<8x128xf32>
    %304 = arith.mulf %297, %303 : vector<8x128xf32>
    %305 = tpu.concatenate %304, %284 in 1 : vector<8x128xf32>, vector<8x128xf32> -> vector<8x256xf32>
    %cst_64 = arith.constant dense<0.000000e+00> : vector<8x512xf32>
    %306 = tpu.matmul %305, %7, %cst_64 {dimension_numbers = #tpu.dot_dimension_numbers<[1], [0], [0], [1], [0, 0, 1, 1], [], []>} : vector<8x256xf32>, vector<256x512xf32>, vector<8x512xf32> -> vector<8x512xf32>
    %307 = arith.addf %306, %45 : vector<8x512xf32>
    %308 = vector.extract_strided_slice %307 {offsets = [0, 0], sizes = [8, 384], strides = [1, 1]} : vector<8x512xf32> to vector<8x384xf32>
    %309 = arith.negf %308 : vector<8x384xf32>
    %310 = math.exp %309 : vector<8x384xf32>
    %cst_65 = arith.constant 1.000000e+00 : f32
    %311 = vector.broadcast %cst_65 : f32 to vector<8x384xf32>
    %312 = arith.addf %311, %310 : vector<8x384xf32>
    %313 = arith.divf %311, %312 : vector<8x384xf32>
    %314 = vector.extract_strided_slice %313 {offsets = [0, 0], sizes = [8, 128], strides = [1, 1]} : vector<8x384xf32> to vector<8x128xf32>
    %315 = vector.extract_strided_slice %313 {offsets = [0, 128], sizes = [8, 128], strides = [1, 1]} : vector<8x384xf32> to vector<8x128xf32>
    %316 = vector.extract_strided_slice %313 {offsets = [0, 256], sizes = [8, 128], strides = [1, 1]} : vector<8x384xf32> to vector<8x128xf32>
    %317 = vector.extract_strided_slice %307 {offsets = [0, 384], sizes = [8, 128], strides = [1, 1]} : vector<8x512xf32> to vector<8x128xf32>
    %318 = math.tanh %317 : vector<8x128xf32>
    %319 = arith.mulf %315, %282 : vector<8x128xf32>
    %320 = arith.mulf %314, %318 : vector<8x128xf32>
    %321 = arith.addf %319, %320 : vector<8x128xf32>
    %322 = math.tanh %321 : vector<8x128xf32>
    %323 = arith.mulf %316, %322 : vector<8x128xf32>
    %c48 = arith.constant 48 : index
    %c0_66 = arith.constant 0 : index
    %324 = vector.load %arg16[%c48, %c0_66] : memref<64x128xf32, #tpu.memory_space<vmem>>, vector<8x128xf32>
    tpu.vector_store %arg16[%c48, %c0_66], %323 {strides = array<i32>} : memref<64x128xf32, #tpu.memory_space<vmem>>, vector<8x128xf32>,
    %325 = vector.extract_strided_slice %42 {offsets = [56, 0], sizes = [8, 512], strides = [1, 1]} : vector<64x512xf32> to vector<8x512xf32>
    %cst_67 = arith.constant dense<0.000000e+00> : vector<8x512xf32>
    %326 = tpu.matmul %304, %5, %cst_67 {dimension_numbers = #tpu.dot_dimension_numbers<[1], [0], [0], [1], [0, 0, 1, 1], [], []>} : vector<8x128xf32>, vector<128x512xf32>, vector<8x512xf32> -> vector<8x512xf32>
    %327 = arith.addf %325, %326 : vector<8x512xf32>
    %328 = vector.extract_strided_slice %327 {offsets = [0, 0], sizes = [8, 384], strides = [1, 1]} : vector<8x512xf32> to vector<8x384xf32>
    %329 = arith.negf %328 : vector<8x384xf32>
    %330 = math.exp %329 : vector<8x384xf32>
    %cst_68 = arith.constant 1.000000e+00 : f32
    %331 = vector.broadcast %cst_68 : f32 to vector<8x384xf32>
    %332 = arith.addf %331, %330 : vector<8x384xf32>
    %333 = arith.divf %331, %332 : vector<8x384xf32>
    %334 = vector.extract_strided_slice %333 {offsets = [0, 0], sizes = [8, 128], strides = [1, 1]} : vector<8x384xf32> to vector<8x128xf32>
    %335 = vector.extract_strided_slice %333 {offsets = [0, 128], sizes = [8, 128], strides = [1, 1]} : vector<8x384xf32> to vector<8x128xf32>
    %336 = vector.extract_strided_slice %333 {offsets = [0, 256], sizes = [8, 128], strides = [1, 1]} : vector<8x384xf32> to vector<8x128xf32>
    %337 = vector.extract_strided_slice %327 {offsets = [0, 384], sizes = [8, 128], strides = [1, 1]} : vector<8x512xf32> to vector<8x128xf32>
    %338 = math.tanh %337 : vector<8x128xf32>
    %339 = arith.mulf %335, %302 : vector<8x128xf32>
    %340 = arith.mulf %334, %338 : vector<8x128xf32>
    %341 = arith.addf %339, %340 : vector<8x128xf32>
    %342 = math.tanh %341 : vector<8x128xf32>
    %343 = arith.mulf %336, %342 : vector<8x128xf32>
    %344 = tpu.concatenate %343, %323 in 1 : vector<8x128xf32>, vector<8x128xf32> -> vector<8x256xf32>
    %cst_69 = arith.constant dense<0.000000e+00> : vector<8x512xf32>
    %345 = tpu.matmul %344, %7, %cst_69 {dimension_numbers = #tpu.dot_dimension_numbers<[1], [0], [0], [1], [0, 0, 1, 1], [], []>} : vector<8x256xf32>, vector<256x512xf32>, vector<8x512xf32> -> vector<8x512xf32>
    %346 = arith.addf %345, %45 : vector<8x512xf32>
    %347 = vector.extract_strided_slice %346 {offsets = [0, 0], sizes = [8, 384], strides = [1, 1]} : vector<8x512xf32> to vector<8x384xf32>
    %348 = arith.negf %347 : vector<8x384xf32>
    %349 = math.exp %348 : vector<8x384xf32>
    %cst_70 = arith.constant 1.000000e+00 : f32
    %350 = vector.broadcast %cst_70 : f32 to vector<8x384xf32>
    %351 = arith.addf %350, %349 : vector<8x384xf32>
    %352 = arith.divf %350, %351 : vector<8x384xf32>
    %353 = vector.extract_strided_slice %352 {offsets = [0, 0], sizes = [8, 128], strides = [1, 1]} : vector<8x384xf32> to vector<8x128xf32>
    %354 = vector.extract_strided_slice %352 {offsets = [0, 128], sizes = [8, 128], strides = [1, 1]} : vector<8x384xf32> to vector<8x128xf32>
    %355 = vector.extract_strided_slice %352 {offsets = [0, 256], sizes = [8, 128], strides = [1, 1]} : vector<8x384xf32> to vector<8x128xf32>
    %356 = vector.extract_strided_slice %346 {offsets = [0, 384], sizes = [8, 128], strides = [1, 1]} : vector<8x512xf32> to vector<8x128xf32>
    %357 = math.tanh %356 : vector<8x128xf32>
    %358 = arith.mulf %354, %321 : vector<8x128xf32>
    %359 = arith.mulf %353, %357 : vector<8x128xf32>
    %360 = arith.addf %358, %359 : vector<8x128xf32>
    %361 = math.tanh %360 : vector<8x128xf32>
    %362 = arith.mulf %355, %361 : vector<8x128xf32>
    %c56 = arith.constant 56 : index
    %c0_71 = arith.constant 0 : index
    %363 = vector.load %arg16[%c56, %c0_71] : memref<64x128xf32, #tpu.memory_space<vmem>>, vector<8x128xf32>
    tpu.vector_store %arg16[%c56, %c0_71], %362 {strides = array<i32>} : memref<64x128xf32, #tpu.memory_space<vmem>>, vector<8x128xf32>,
    %c0_72 = arith.constant 0 : index
    %c0_73 = arith.constant 0 : index
    %364 = vector.load %arg16[%c0_72, %c0_73] : memref<64x128xf32, #tpu.memory_space<vmem>>, vector<64x128xf32>
    %cst_74 = arith.constant dense<0.000000e+00> : vector<64x256xf32>
    %365 = tpu.matmul %364, %9, %cst_74 {dimension_numbers = #tpu.dot_dimension_numbers<[1], [0], [0], [1], [0, 0, 1, 1], [], []>} : vector<64x128xf32>, vector<128x256xf32>, vector<64x256xf32> -> vector<64x256xf32>
    %c0_75 = arith.constant 0 : index
    %c0_76 = arith.constant 0 : index
    %366 = vector.load %arg12[%c0_75, %c0_76] : memref<1x256xf32, #tpu.memory_space<vmem>>, vector<1x256xf32>
    %367 = vector.broadcast %366 : vector<1x256xf32> to vector<64x256xf32>
    %368 = arith.addf %365, %367 : vector<64x256xf32>
    %369 = arith.negf %368 : vector<64x256xf32>
    %370 = math.exp %369 : vector<64x256xf32>
    %cst_77 = arith.constant 1.000000e+00 : f32
    %371 = vector.broadcast %cst_77 : f32 to vector<64x256xf32>
    %372 = arith.addf %371, %370 : vector<64x256xf32>
    %373 = arith.divf %371, %372 : vector<64x256xf32>
    %374 = arith.mulf %373, %14 : vector<64x256xf32>
    %cst_78 = arith.constant dense<0.000000e+00> : vector<64x128xf32>
    %375 = tpu.matmul %374, %11, %cst_78 {dimension_numbers = #tpu.dot_dimension_numbers<[1], [0], [0], [1], [0, 0, 1, 1], [], []>} : vector<64x256xf32>, vector<256x128xf32>, vector<64x128xf32> -> vector<64x128xf32>
    %c0_79 = arith.constant 0 : index
    %c0_80 = arith.constant 0 : index
    %c0_81 = arith.constant 0 : index
    %376 = vector.load %arg14[%c0_79, %c0_80, %c0_81] : memref<1x64x128xf32, #tpu.memory_space<vmem>>, vector<1x64x128xf32>
    %377 = vector.shape_cast %376 : vector<1x64x128xf32> to vector<64x128xf32>
    %378 = vector.shape_cast %375 : vector<64x128xf32> to vector<1x64x128xf32>
    tpu.vector_store %arg14[%c0_79, %c0_80, %c0_81], %378 {strides = array<i32>} : memref<1x64x128xf32, #tpu.memory_space<vmem>>, vector<1x64x128xf32>,
    %c0_82 = arith.constant 0 : index
    %c0_83 = arith.constant 0 : index
    %c0_84 = arith.constant 0 : index
    %379 = vector.load %arg15[%c0_82, %c0_83, %c0_84] : memref<1x32x128xf32, #tpu.memory_space<vmem>>, vector<1x8x128xf32>
    %380 = vector.shape_cast %379 : vector<1x8x128xf32> to vector<8x128xf32>
    %381 = vector.shape_cast %343 : vector<8x128xf32> to vector<1x8x128xf32>
    tpu.vector_store %arg15[%c0_82, %c0_83, %c0_84], %381 {strides = array<i32>} : memref<1x32x128xf32, #tpu.memory_space<vmem>>, vector<1x8x128xf32>,
    %c0_85 = arith.constant 0 : index
    %c8_86 = arith.constant 8 : index
    %c0_87 = arith.constant 0 : index
    %382 = vector.load %arg15[%c0_85, %c8_86, %c0_87] : memref<1x32x128xf32, #tpu.memory_space<vmem>>, vector<1x8x128xf32>
    %383 = vector.shape_cast %382 : vector<1x8x128xf32> to vector<8x128xf32>
    %384 = vector.shape_cast %341 : vector<8x128xf32> to vector<1x8x128xf32>
    tpu.vector_store %arg15[%c0_85, %c8_86, %c0_87], %384 {strides = array<i32>} : memref<1x32x128xf32, #tpu.memory_space<vmem>>, vector<1x8x128xf32>,
    %c0_88 = arith.constant 0 : index
    %c16_89 = arith.constant 16 : index
    %c0_90 = arith.constant 0 : index
    %385 = vector.load %arg15[%c0_88, %c16_89, %c0_90] : memref<1x32x128xf32, #tpu.memory_space<vmem>>, vector<1x8x128xf32>
    %386 = vector.shape_cast %385 : vector<1x8x128xf32> to vector<8x128xf32>
    %387 = vector.shape_cast %362 : vector<8x128xf32> to vector<1x8x128xf32>
    tpu.vector_store %arg15[%c0_88, %c16_89, %c0_90], %387 {strides = array<i32>} : memref<1x32x128xf32, #tpu.memory_space<vmem>>, vector<1x8x128xf32>,
    %c0_91 = arith.constant 0 : index
    %c24_92 = arith.constant 24 : index
    %c0_93 = arith.constant 0 : index
    %388 = vector.load %arg15[%c0_91, %c24_92, %c0_93] : memref<1x32x128xf32, #tpu.memory_space<vmem>>, vector<1x8x128xf32>
    %389 = vector.shape_cast %388 : vector<1x8x128xf32> to vector<8x128xf32>
    %390 = vector.shape_cast %360 : vector<8x128xf32> to vector<1x8x128xf32>
    tpu.vector_store %arg15[%c0_91, %c24_92, %c0_93], %390 {strides = array<i32>} : memref<1x32x128xf32, #tpu.memory_space<vmem>>, vector<1x8x128xf32>,
    return
  }
  func.func @transform_0(%arg0: i32) -> (i32, i32, i32) {
    %c0_i32 = arith.constant 0 : i32
    %c0_i32_0 = arith.constant 0 : i32
    %c0_i32_1 = arith.constant 0 : i32
    return %arg0, %c0_i32, %c0_i32_0 : i32, i32, i32
  }
  func.func @transform_1(%arg0: i32) -> (i32, i32, i32) {
    %c0_i32 = arith.constant 0 : i32
    %c0_i32_0 = arith.constant 0 : i32
    %c0_i32_1 = arith.constant 0 : i32
    return %arg0, %c0_i32, %c0_i32_0 : i32, i32, i32
  }
  func.func @transform_2(%arg0: i32) -> (i32, i32) {
    %c0_i32 = arith.constant 0 : i32
    %c0_i32_0 = arith.constant 0 : i32
    %c0_i32_1 = arith.constant 0 : i32
    return %c0_i32, %c0_i32_0 : i32, i32
  }
  func.func @transform_3(%arg0: i32) -> (i32, i32) {
    %c0_i32 = arith.constant 0 : i32
    %c0_i32_0 = arith.constant 0 : i32
    %c0_i32_1 = arith.constant 0 : i32
    return %c0_i32, %c0_i32_0 : i32, i32
  }
  func.func @transform_4(%arg0: i32) -> (i32, i32) {
    %c0_i32 = arith.constant 0 : i32
    %c0_i32_0 = arith.constant 0 : i32
    %c0_i32_1 = arith.constant 0 : i32
    return %c0_i32, %c0_i32_0 : i32, i32
  }
  func.func @transform_5(%arg0: i32) -> (i32, i32) {
    %c0_i32 = arith.constant 0 : i32
    %c0_i32_0 = arith.constant 0 : i32
    %c0_i32_1 = arith.constant 0 : i32
    return %c0_i32, %c0_i32_0 : i32, i32
  }
  func.func @transform_6(%arg0: i32) -> (i32, i32) {
    %c0_i32 = arith.constant 0 : i32
    %c0_i32_0 = arith.constant 0 : i32
    %c0_i32_1 = arith.constant 0 : i32
    return %c0_i32, %c0_i32_0 : i32, i32
  }
  func.func @transform_7(%arg0: i32) -> (i32, i32) {
    %c0_i32 = arith.constant 0 : i32
    %c0_i32_0 = arith.constant 0 : i32
    %c0_i32_1 = arith.constant 0 : i32
    return %c0_i32, %c0_i32_0 : i32, i32
  }
  func.func @transform_8(%arg0: i32) -> (i32, i32) {
    %c0_i32 = arith.constant 0 : i32
    %c0_i32_0 = arith.constant 0 : i32
    %c0_i32_1 = arith.constant 0 : i32
    return %c0_i32, %c0_i32_0 : i32, i32
  }
  func.func @transform_9(%arg0: i32) -> (i32, i32) {
    %c0_i32 = arith.constant 0 : i32
    %c0_i32_0 = arith.constant 0 : i32
    %c0_i32_1 = arith.constant 0 : i32
    return %c0_i32, %c0_i32_0 : i32, i32
  }
  func.func @transform_10(%arg0: i32) -> (i32, i32) {
    %c0_i32 = arith.constant 0 : i32
    %c0_i32_0 = arith.constant 0 : i32
    %c0_i32_1 = arith.constant 0 : i32
    return %c0_i32, %c0_i32_0 : i32, i32
  }
  func.func @transform_11(%arg0: i32) -> (i32, i32) {
    %c0_i32 = arith.constant 0 : i32
    %c0_i32_0 = arith.constant 0 : i32
    %c0_i32_1 = arith.constant 0 : i32
    return %c0_i32, %c0_i32_0 : i32, i32
  }
  func.func @transform_12(%arg0: i32) -> (i32, i32) {
    %c0_i32 = arith.constant 0 : i32
    %c0_i32_0 = arith.constant 0 : i32
    %c0_i32_1 = arith.constant 0 : i32
    return %c0_i32, %c0_i32_0 : i32, i32
  }
  func.func @transform_13(%arg0: i32) -> (i32, i32, i32) {
    %c0_i32 = arith.constant 0 : i32
    %c0_i32_0 = arith.constant 0 : i32
    %c0_i32_1 = arith.constant 0 : i32
    return %arg0, %c0_i32, %c0_i32_0 : i32, i32, i32
  }
  func.func @transform_14(%arg0: i32) -> (i32, i32, i32) {
    %c0_i32 = arith.constant 0 : i32
    %c0_i32_0 = arith.constant 0 : i32
    %c0_i32_1 = arith.constant 0 : i32
    return %arg0, %c0_i32, %c0_i32_0 : i32, i32, i32
  }
}

</mosaic_0001>

<llo_original>
// kernel: dtln_p2_forward.1
$region0: #{dtln_p2_forward.1}
  #allocation0 [shape = 'u32[]', space=smem, size = 0x4, offset = 0x4, fixed_abs, tag = 'smem constant byte address 0x4 - core index']
  #allocation1 [shape = 'u32[72,128]{1,0:T(1,128)}', space=vmem, size = 0x9000, scoped, tag = 'internal scratch']
  #allocation2 [shape = 'f32[64,128]{1,0:T(8,128)}', space=vmem, size = 0x8000, scoped, tag = 'scratch operand']
  %s0 = inlined_call_operand.vmem [shape: f32[1,64,128], index: 0, kind: input, shape index: {}]
  %s1 = inlined_call_operand.vmem [shape: f32[1,32,128], index: 1, kind: input, shape index: {}]
  %s2 = inlined_call_operand.hbm [shape: bf16[128,256], index: 2, kind: input, shape index: {}]
  %s3 = inlined_call_operand.vmem [shape: f32[1,256], index: 3, kind: input, shape index: {}]
  %s4 = inlined_call_operand.vmem [shape: f32[1,256], index: 4, kind: input, shape index: {}]
  %s5 = inlined_call_operand.hbm [shape: bf16[256,512], index: 5, kind: input, shape index: {}]
  %s6 = inlined_call_operand.vmem [shape: bf16[128,512], index: 6, kind: input, shape index: {}]
  %s7 = inlined_call_operand.vmem [shape: f32[1,512], index: 7, kind: input, shape index: {}]
  %s8 = inlined_call_operand.hbm [shape: bf16[256,512], index: 8, kind: input, shape index: {}]
  %s9 = inlined_call_operand.vmem [shape: f32[1,512], index: 9, kind: input, shape index: {}]
  %s10 = inlined_call_operand.hbm [shape: bf16[128,256], index: 10, kind: input, shape index: {}]
  %s11 = inlined_call_operand.vmem [shape: f32[1,256], index: 11, kind: input, shape index: {}]
  %s12 = inlined_call_operand.hbm [shape: bf16[256,128], index: 12, kind: input, shape index: {}]
  %s13 = inlined_call_operand.vmem [shape: f32[1,64,128], index: 13, kind: output, shape index: {0}]
  %s14 = inlined_call_operand.vmem [shape: f32[1,32,128], index: 14, kind: output, shape index: {1}]
  %15 = xla_tuple %s13, %s14
  %s16 = sld [smem:[#allocation0]]
  $region90: #{dtln_p2_forward.1} parent=0
    _
  %s18 = ssub.s32 1, %s16
  %s19 = scalar_select 0, %s18, %s16
  $region1: #{dtln_p2_forward.1} parent=0
    #allocation3 [shape = 'u8[65536]{0}', space=vmem, size = 0x10000, scoped, tag = 'input window, operand 2, single buffered']
    #allocation4 [shape = 's32[1]{0}', space=sflag, size = 0x4, scoped, tag = 'scoped memory for dtln_p2_forward.1']
    #allocation5 [shape = 'u8[262144]{0}', space=vmem, size = 0x40000, scoped, tag = 'input window, operand 5, single buffered']
    #allocation6 [shape = 's32[1]{0}', space=sflag, size = 0x4, scoped, tag = 'scoped memory for dtln_p2_forward.1']
    #allocation7 [shape = 'u8[262144]{0}', space=vmem, size = 0x40000, scoped, tag = 'input window, operand 8, single buffered']
    #allocation8 [shape = 'u8[65536]{0}', space=vmem, size = 0x10000, scoped, tag = 'input window, operand 10, single buffered']
    #allocation9 [shape = 's32[1]{0}', space=sflag, size = 0x4, scoped, tag = 'scoped memory for dtln_p2_forward.1']
    #allocation10 [shape = 'u8[65536]{0}', space=vmem, size = 0x10000, scoped, tag = 'input window, operand 12, single buffered']
    %20 = vsyncpa [#allocation4], 0
    %21 = vsyncpa [#allocation6], 0
    %22 = vsyncpa [#allocation9], 0
    // Predicated region
    $region2: #{dtln_p2_forward.1} parent=1 // pred_check
      _
    $region3: #{dtln_p2_forward.1} parent=1 // pred_check_branch
      %24 = sbr.rel (0) target = $region5
    $region4: #{dtln_p2_forward.1} parent=1 // pred_region
      _
    $region5: #{dtln_p2_forward.1} parent=1 // pred_fallthru
      _
    // Predicated region
    $region6: #{dtln_p2_forward.1} parent=1 // pred_check
      _
    $region7: #{dtln_p2_forward.1} parent=1 // pred_check_branch
      %26 = sbr.rel (0) target = $region9
    $region8: #{dtln_p2_forward.1} parent=1 // pred_region
      _
    $region9: #{dtln_p2_forward.1} parent=1 // pred_fallthru
      _
    // Predicated region
    $region10: #{dtln_p2_forward.1} parent=1 // pred_check
      _
    $region11: #{dtln_p2_forward.1} parent=1 // pred_check_branch
      %28 = sbr.rel (0) target = $region13
    $region12: #{dtln_p2_forward.1} parent=1 // pred_region
      %30 = vsyncadd [#allocation4], 0
      %s31 = sshll.u32 %s2, 4
      %s32 = int_to_ptr.hbm [resolvable:$true] %s31
      %s33 = sshll.u32 [#allocation3], 4
      %s34 = int_to_ptr.vmem [resolvable:$true] %s33
      %39 = dma.hbm_to_vmem [thread:$0]  %s32, 2048, %s34, [#allocation4], 128, 128, 8
    $region13: #{dtln_p2_forward.1} parent=1 // pred_fallthru
      _
    // Predicated region
    $region14: #{dtln_p2_forward.1} parent=1 // pred_check
      _
    $region15: #{dtln_p2_forward.1} parent=1 // pred_check_branch
      %41 = sbr.rel (0) target = $region17
    $region16: #{dtln_p2_forward.1} parent=1 // pred_region
      _
    $region17: #{dtln_p2_forward.1} parent=1 // pred_fallthru
      _
    // Predicated region
    $region18: #{dtln_p2_forward.1} parent=1 // pred_check
      _
    $region19: #{dtln_p2_forward.1} parent=1 // pred_check_branch
      %43 = sbr.rel (0) target = $region21
    $region20: #{dtln_p2_forward.1} parent=1 // pred_region
      _
    $region21: #{dtln_p2_forward.1} parent=1 // pred_fallthru
      _
    // Predicated region
    $region22: #{dtln_p2_forward.1} parent=1 // pred_check
      _
    $region23: #{dtln_p2_forward.1} parent=1 // pred_check_branch
      %45 = sbr.rel (0) target = $region25
    $region24: #{dtln_p2_forward.1} parent=1 // pred_region
      %47 = vsyncadd [#allocation6], 0
      %s48 = sshll.u32 %s5, 4
      %s49 = int_to_ptr.hbm [resolvable:$true] %s48
      %s50 = sshll.u32 [#allocation5], 4
      %s51 = int_to_ptr.vmem [resolvable:$true] %s50
      %56 = dma.hbm_to_vmem [thread:$0]  %s49, 8192, %s51, [#allocation6], 256, 256, 16
    $region25: #{dtln_p2_forward.1} parent=1 // pred_fallthru
      _
    // Predicated region
    $region26: #{dtln_p2_forward.1} parent=1 // pred_check
      _
    $region27: #{dtln_p2_forward.1} parent=1 // pred_check_branch
      %58 = sbr.rel (0) target = $region29
    $region28: #{dtln_p2_forward.1} parent=1 // pred_region
      _
    $region29: #{dtln_p2_forward.1} parent=1 // pred_fallthru
      _
    // Predicated region
    $region30: #{dtln_p2_forward.1} parent=1 // pred_check
      _
    $region31: #{dtln_p2_forward.1} parent=1 // pred_check_branch
      %60 = sbr.rel (0) target = $region33
    $region32: #{dtln_p2_forward.1} parent=1 // pred_region
      _
    $region33: #{dtln_p2_forward.1} parent=1 // pred_fallthru
      _
    // Predicated region
    $region34: #{dtln_p2_forward.1} parent=1 // pred_check
      _
    $region35: #{dtln_p2_forward.1} parent=1 // pred_check_branch
      %62 = sbr.rel (0) target = $region37
    $region36: #{dtln_p2_forward.1} parent=1 // pred_region
      %64 = vsyncadd [#allocation6], 0
      %s65 = sshll.u32 %s8, 4
      %s66 = int_to_ptr.hbm [resolvable:$true] %s65
      %s67 = sshll.u32 [#allocation7], 4
      %s68 = int_to_ptr.vmem [resolvable:$true] %s67
      %73 = dma.hbm_to_vmem [thread:$0]  %s66, 8192, %s68, [#allocation6], 256, 256, 16
    $region37: #{dtln_p2_forward.1} parent=1 // pred_fallthru
      _
    // Predicated region
    $region38: #{dtln_p2_forward.1} parent=1 // pred_check
      _
    $region39: #{dtln_p2_forward.1} parent=1 // pred_check_branch
      %75 = sbr.rel (0) target = $region41
    $region40: #{dtln_p2_forward.1} parent=1 // pred_region
      _
    $region41: #{dtln_p2_forward.1} parent=1 // pred_fallthru
      _
    // Predicated region
    $region42: #{dtln_p2_forward.1} parent=1 // pred_check
      _
    $region43: #{dtln_p2_forward.1} parent=1 // pred_check_branch
      %77 = sbr.rel (0) target = $region45
    $region44: #{dtln_p2_forward.1} parent=1 // pred_region
      %79 = vsyncadd [#allocation9], 0
      %s80 = sshll.u32 %s10, 4
      %s81 = int_to_ptr.hbm [resolvable:$true] %s80
      %s82 = sshll.u32 [#allocation8], 4
      %s83 = int_to_ptr.vmem [resolvable:$true] %s82
      %88 = dma.hbm_to_vmem [thread:$0]  %s81, 2048, %s83, [#allocation9], 128, 128, 8
    $region45: #{dtln_p2_forward.1} parent=1 // pred_fallthru
      _
    // Predicated region
    $region46: #{dtln_p2_forward.1} parent=1 // pred_check
      _
    $region47: #{dtln_p2_forward.1} parent=1 // pred_check_branch
      %90 = sbr.rel (0) target = $region49
    $region48: #{dtln_p2_forward.1} parent=1 // pred_region
      _
    $region49: #{dtln_p2_forward.1} parent=1 // pred_fallthru
      _
    // Predicated region
    $region50: #{dtln_p2_forward.1} parent=1 // pred_check
      _
    $region51: #{dtln_p2_forward.1} parent=1 // pred_check_branch
      %92 = sbr.rel (0) target = $region53
    $region52: #{dtln_p2_forward.1} parent=1 // pred_region
      %94 = vsyncadd [#allocation9], 0
      %s95 = sshll.u32 %s12, 4
      %s96 = int_to_ptr.hbm [resolvable:$true] %s95
      %s97 = sshll.u32 [#allocation10], 4
      %s98 = int_to_ptr.vmem [resolvable:$true] %s97
      %103 = dma.hbm_to_vmem [thread:$0]  %s96, 2048, %s98, [#allocation9], 64, 64, 4
    $region53: #{dtln_p2_forward.1} parent=1 // pred_fallthru
      _
    // Predicated region
    $region54: #{dtln_p2_forward.1} parent=1 // pred_check
      _
    $region55: #{dtln_p2_forward.1} parent=1 // pred_check_branch
      %105 = sbr.rel (0) target = $region57
    $region56: #{dtln_p2_forward.1} parent=1 // pred_region
      %107 = dma.done [#allocation4], 2048
    $region57: #{dtln_p2_forward.1} parent=1 // pred_fallthru
      _
    // Predicated region
    $region58: #{dtln_p2_forward.1} parent=1 // pred_check
      _
    $region59: #{dtln_p2_forward.1} parent=1 // pred_check_branch
      %109 = sbr.rel (0) target = $region61
    $region60: #{dtln_p2_forward.1} parent=1 // pred_region
      %111 = dma.done [#allocation6], 8192
    $region61: #{dtln_p2_forward.1} parent=1 // pred_fallthru
      _
    // Predicated region
    $region62: #{dtln_p2_forward.1} parent=1 // pred_check
      _
    $region63: #{dtln_p2_forward.1} parent=1 // pred_check_branch
      %113 = sbr.rel (0) target = $region65
    $region64: #{dtln_p2_forward.1} parent=1 // pred_region
      %115 = dma.done [#allocation6], 8192
    $region65: #{dtln_p2_forward.1} parent=1 // pred_fallthru
      _
    // Predicated region
    $region66: #{dtln_p2_forward.1} parent=1 // pred_check
      _
    $region67: #{dtln_p2_forward.1} parent=1 // pred_check_branch
      %117 = sbr.rel (0) target = $region69
    $region68: #{dtln_p2_forward.1} parent=1 // pred_region
      %119 = dma.done [#allocation9], 2048
    $region69: #{dtln_p2_forward.1} parent=1 // pred_fallthru
      _
    // Predicated region
    $region70: #{dtln_p2_forward.1} parent=1 // pred_check
      _
    $region71: #{dtln_p2_forward.1} parent=1 // pred_check_branch
      %121 = sbr.rel (0) target = $region73
    $region72: #{dtln_p2_forward.1} parent=1 // pred_region
      %123 = dma.done [#allocation9], 2048
    $region73: #{dtln_p2_forward.1} parent=1 // pred_fallthru
      _
    %v124 = vld [vmem:[#allocation3] sm:$0xff]
    %v125 = vld [vmem:[#allocation3 + $0x8] sm:$0xff]
    %v126 = vld [vmem:[#allocation3 + $0x10] sm:$0xff]
    %v127 = vld [vmem:[#allocation3 + $0x18] sm:$0xff]
    %v128 = vld [vmem:[#allocation3 + $0x20] sm:$0xff]
    %v129 = vld [vmem:[#allocation3 + $0x28] sm:$0xff]
    %v130 = vld [vmem:[#allocation3 + $0x30] sm:$0xff]
    %v131 = vld [vmem:[#allocation3 + $0x38] sm:$0xff]
    %v132 = vld [vmem:[#allocation3 + $0x40] sm:$0xff]
    %v133 = vld [vmem:[#allocation3 + $0x48] sm:$0xff]
    %v134 = vld [vmem:[#allocation3 + $0x50] sm:$0xff]
    %v135 = vld [vmem:[#allocation3 + $0x58] sm:$0xff]
    %v136 = vld [vmem:[#allocation3 + $0x60] sm:$0xff]
    %v137 = vld [vmem:[#allocation3 + $0x68] sm:$0xff]
    %v138 = vld [vmem:[#allocation3 + $0x70] sm:$0xff]
    %v139 = vld [vmem:[#allocation3 + $0x78] sm:$0xff]
    %v140 = vunpack.c.l.bf16 %v124
    %v141 = vunpack.c.h.bf16 %v124
    %v142 = vunpack.c.l.bf16 %v125
    %v143 = vunpack.c.h.bf16 %v125
    %v144 = vunpack.c.l.bf16 %v126
    %v145 = vunpack.c.h.bf16 %v126
    %v146 = vunpack.c.l.bf16 %v127
    %v147 = vunpack.c.h.bf16 %v127
    %v148 = vunpack.c.l.bf16 %v128
    %v149 = vunpack.c.h.bf16 %v128
    %v150 = vunpack.c.l.bf16 %v129
    %v151 = vunpack.c.h.bf16 %v129
    %v152 = vunpack.c.l.bf16 %v130
    %v153 = vunpack.c.h.bf16 %v130
    %v154 = vunpack.c.l.bf16 %v131
    %v155 = vunpack.c.h.bf16 %v131
    %v156 = vunpack.c.l.bf16 %v132
    %v157 = vunpack.c.h.bf16 %v132
    %v158 = vunpack.c.l.bf16 %v133
    %v159 = vunpack.c.h.bf16 %v133
    %v160 = vunpack.c.l.bf16 %v134
    %v161 = vunpack.c.h.bf16 %v134
    %v162 = vunpack.c.l.bf16 %v135
    %v163 = vunpack.c.h.bf16 %v135
    %v164 = vunpack.c.l.bf16 %v136
    %v165 = vunpack.c.h.bf16 %v136
    %v166 = vunpack.c.l.bf16 %v137
    %v167 = vunpack.c.h.bf16 %v137
    %v168 = vunpack.c.l.bf16 %v138
    %v169 = vunpack.c.h.bf16 %v138
    %v170 = vunpack.c.l.bf16 %v139
    %v171 = vunpack.c.h.bf16 %v139
    %v172 = vld [vmem:[#allocation5] sm:$0xff]
    %v173 = vld [vmem:[#allocation5 + $0x8] sm:$0xff]
    %v174 = vld [vmem:[#allocation5 + $0x10] sm:$0xff]
    %v175 = vld [vmem:[#allocation5 + $0x18] sm:$0xff]
    %v176 = vld [vmem:[#allocation5 + $0x20] sm:$0xff]
    %v177 = vld [vmem:[#allocation5 + $0x28] sm:$0xff]
    %v178 = vld [vmem:[#allocation5 + $0x30] sm:$0xff]
    %v179 = vld [vmem:[#allocation5 + $0x38] sm:$0xff]
    %v180 = vld [vmem:[#allocation5 + $0x40] sm:$0xff]
    %v181 = vld [vmem:[#allocation5 + $0x48] sm:$0xff]
    %v182 = vld [vmem:[#allocation5 + $0x50] sm:$0xff]
    %v183 = vld [vmem:[#allocation5 + $0x58] sm:$0xff]
    %v184 = vld [vmem:[#allocation5 + $0x60] sm:$0xff]
    %v185 = vld [vmem:[#allocation5 + $0x68] sm:$0xff]
    %v186 = vld [vmem:[#allocation5 + $0x70] sm:$0xff]
    %v187 = vld [vmem:[#allocation5 + $0x78] sm:$0xff]
    %v188 = vld [vmem:[#allocation5 + $0x80] sm:$0xff]
    %v189 = vld [vmem:[#allocation5 + $0x88] sm:$0xff]
    %v190 = vld [vmem:[#allocation5 + $0x90] sm:$0xff]
    %v191 = vld [vmem:[#allocation5 + $0x98] sm:$0xff]
    %v192 = vld [vmem:[#allocation5 + $0xa0] sm:$0xff]
    %v193 = vld [vmem:[#allocation5 + $0xa8] sm:$0xff]
    %v194 = vld [vmem:[#allocation5 + $0xb0] sm:$0xff]
    %v195 = vld [vmem:[#allocation5 + $0xb8] sm:$0xff]
    %v196 = vld [vmem:[#allocation5 + $0xc0] sm:$0xff]
    %v197 = vld [vmem:[#allocation5 + $0xc8] sm:$0xff]
    %v198 = vld [vmem:[#allocation5 + $0xd0] sm:$0xff]
    %v199 = vld [vmem:[#allocation5 + $0xd8] sm:$0xff]
    %v200 = vld [vmem:[#allocation5 + $0xe0] sm:$0xff]
    %v201 = vld [vmem:[#allocation5 + $0xe8] sm:$0xff]
    %v202 = vld [vmem:[#allocation5 + $0xf0] sm:$0xff]
    %v203 = vld [vmem:[#allocation5 + $0xf8] sm:$0xff]
    %v204 = vld [vmem:[#allocation5 + $0x100] sm:$0xff]
    %v205 = vld [vmem:[#allocation5 + $0x108] sm:$0xff]
    %v206 = vld [vmem:[#allocation5 + $0x110] sm:$0xff]
    %v207 = vld [vmem:[#allocation5 + $0x118] sm:$0xff]
    %v208 = vld [vmem:[#allocation5 + $0x120] sm:$0xff]
    %v209 = vld [vmem:[#allocation5 + $0x128] sm:$0xff]
    %v210 = vld [vmem:[#allocation5 + $0x130] sm:$0xff]
    %v211 = vld [vmem:[#allocation5 + $0x138] sm:$0xff]
    %v212 = vld [vmem:[#allocation5 + $0x140] sm:$0xff]
    %v213 = vld [vmem:[#allocation5 + $0x148] sm:$0xff]
    %v214 = vld [vmem:[#allocation5 + $0x150] sm:$0xff]
    %v215 = vld [vmem:[#allocation5 + $0x158] sm:$0xff]
    %v216 = vld [vmem:[#allocation5 + $0x160] sm:$0xff]
    %v217 = vld [vmem:[#allocation5 + $0x168] sm:$0xff]
    %v218 = vld [vmem:[#allocation5 + $0x170] sm:$0xff]
    %v219 = vld [vmem:[#allocation5 + $0x178] sm:$0xff]
    %v220 = vld [vmem:[#allocation5 + $0x180] sm:$0xff]
    %v221 = vld [vmem:[#allocation5 + $0x188] sm:$0xff]
    %v222 = vld [vmem:[#allocation5 + $0x190] sm:$0xff]
    %v223 = vld [vmem:[#allocation5 + $0x198] sm:$0xff]
    %v224 = vld [vmem:[#allocation5 + $0x1a0] sm:$0xff]
    %v225 = vld [vmem:[#allocation5 + $0x1a8] sm:$0xff]
    %v226 = vld [vmem:[#allocation5 + $0x1b0] sm:$0xff]
    %v227 = vld [vmem:[#allocation5 + $0x1b8] sm:$0xff]
    %v228 = vld [vmem:[#allocation5 + $0x1c0] sm:$0xff]
    %v229 = vld [vmem:[#allocation5 + $0x1c8] sm:$0xff]
    %v230 = vld [vmem:[#allocation5 + $0x1d0] sm:$0xff]
    %v231 = vld [vmem:[#allocation5 + $0x1d8] sm:$0xff]
    %v232 = vld [vmem:[#allocation5 + $0x1e0] sm:$0xff]
    %v233 = vld [vmem:[#allocation5 + $0x1e8] sm:$0xff]
    %v234 = vld [vmem:[#allocation5 + $0x1f0] sm:$0xff]
    %v235 = vld [vmem:[#allocation5 + $0x1f8] sm:$0xff]
    %v236 = vunpack.c.l.bf16 %v172
    %v237 = vunpack.c.h.bf16 %v172
    %v238 = vunpack.c.l.bf16 %v173
    %v239 = vunpack.c.h.bf16 %v173
    %v240 = vunpack.c.l.bf16 %v174
    %v241 = vunpack.c.h.bf16 %v174
    %v242 = vunpack.c.l.bf16 %v175
    %v243 = vunpack.c.h.bf16 %v175
    %v244 = vunpack.c.l.bf16 %v176
    %v245 = vunpack.c.h.bf16 %v176
    %v246 = vunpack.c.l.bf16 %v177
    %v247 = vunpack.c.h.bf16 %v177
    %v248 = vunpack.c.l.bf16 %v178
    %v249 = vunpack.c.h.bf16 %v178
    %v250 = vunpack.c.l.bf16 %v179
    %v251 = vunpack.c.h.bf16 %v179
    %v252 = vunpack.c.l.bf16 %v180
    %v253 = vunpack.c.h.bf16 %v180
    %v254 = vunpack.c.l.bf16 %v181
    %v255 = vunpack.c.h.bf16 %v181
    %v256 = vunpack.c.l.bf16 %v182
    %v257 = vunpack.c.h.bf16 %v182
    %v258 = vunpack.c.l.bf16 %v183
    %v259 = vunpack.c.h.bf16 %v183
    %v260 = vunpack.c.l.bf16 %v184
    %v261 = vunpack.c.h.bf16 %v184
    %v262 = vunpack.c.l.bf16 %v185
    %v263 = vunpack.c.h.bf16 %v185
    %v264 = vunpack.c.l.bf16 %v186
    %v265 = vunpack.c.h.bf16 %v186
    %v266 = vunpack.c.l.bf16 %v187
    %v267 = vunpack.c.h.bf16 %v187
    %v268 = vunpack.c.l.bf16 %v188
    %v269 = vunpack.c.h.bf16 %v188
    %v270 = vunpack.c.l.bf16 %v189
    %v271 = vunpack.c.h.bf16 %v189
    %v272 = vunpack.c.l.bf16 %v190
    %v273 = vunpack.c.h.bf16 %v190
    %v274 = vunpack.c.l.bf16 %v191
    %v275 = vunpack.c.h.bf16 %v191
    %v276 = vunpack.c.l.bf16 %v192
    %v277 = vunpack.c.h.bf16 %v192
    %v278 = vunpack.c.l.bf16 %v193
    %v279 = vunpack.c.h.bf16 %v193
    %v280 = vunpack.c.l.bf16 %v194
    %v281 = vunpack.c.h.bf16 %v194
    %v282 = vunpack.c.l.bf16 %v195
    %v283 = vunpack.c.h.bf16 %v195
    %v284 = vunpack.c.l.bf16 %v196
    %v285 = vunpack.c.h.bf16 %v196
    %v286 = vunpack.c.l.bf16 %v197
    %v287 = vunpack.c.h.bf16 %v197
    %v288 = vunpack.c.l.bf16 %v198
    %v289 = vunpack.c.h.bf16 %v198
    %v290 = vunpack.c.l.bf16 %v199
    %v291 = vunpack.c.h.bf16 %v199
    %v292 = vunpack.c.l.bf16 %v200
    %v293 = vunpack.c.h.bf16 %v200
    %v294 = vunpack.c.l.bf16 %v201
    %v295 = vunpack.c.h.bf16 %v201
    %v296 = vunpack.c.l.bf16 %v202
    %v297 = vunpack.c.h.bf16 %v202
    %v298 = vunpack.c.l.bf16 %v203
    %v299 = vunpack.c.h.bf16 %v203
    %v300 = vunpack.c.l.bf16 %v204
    %v301 = vunpack.c.h.bf16 %v204
    %v302 = vunpack.c.l.bf16 %v205
    %v303 = vunpack.c.h.bf16 %v205
    %v304 = vunpack.c.l.bf16 %v206
    %v305 = vunpack.c.h.bf16 %v206
    %v306 = vunpack.c.l.bf16 %v207
    %v307 = vunpack.c.h.bf16 %v207
    %v308 = vunpack.c.l.bf16 %v208
    %v309 = vunpack.c.h.bf16 %v208
    %v310 = vunpack.c.l.bf16 %v209
    %v311 = vunpack.c.h.bf16 %v209
    %v312 = vunpack.c.l.bf16 %v210
    %v313 = vunpack.c.h.bf16 %v210
    %v314 = vunpack.c.l.bf16 %v211
    %v315 = vunpack.c.h.bf16 %v211
    %v316 = vunpack.c.l.bf16 %v212
    %v317 = vunpack.c.h.bf16 %v212
    %v318 = vunpack.c.l.bf16 %v213
    %v319 = vunpack.c.h.bf16 %v213
    %v320 = vunpack.c.l.bf16 %v214
    %v321 = vunpack.c.h.bf16 %v214
    %v322 = vunpack.c.l.bf16 %v215
    %v323 = vunpack.c.h.bf16 %v215
    %v324 = vunpack.c.l.bf16 %v216
    %v325 = vunpack.c.h.bf16 %v216
    %v326 = vunpack.c.l.bf16 %v217
    %v327 = vunpack.c.h.bf16 %v217
    %v328 = vunpack.c.l.bf16 %v218
    %v329 = vunpack.c.h.bf16 %v218
    %v330 = vunpack.c.l.bf16 %v219
    %v331 = vunpack.c.h.bf16 %v219
    %v332 = vunpack.c.l.bf16 %v220
    %v333 = vunpack.c.h.bf16 %v220
    %v334 = vunpack.c.l.bf16 %v221
    %v335 = vunpack.c.h.bf16 %v221
    %v336 = vunpack.c.l.bf16 %v222
    %v337 = vunpack.c.h.bf16 %v222
    %v338 = vunpack.c.l.bf16 %v223
    %v339 = vunpack.c.h.bf16 %v223
    %v340 = vunpack.c.l.bf16 %v224
    %v341 = vunpack.c.h.bf16 %v224
    %v342 = vunpack.c.l.bf16 %v225
    %v343 = vunpack.c.h.bf16 %v225
    %v344 = vunpack.c.l.bf16 %v226
    %v345 = vunpack.c.h.bf16 %v226
    %v346 = vunpack.c.l.bf16 %v227
    %v347 = vunpack.c.h.bf16 %v227
    %v348 = vunpack.c.l.bf16 %v228
    %v349 = vunpack.c.h.bf16 %v228
    %v350 = vunpack.c.l.bf16 %v229
    %v351 = vunpack.c.h.bf16 %v229
    %v352 = vunpack.c.l.bf16 %v230
    %v353 = vunpack.c.h.bf16 %v230
    %v354 = vunpack.c.l.bf16 %v231
    %v355 = vunpack.c.h.bf16 %v231
    %v356 = vunpack.c.l.bf16 %v232
    %v357 = vunpack.c.h.bf16 %v232
    %v358 = vunpack.c.l.bf16 %v233
    %v359 = vunpack.c.h.bf16 %v233
    %v360 = vunpack.c.l.bf16 %v234
    %v361 = vunpack.c.h.bf16 %v234
    %v362 = vunpack.c.l.bf16 %v235
    %v363 = vunpack.c.h.bf16 %v235
    %v364 = vld [vmem:[%s6] sm:$0xff]
    %v365 = vld [vmem:[%s6 + $0x8] sm:$0xff]
    %v366 = vld [vmem:[%s6 + $0x10] sm:$0xff]
    %v367 = vld [vmem:[%s6 + $0x18] sm:$0xff]
    %v368 = vld [vmem:[%s6 + $0x20] sm:$0xff]
    %v369 = vld [vmem:[%s6 + $0x28] sm:$0xff]
    %v370 = vld [vmem:[%s6 + $0x30] sm:$0xff]
    %v371 = vld [vmem:[%s6 + $0x38] sm:$0xff]
    %v372 = vld [vmem:[%s6 + $0x40] sm:$0xff]
    %v373 = vld [vmem:[%s6 + $0x48] sm:$0xff]
    %v374 = vld [vmem:[%s6 + $0x50] sm:$0xff]
    %v375 = vld [vmem:[%s6 + $0x58] sm:$0xff]
    %v376 = vld [vmem:[%s6 + $0x60] sm:$0xff]
    %v377 = vld [vmem:[%s6 + $0x68] sm:$0xff]
    %v378 = vld [vmem:[%s6 + $0x70] sm:$0xff]
    %v379 = vld [vmem:[%s6 + $0x78] sm:$0xff]
    %v380 = vld [vmem:[%s6 + $0x80] sm:$0xff]
    %v381 = vld [vmem:[%s6 + $0x88] sm:$0xff]
    %v382 = vld [vmem:[%s6 + $0x90] sm:$0xff]
    %v383 = vld [vmem:[%s6 + $0x98] sm:$0xff]
    %v384 = vld [vmem:[%s6 + $0xa0] sm:$0xff]
    %v385 = vld [vmem:[%s6 + $0xa8] sm:$0xff]
    %v386 = vld [vmem:[%s6 + $0xb0] sm:$0xff]
    %v387 = vld [vmem:[%s6 + $0xb8] sm:$0xff]
    %v388 = vld [vmem:[%s6 + $0xc0] sm:$0xff]
    %v389 = vld [vmem:[%s6 + $0xc8] sm:$0xff]
    %v390 = vld [vmem:[%s6 + $0xd0] sm:$0xff]
    %v391 = vld [vmem:[%s6 + $0xd8] sm:$0xff]
    %v392 = vld [vmem:[%s6 + $0xe0] sm:$0xff]
    %v393 = vld [vmem:[%s6 + $0xe8] sm:$0xff]
    %v394 = vld [vmem:[%s6 + $0xf0] sm:$0xff]
    %v395 = vld [vmem:[%s6 + $0xf8] sm:$0xff]
    %v396 = vunpack.c.l.bf16 %v364
    %v397 = vunpack.c.h.bf16 %v364
    %v398 = vunpack.c.l.bf16 %v365
    %v399 = vunpack.c.h.bf16 %v365
    %v400 = vunpack.c.l.bf16 %v366
    %v401 = vunpack.c.h.bf16 %v366
    %v402 = vunpack.c.l.bf16 %v367
    %v403 = vunpack.c.h.bf16 %v367
    %v404 = vunpack.c.l.bf16 %v368
    %v405 = vunpack.c.h.bf16 %v368
    %v406 = vunpack.c.l.bf16 %v369
    %v407 = vunpack.c.h.bf16 %v369
    %v408 = vunpack.c.l.bf16 %v370
    %v409 = vunpack.c.h.bf16 %v370
    %v410 = vunpack.c.l.bf16 %v371
    %v411 = vunpack.c.h.bf16 %v371
    %v412 = vunpack.c.l.bf16 %v372
    %v413 = vunpack.c.h.bf16 %v372
    %v414 = vunpack.c.l.bf16 %v373
    %v415 = vunpack.c.h.bf16 %v373
    %v416 = vunpack.c.l.bf16 %v374
    %v417 = vunpack.c.h.bf16 %v374
    %v418 = vunpack.c.l.bf16 %v375
    %v419 = vunpack.c.h.bf16 %v375
    %v420 = vunpack.c.l.bf16 %v376
    %v421 = vunpack.c.h.bf16 %v376
    %v422 = vunpack.c.l.bf16 %v377
    %v423 = vunpack.c.h.bf16 %v377
    %v424 = vunpack.c.l.bf16 %v378
    %v425 = vunpack.c.h.bf16 %v378
    %v426 = vunpack.c.l.bf16 %v379
    %v427 = vunpack.c.h.bf16 %v379
    %v428 = vunpack.c.l.bf16 %v380
    %v429 = vunpack.c.h.bf16 %v380
    %v430 = vunpack.c.l.bf16 %v381
    %v431 = vunpack.c.h.bf16 %v381
    %v432 = vunpack.c.l.bf16 %v382
    %v433 = vunpack.c.h.bf16 %v382
    %v434 = vunpack.c.l.bf16 %v383
    %v435 = vunpack.c.h.bf16 %v383
    %v436 = vunpack.c.l.bf16 %v384
    %v437 = vunpack.c.h.bf16 %v384
    %v438 = vunpack.c.l.bf16 %v385
    %v439 = vunpack.c.h.bf16 %v385
    %v440 = vunpack.c.l.bf16 %v386
    %v441 = vunpack.c.h.bf16 %v386
    %v442 = vunpack.c.l.bf16 %v387
    %v443 = vunpack.c.h.bf16 %v387
    %v444 = vunpack.c.l.bf16 %v388
    %v445 = vunpack.c.h.bf16 %v388
    %v446 = vunpack.c.l.bf16 %v389
    %v447 = vunpack.c.h.bf16 %v389
    %v448 = vunpack.c.l.bf16 %v390
    %v449 = vunpack.c.h.bf16 %v390
    %v450 = vunpack.c.l.bf16 %v391
    %v451 = vunpack.c.h.bf16 %v391
    %v452 = vunpack.c.l.bf16 %v392
    %v453 = vunpack.c.h.bf16 %v392
    %v454 = vunpack.c.l.bf16 %v393
    %v455 = vunpack.c.h.bf16 %v393
    %v456 = vunpack.c.l.bf16 %v394
    %v457 = vunpack.c.h.bf16 %v394
    %v458 = vunpack.c.l.bf16 %v395
    %v459 = vunpack.c.h.bf16 %v395
    %v460 = vld [vmem:[#allocation7] sm:$0xff]
    %v461 = vld [vmem:[#allocation7 + $0x8] sm:$0xff]
    %v462 = vld [vmem:[#allocation7 + $0x10] sm:$0xff]
    %v463 = vld [vmem:[#allocation7 + $0x18] sm:$0xff]
    %v464 = vld [vmem:[#allocation7 + $0x20] sm:$0xff]
    %v465 = vld [vmem:[#allocation7 + $0x28] sm:$0xff]
    %v466 = vld [vmem:[#allocation7 + $0x30] sm:$0xff]
    %v467 = vld [vmem:[#allocation7 + $0x38] sm:$0xff]
    %v468 = vld [vmem:[#allocation7 + $0x40] sm:$0xff]
    %v469 = vld [vmem:[#allocation7 + $0x48] sm:$0xff]
    %v470 = vld [vmem:[#allocation7 + $0x50] sm:$0xff]
    %v471 = vld [vmem:[#allocation7 + $0x58] sm:$0xff]
    %v472 = vld [vmem:[#allocation7 + $0x60] sm:$0xff]
    %v473 = vld [vmem:[#allocation7 + $0x68] sm:$0xff]
    %v474 = vld [vmem:[#allocation7 + $0x70] sm:$0xff]
    %v475 = vld [vmem:[#allocation7 + $0x78] sm:$0xff]
    %v476 = vld [vmem:[#allocation7 + $0x80] sm:$0xff]
    %v477 = vld [vmem:[#allocation7 + $0x88] sm:$0xff]
    %v478 = vld [vmem:[#allocation7 + $0x90] sm:$0xff]
    %v479 = vld [vmem:[#allocation7 + $0x98] sm:$0xff]
    %v480 = vld [vmem:[#allocation7 + $0xa0] sm:$0xff]
    %v481 = vld [vmem:[#allocation7 + $0xa8] sm:$0xff]
    %v482 = vld [vmem:[#allocation7 + $0xb0] sm:$0xff]
    %v483 = vld [vmem:[#allocation7 + $0xb8] sm:$0xff]
    %v484 = vld [vmem:[#allocation7 + $0xc0] sm:$0xff]
    %v485 = vld [vmem:[#allocation7 + $0xc8] sm:$0xff]
    %v486 = vld [vmem:[#allocation7 + $0xd0] sm:$0xff]
    %v487 = vld [vmem:[#allocation7 + $0xd8] sm:$0xff]
    %v488 = vld [vmem:[#allocation7 + $0xe0] sm:$0xff]
    %v489 = vld [vmem:[#allocation7 + $0xe8] sm:$0xff]
    %v490 = vld [vmem:[#allocation7 + $0xf0] sm:$0xff]
    %v491 = vld [vmem:[#allocation7 + $0xf8] sm:$0xff]
    %v492 = vld [vmem:[#allocation7 + $0x100] sm:$0xff]
    %v493 = vld [vmem:[#allocation7 + $0x108] sm:$0xff]
    %v494 = vld [vmem:[#allocation7 + $0x110] sm:$0xff]
    %v495 = vld [vmem:[#allocation7 + $0x118] sm:$0xff]
    %v496 = vld [vmem:[#allocation7 + $0x120] sm:$0xff]
    %v497 = vld [vmem:[#allocation7 + $0x128] sm:$0xff]
    %v498 = vld [vmem:[#allocation7 + $0x130] sm:$0xff]
    %v499 = vld [vmem:[#allocation7 + $0x138] sm:$0xff]
    %v500 = vld [vmem:[#allocation7 + $0x140] sm:$0xff]
    %v501 = vld [vmem:[#allocation7 + $0x148] sm:$0xff]
    %v502 = vld [vmem:[#allocation7 + $0x150] sm:$0xff]
    %v503 = vld [vmem:[#allocation7 + $0x158] sm:$0xff]
    %v504 = vld [vmem:[#allocation7 + $0x160] sm:$0xff]
    %v505 = vld [vmem:[#allocation7 + $0x168] sm:$0xff]
    %v506 = vld [vmem:[#allocation7 + $0x170] sm:$0xff]
    %v507 = vld [vmem:[#allocation7 + $0x178] sm:$0xff]
    %v508 = vld [vmem:[#allocation7 + $0x180] sm:$0xff]
    %v509 = vld [vmem:[#allocation7 + $0x188] sm:$0xff]
    %v510 = vld [vmem:[#allocation7 + $0x190] sm:$0xff]
    %v511 = vld [vmem:[#allocation7 + $0x198] sm:$0xff]
    %v512 = vld [vmem:[#allocation7 + $0x1a0] sm:$0xff]
    %v513 = vld [vmem:[#allocation7 + $0x1a8] sm:$0xff]
    %v514 = vld [vmem:[#allocation7 + $0x1b0] sm:$0xff]
    %v515 = vld [vmem:[#allocation7 + $0x1b8] sm:$0xff]
    %v516 = vld [vmem:[#allocation7 + $0x1c0] sm:$0xff]
    %v517 = vld [vmem:[#allocation7 + $0x1c8] sm:$0xff]
    %v518 = vld [vmem:[#allocation7 + $0x1d0] sm:$0xff]
    %v519 = vld [vmem:[#allocation7 + $0x1d8] sm:$0xff]
    %v520 = vld [vmem:[#allocation7 + $0x1e0] sm:$0xff]
    %v521 = vld [vmem:[#allocation7 + $0x1e8] sm:$0xff]
    %v522 = vld [vmem:[#allocation7 + $0x1f0] sm:$0xff]
    %v523 = vld [vmem:[#allocation7 + $0x1f8] sm:$0xff]
    %v524 = vunpack.c.l.bf16 %v460
    %v525 = vunpack.c.h.bf16 %v460
    %v526 = vunpack.c.l.bf16 %v461
    %v527 = vunpack.c.h.bf16 %v461
    %v528 = vunpack.c.l.bf16 %v462
    %v529 = vunpack.c.h.bf16 %v462
    %v530 = vunpack.c.l.bf16 %v463
    %v531 = vunpack.c.h.bf16 %v463
    %v532 = vunpack.c.l.bf16 %v464
    %v533 = vunpack.c.h.bf16 %v464
    %v534 = vunpack.c.l.bf16 %v465
    %v535 = vunpack.c.h.bf16 %v465
    %v536 = vunpack.c.l.bf16 %v466
    %v537 = vunpack.c.h.bf16 %v466
    %v538 = vunpack.c.l.bf16 %v467
    %v539 = vunpack.c.h.bf16 %v467
    %v540 = vunpack.c.l.bf16 %v468
    %v541 = vunpack.c.h.bf16 %v468
    %v542 = vunpack.c.l.bf16 %v469
    %v543 = vunpack.c.h.bf16 %v469
    %v544 = vunpack.c.l.bf16 %v470
    %v545 = vunpack.c.h.bf16 %v470
    %v546 = vunpack.c.l.bf16 %v471
    %v547 = vunpack.c.h.bf16 %v471
    %v548 = vunpack.c.l.bf16 %v472
    %v549 = vunpack.c.h.bf16 %v472
    %v550 = vunpack.c.l.bf16 %v473
    %v551 = vunpack.c.h.bf16 %v473
    %v552 = vunpack.c.l.bf16 %v474
    %v553 = vunpack.c.h.bf16 %v474
    %v554 = vunpack.c.l.bf16 %v475
    %v555 = vunpack.c.h.bf16 %v475
    %v556 = vunpack.c.l.bf16 %v476
    %v557 = vunpack.c.h.bf16 %v476
    %v558 = vunpack.c.l.bf16 %v477
    %v559 = vunpack.c.h.bf16 %v477
    %v560 = vunpack.c.l.bf16 %v478
    %v561 = vunpack.c.h.bf16 %v478
    %v562 = vunpack.c.l.bf16 %v479
    %v563 = vunpack.c.h.bf16 %v479
    %v564 = vunpack.c.l.bf16 %v480
    %v565 = vunpack.c.h.bf16 %v480
    %v566 = vunpack.c.l.bf16 %v481
    %v567 = vunpack.c.h.bf16 %v481
    %v568 = vunpack.c.l.bf16 %v482
    %v569 = vunpack.c.h.bf16 %v482
    %v570 = vunpack.c.l.bf16 %v483
    %v571 = vunpack.c.h.bf16 %v483
    %v572 = vunpack.c.l.bf16 %v484
    %v573 = vunpack.c.h.bf16 %v484
    %v574 = vunpack.c.l.bf16 %v485
    %v575 = vunpack.c.h.bf16 %v485
    %v576 = vunpack.c.l.bf16 %v486
    %v577 = vunpack.c.h.bf16 %v486
    %v578 = vunpack.c.l.bf16 %v487
    %v579 = vunpack.c.h.bf16 %v487
    %v580 = vunpack.c.l.bf16 %v488
    %v581 = vunpack.c.h.bf16 %v488
    %v582 = vunpack.c.l.bf16 %v489
    %v583 = vunpack.c.h.bf16 %v489
    %v584 = vunpack.c.l.bf16 %v490
    %v585 = vunpack.c.h.bf16 %v490
    %v586 = vunpack.c.l.bf16 %v491
    %v587 = vunpack.c.h.bf16 %v491
    %v588 = vunpack.c.l.bf16 %v492
    %v589 = vunpack.c.h.bf16 %v492
    %v590 = vunpack.c.l.bf16 %v493
    %v591 = vunpack.c.h.bf16 %v493
    %v592 = vunpack.c.l.bf16 %v494
    %v593 = vunpack.c.h.bf16 %v494
    %v594 = vunpack.c.l.bf16 %v495
    %v595 = vunpack.c.h.bf16 %v495
    %v596 = vunpack.c.l.bf16 %v496
    %v597 = vunpack.c.h.bf16 %v496
    %v598 = vunpack.c.l.bf16 %v497
    %v599 = vunpack.c.h.bf16 %v497
    %v600 = vunpack.c.l.bf16 %v498
    %v601 = vunpack.c.h.bf16 %v498
    %v602 = vunpack.c.l.bf16 %v499
    %v603 = vunpack.c.h.bf16 %v499
    %v604 = vunpack.c.l.bf16 %v500
    %v605 = vunpack.c.h.bf16 %v500
    %v606 = vunpack.c.l.bf16 %v501
    %v607 = vunpack.c.h.bf16 %v501
    %v608 = vunpack.c.l.bf16 %v502
    %v609 = vunpack.c.h.bf16 %v502
    %v610 = vunpack.c.l.bf16 %v503
    %v611 = vunpack.c.h.bf16 %v503
    %v612 = vunpack.c.l.bf16 %v504
    %v613 = vunpack.c.h.bf16 %v504
    %v614 = vunpack.c.l.bf16 %v505
    %v615 = vunpack.c.h.bf16 %v505
    %v616 = vunpack.c.l.bf16 %v506
    %v617 = vunpack.c.h.bf16 %v506
    %v618 = vunpack.c.l.bf16 %v507
    %v619 = vunpack.c.h.bf16 %v507
    %v620 = vunpack.c.l.bf16 %v508
    %v621 = vunpack.c.h.bf16 %v508
    %v622 = vunpack.c.l.bf16 %v509
    %v623 = vunpack.c.h.bf16 %v509
    %v624 = vunpack.c.l.bf16 %v510
    %v625 = vunpack.c.h.bf16 %v510
    %v626 = vunpack.c.l.bf16 %v511
    %v627 = vunpack.c.h.bf16 %v511
    %v628 = vunpack.c.l.bf16 %v512
    %v629 = vunpack.c.h.bf16 %v512
    %v630 = vunpack.c.l.bf16 %v513
    %v631 = vunpack.c.h.bf16 %v513
    %v632 = vunpack.c.l.bf16 %v514
    %v633 = vunpack.c.h.bf16 %v514
    %v634 = vunpack.c.l.bf16 %v515
    %v635 = vunpack.c.h.bf16 %v515
    %v636 = vunpack.c.l.bf16 %v516
    %v637 = vunpack.c.h.bf16 %v516
    %v638 = vunpack.c.l.bf16 %v517
    %v639 = vunpack.c.h.bf16 %v517
    %v640 = vunpack.c.l.bf16 %v518
    %v641 = vunpack.c.h.bf16 %v518
    %v642 = vunpack.c.l.bf16 %v519
    %v643 = vunpack.c.h.bf16 %v519
    %v644 = vunpack.c.l.bf16 %v520
    %v645 = vunpack.c.h.bf16 %v520
    %v646 = vunpack.c.l.bf16 %v521
    %v647 = vunpack.c.h.bf16 %v521
    %v648 = vunpack.c.l.bf16 %v522
    %v649 = vunpack.c.h.bf16 %v522
    %v650 = vunpack.c.l.bf16 %v523
    %v651 = vunpack.c.h.bf16 %v523
    %v652 = vld [vmem:[#allocation8] sm:$0xff]
    %v653 = vld [vmem:[#allocation8 + $0x8] sm:$0xff]
    %v654 = vld [vmem:[#allocation8 + $0x10] sm:$0xff]
    %v655 = vld [vmem:[#allocation8 + $0x18] sm:$0xff]
    %v656 = vld [vmem:[#allocation8 + $0x20] sm:$0xff]
    %v657 = vld [vmem:[#allocation8 + $0x28] sm:$0xff]
    %v658 = vld [vmem:[#allocation8 + $0x30] sm:$0xff]
    %v659 = vld [vmem:[#allocation8 + $0x38] sm:$0xff]
    %v660 = vld [vmem:[#allocation8 + $0x40] sm:$0xff]
    %v661 = vld [vmem:[#allocation8 + $0x48] sm:$0xff]
    %v662 = vld [vmem:[#allocation8 + $0x50] sm:$0xff]
    %v663 = vld [vmem:[#allocation8 + $0x58] sm:$0xff]
    %v664 = vld [vmem:[#allocation8 + $0x60] sm:$0xff]
    %v665 = vld [vmem:[#allocation8 + $0x68] sm:$0xff]
    %v666 = vld [vmem:[#allocation8 + $0x70] sm:$0xff]
    %v667 = vld [vmem:[#allocation8 + $0x78] sm:$0xff]
    %v668 = vunpack.c.l.bf16 %v652
    %v669 = vunpack.c.h.bf16 %v652
    %v670 = vunpack.c.l.bf16 %v653
    %v671 = vunpack.c.h.bf16 %v653
    %v672 = vunpack.c.l.bf16 %v654
    %v673 = vunpack.c.h.bf16 %v654
    %v674 = vunpack.c.l.bf16 %v655
    %v675 = vunpack.c.h.bf16 %v655
    %v676 = vunpack.c.l.bf16 %v656
    %v677 = vunpack.c.h.bf16 %v656
    %v678 = vunpack.c.l.bf16 %v657
    %v679 = vunpack.c.h.bf16 %v657
    %v680 = vunpack.c.l.bf16 %v658
    %v681 = vunpack.c.h.bf16 %v658
    %v682 = vunpack.c.l.bf16 %v659
    %v683 = vunpack.c.h.bf16 %v659
    %v684 = vunpack.c.l.bf16 %v660
    %v685 = vunpack.c.h.bf16 %v660
    %v686 = vunpack.c.l.bf16 %v661
    %v687 = vunpack.c.h.bf16 %v661
    %v688 = vunpack.c.l.bf16 %v662
    %v689 = vunpack.c.h.bf16 %v662
    %v690 = vunpack.c.l.bf16 %v663
    %v691 = vunpack.c.h.bf16 %v663
    %v692 = vunpack.c.l.bf16 %v664
    %v693 = vunpack.c.h.bf16 %v664
    %v694 = vunpack.c.l.bf16 %v665
    %v695 = vunpack.c.h.bf16 %v665
    %v696 = vunpack.c.l.bf16 %v666
    %v697 = vunpack.c.h.bf16 %v666
    %v698 = vunpack.c.l.bf16 %v667
    %v699 = vunpack.c.h.bf16 %v667
    %v700 = vld [vmem:[#allocation10] sm:$0xf]
    %v701 = vld [vmem:[#allocation10 + $0x4] sm:$0xf]
    %v702 = vld [vmem:[#allocation10 + $0x8] sm:$0xf]
    %v703 = vld [vmem:[#allocation10 + $0xc] sm:$0xf]
    %v704 = vld [vmem:[#allocation10 + $0x10] sm:$0xf]
    %v705 = vld [vmem:[#allocation10 + $0x14] sm:$0xf]
    %v706 = vld [vmem:[#allocation10 + $0x18] sm:$0xf]
    %v707 = vld [vmem:[#allocation10 + $0x1c] sm:$0xf]
    %v708 = vld [vmem:[#allocation10 + $0x20] sm:$0xf]
    %v709 = vld [vmem:[#allocation10 + $0x24] sm:$0xf]
    %v710 = vld [vmem:[#allocation10 + $0x28] sm:$0xf]
    %v711 = vld [vmem:[#allocation10 + $0x2c] sm:$0xf]
    %v712 = vld [vmem:[#allocation10 + $0x30] sm:$0xf]
    %v713 = vld [vmem:[#allocation10 + $0x34] sm:$0xf]
    %v714 = vld [vmem:[#allocation10 + $0x38] sm:$0xf]
    %v715 = vld [vmem:[#allocation10 + $0x3c] sm:$0xf]
    %v716 = vld [vmem:[#allocation10 + $0x40] sm:$0xf]
    %v717 = vld [vmem:[#allocation10 + $0x44] sm:$0xf]
    %v718 = vld [vmem:[#allocation10 + $0x48] sm:$0xf]
    %v719 = vld [vmem:[#allocation10 + $0x4c] sm:$0xf]
    %v720 = vld [vmem:[#allocation10 + $0x50] sm:$0xf]
    %v721 = vld [vmem:[#allocation10 + $0x54] sm:$0xf]
    %v722 = vld [vmem:[#allocation10 + $0x58] sm:$0xf]
    %v723 = vld [vmem:[#allocation10 + $0x5c] sm:$0xf]
    %v724 = vld [vmem:[#allocation10 + $0x60] sm:$0xf]
    %v725 = vld [vmem:[#allocation10 + $0x64] sm:$0xf]
    %v726 = vld [vmem:[#allocation10 + $0x68] sm:$0xf]
    %v727 = vld [vmem:[#allocation10 + $0x6c] sm:$0xf]
    %v728 = vld [vmem:[#allocation10 + $0x70] sm:$0xf]
    %v729 = vld [vmem:[#allocation10 + $0x74] sm:$0xf]
    %v730 = vld [vmem:[#allocation10 + $0x78] sm:$0xf]
    %v731 = vld [vmem:[#allocation10 + $0x7c] sm:$0xf]
    %v732 = vunpack.c.l.bf16 %v700
    %v733 = vunpack.c.l.bf16 %v701
    %v734 = vunpack.c.l.bf16 %v702
    %v735 = vunpack.c.l.bf16 %v703
    %v736 = vunpack.c.l.bf16 %v704
    %v737 = vunpack.c.l.bf16 %v705
    %v738 = vunpack.c.l.bf16 %v706
    %v739 = vunpack.c.l.bf16 %v707
    %v740 = vunpack.c.l.bf16 %v708
    %v741 = vunpack.c.l.bf16 %v709
    %v742 = vunpack.c.l.bf16 %v710
    %v743 = vunpack.c.l.bf16 %v711
    %v744 = vunpack.c.l.bf16 %v712
    %v745 = vunpack.c.l.bf16 %v713
    %v746 = vunpack.c.l.bf16 %v714
    %v747 = vunpack.c.l.bf16 %v715
    %v748 = vunpack.c.l.bf16 %v716
    %v749 = vunpack.c.l.bf16 %v717
    %v750 = vunpack.c.l.bf16 %v718
    %v751 = vunpack.c.l.bf16 %v719
    %v752 = vunpack.c.l.bf16 %v720
    %v753 = vunpack.c.l.bf16 %v721
    %v754 = vunpack.c.l.bf16 %v722
    %v755 = vunpack.c.l.bf16 %v723
    %v756 = vunpack.c.l.bf16 %v724
    %v757 = vunpack.c.l.bf16 %v725
    %v758 = vunpack.c.l.bf16 %v726
    %v759 = vunpack.c.l.bf16 %v727
    %v760 = vunpack.c.l.bf16 %v728
    %v761 = vunpack.c.l.bf16 %v729
    %v762 = vunpack.c.l.bf16 %v730
    %v763 = vunpack.c.l.bf16 %v731
    %v764 = vld [vmem:[%s0] sm:$0xff]
    %v765 = vld [vmem:[%s0 + $0x8] sm:$0xff]
    %v766 = vld [vmem:[%s0 + $0x10] sm:$0xff]
    %v767 = vld [vmem:[%s0 + $0x18] sm:$0xff]
    %v768 = vld [vmem:[%s0 + $0x20] sm:$0xff]
    %v769 = vld [vmem:[%s0 + $0x28] sm:$0xff]
    %v770 = vld [vmem:[%s0 + $0x30] sm:$0xff]
    %v771 = vld [vmem:[%s0 + $0x38] sm:$0xff]
    %772 = vmatpush.msra.mxu0 %v170
    %773 = vmatpush.msra.mxu0 %v168
    %774 = vmatpush.msra.mxu0 %v166
    %775 = vmatpush.msra.mxu0 %v164
    %776 = vmatpush.msra.mxu0 %v162
    %777 = vmatpush.msra.mxu0 %v160
    %778 = vmatpush.msra.mxu0 %v158
    %779 = vmatpush.msra.mxu0 %v156
    %780 = vmatpush.msra.mxu0 %v154
    %781 = vmatpush.msra.mxu0 %v152
    %782 = vmatpush.msra.mxu0 %v150
    %783 = vmatpush.msra.mxu0 %v148
    %784 = vmatpush.msra.mxu0 %v146
    %785 = vmatpush.msra.mxu0 %v144
    %786 = vmatpush.msra.mxu0 %v142
    %787 = vmatpush.msra.mxu0 %v140
    %788 = vmatmul.f32.gmra.mxu0 %v764
    %v789 = vpop.f32.mrf.mxu0
    %v790 = vadd.f32 0.0, %v789
    %791 = vmatmul.f32.gmra.mxu0 %v765
    %v792 = vpop.f32.mrf.mxu0
    %v793 = vadd.f32 0.0, %v792
    %794 = vmatmul.f32.gmra.mxu0 %v766
    %v795 = vpop.f32.mrf.mxu0
    %v796 = vadd.f32 0.0, %v795
    %797 = vmatmul.f32.gmra.mxu0 %v767
    %v798 = vpop.f32.mrf.mxu0
    %v799 = vadd.f32 0.0, %v798
    %800 = vmatmul.f32.gmra.mxu0 %v768
    %v801 = vpop.f32.mrf.mxu0
    %v802 = vadd.f32 0.0, %v801
    %803 = vmatmul.f32.gmra.mxu0 %v769
    %v804 = vpop.f32.mrf.mxu0
    %v805 = vadd.f32 0.0, %v804
    %806 = vmatmul.f32.gmra.mxu0 %v770
    %v807 = vpop.f32.mrf.mxu0
    %v808 = vadd.f32 0.0, %v807
    %809 = vmatmul.f32.gmra.mxu0 %v771
    %v810 = vpop.f32.mrf.mxu0
    %v811 = vadd.f32 0.0, %v810
    %812 = vdwg.mxu0
    %813 = vmatpush.msra.mxu0 %v171
    %814 = vmatpush.msra.mxu0 %v169
    %815 = vmatpush.msra.mxu0 %v167
    %816 = vmatpush.msra.mxu0 %v165
    %817 = vmatpush.msra.mxu0 %v163
    %818 = vmatpush.msra.mxu0 %v161
    %819 = vmatpush.msra.mxu0 %v159
    %820 = vmatpush.msra.mxu0 %v157
    %821 = vmatpush.msra.mxu0 %v155
    %822 = vmatpush.msra.mxu0 %v153
    %823 = vmatpush.msra.mxu0 %v151
    %824 = vmatpush.msra.mxu0 %v149
    %825 = vmatpush.msra.mxu0 %v147
    %826 = vmatpush.msra.mxu0 %v145
    %827 = vmatpush.msra.mxu0 %v143
    %828 = vmatpush.msra.mxu0 %v141
    %829 = vmatmul.f32.gmra.mxu0 %v764
    %v830 = vpop.f32.mrf.mxu0
    %v831 = vadd.f32 0.0, %v830
    %832 = vmatmul.f32.gmra.mxu0 %v765
    %v833 = vpop.f32.mrf.mxu0
    %v834 = vadd.f32 0.0, %v833
    %835 = vmatmul.f32.gmra.mxu0 %v766
    %v836 = vpop.f32.mrf.mxu0
    %v837 = vadd.f32 0.0, %v836
    %838 = vmatmul.f32.gmra.mxu0 %v767
    %v839 = vpop.f32.mrf.mxu0
    %v840 = vadd.f32 0.0, %v839
    %841 = vmatmul.f32.gmra.mxu0 %v768
    %v842 = vpop.f32.mrf.mxu0
    %v843 = vadd.f32 0.0, %v842
    %844 = vmatmul.f32.gmra.mxu0 %v769
    %v845 = vpop.f32.mrf.mxu0
    %v846 = vadd.f32 0.0, %v845
    %847 = vmatmul.f32.gmra.mxu0 %v770
    %v848 = vpop.f32.mrf.mxu0
    %v849 = vadd.f32 0.0, %v848
    %850 = vmatmul.f32.gmra.mxu0 %v771
    %v851 = vpop.f32.mrf.mxu0
    %v852 = vadd.f32 0.0, %v851
    %853 = vdwg.mxu0
    %v854 = vadd.f32 %v790, %v831
    %855 = vadd.xlane.f32.xlu0 %v854
    %v856 = vpop.xlane.xlu0 %855
    %v857 = vadd.f32 %v793, %v834
    %858 = vadd.xlane.f32.xlu0 %v857
    %v859 = vpop.xlane.xlu0 %858
    %v860 = vadd.f32 %v796, %v837
    %861 = vadd.xlane.f32.xlu0 %v860
    %v862 = vpop.xlane.xlu0 %861
    %v863 = vadd.f32 %v799, %v840
    %864 = vadd.xlane.f32.xlu0 %v863
    %v865 = vpop.xlane.xlu0 %864
    %v866 = vadd.f32 %v802, %v843
    %867 = vadd.xlane.f32.xlu0 %v866
    %v868 = vpop.xlane.xlu0 %867
    %v869 = vadd.f32 %v805, %v846
    %870 = vadd.xlane.f32.xlu0 %v869
    %v871 = vpop.xlane.xlu0 %870
    %v872 = vadd.f32 %v808, %v849
    %873 = vadd.xlane.f32.xlu0 %v872
    %v874 = vpop.xlane.xlu0 %873
    %v875 = vadd.f32 %v811, %v852
    %876 = vadd.xlane.f32.xlu0 %v875
    %v877 = vpop.xlane.xlu0 %876
    %v878 = vrcp.pop 256.0
    %v879 = vmul.f32 256.0, %v878
    %v880 = vsub.f32 1.0, %v879
    %v881 = vmul.f32 %v878, %v880
    %v882 = vadd.f32 %v878, %v881
    %vm883 = vweird.f32 %v878
    %v884 = vsel %vm883, %v878, %v882
    %v885 = vmul.f32 %v856, %v884
    %v886 = vmul.f32 %v859, %v884
    %v887 = vmul.f32 %v862, %v884
    %v888 = vmul.f32 %v865, %v884
    %v889 = vmul.f32 %v868, %v884
    %v890 = vmul.f32 %v871, %v884
    %v891 = vmul.f32 %v874, %v884
    %v892 = vmul.f32 %v877, %v884
    %v893 = vsub.f32 %v790, %v885
    %v894 = vsub.f32 %v831, %v885
    %v895 = vsub.f32 %v793, %v886
    %v896 = vsub.f32 %v834, %v886
    %v897 = vsub.f32 %v796, %v887
    %v898 = vsub.f32 %v837, %v887
    %v899 = vsub.f32 %v799, %v888
    %v900 = vsub.f32 %v840, %v888
    %v901 = vsub.f32 %v802, %v889
    %v902 = vsub.f32 %v843, %v889
    %v903 = vsub.f32 %v805, %v890
    %v904 = vsub.f32 %v846, %v890
    %v905 = vsub.f32 %v808, %v891
    %v906 = vsub.f32 %v849, %v891
    %v907 = vsub.f32 %v811, %v892
    %v908 = vsub.f32 %v852, %v892
    %v909 = vmul.f32 %v893, %v893
    %v910 = vmul.f32 %v894, %v894
    %v911 = vmul.f32 %v895, %v895
    %v912 = vmul.f32 %v896, %v896
    %v913 = vmul.f32 %v897, %v897
    %v914 = vmul.f32 %v898, %v898
    %v915 = vmul.f32 %v899, %v899
    %v916 = vmul.f32 %v900, %v900
    %v917 = vmul.f32 %v901, %v901
    %v918 = vmul.f32 %v902, %v902
    %v919 = vmul.f32 %v903, %v903
    %v920 = vmul.f32 %v904, %v904
    %v921 = vmul.f32 %v905, %v905
    %v922 = vmul.f32 %v906, %v906
    %v923 = vmul.f32 %v907, %v907
    %v924 = vmul.f32 %v908, %v908
    %v925 = vadd.f32 %v909, %v910
    %926 = vadd.xlane.f32.xlu0 %v925
    %v927 = vpop.xlane.xlu0 %926
    %v928 = vadd.f32 %v911, %v912
    %929 = vadd.xlane.f32.xlu0 %v928
    %v930 = vpop.xlane.xlu0 %929
    %v931 = vadd.f32 %v913, %v914
    %932 = vadd.xlane.f32.xlu0 %v931
    %v933 = vpop.xlane.xlu0 %932
    %v934 = vadd.f32 %v915, %v916
    %935 = vadd.xlane.f32.xlu0 %v934
    %v936 = vpop.xlane.xlu0 %935
    %v937 = vadd.f32 %v917, %v918
    %938 = vadd.xlane.f32.xlu0 %v937
    %v939 = vpop.xlane.xlu0 %938
    %v940 = vadd.f32 %v919, %v920
    %941 = vadd.xlane.f32.xlu0 %v940
    %v942 = vpop.xlane.xlu0 %941
    %v943 = vadd.f32 %v921, %v922
    %944 = vadd.xlane.f32.xlu0 %v943
    %v945 = vpop.xlane.xlu0 %944
    %v946 = vadd.f32 %v923, %v924
    %947 = vadd.xlane.f32.xlu0 %v946
    %v948 = vpop.xlane.xlu0 %947
    %v949 = vmul.f32 %v927, %v884
    %v950 = vmul.f32 %v930, %v884
    %v951 = vmul.f32 %v933, %v884
    %v952 = vmul.f32 %v936, %v884
    %v953 = vmul.f32 %v939, %v884
    %v954 = vmul.f32 %v942, %v884
    %v955 = vmul.f32 %v945, %v884
    %v956 = vmul.f32 %v948, %v884
    %v957 = vadd.f32 %v949, 1e-07
    %v958 = vadd.f32 %v950, 1e-07
    %v959 = vadd.f32 %v951, 1e-07
    %v960 = vadd.f32 %v952, 1e-07
    %v961 = vadd.f32 %v953, 1e-07
    %v962 = vadd.f32 %v954, 1e-07
    %v963 = vadd.f32 %v955, 1e-07
    %v964 = vadd.f32 %v956, 1e-07
    %v965 = vrsqrt.pop %v957
    %v966 = vmul.f32 %v965, %v957
    %v967 = vmul.f32 %v966, %v965
    %v968 = vmul.f32 0.5, %v967
    %v969 = vsub.f32 1.5, %v968
    %v970 = vmul.f32 %v965, %v969
    %vm971 = vweird.f32 %v957
    %vm972 = vweird.f32 %v965
    %vm973 = vmor %vm971, %vm972
    %v974 = vsel %vm973, %v965, %v970
    %v975 = vrsqrt.pop %v958
    %v976 = vmul.f32 %v975, %v958
    %v977 = vmul.f32 %v976, %v975
    %v978 = vmul.f32 0.5, %v977
    %v979 = vsub.f32 1.5, %v978
    %v980 = vmul.f32 %v975, %v979
    %vm981 = vweird.f32 %v958
    %vm982 = vweird.f32 %v975
    %vm983 = vmor %vm981, %vm982
    %v984 = vsel %vm983, %v975, %v980
    %v985 = vrsqrt.pop %v959
    %v986 = vmul.f32 %v985, %v959
    %v987 = vmul.f32 %v986, %v985
    %v988 = vmul.f32 0.5, %v987
    %v989 = vsub.f32 1.5, %v988
    %v990 = vmul.f32 %v985, %v989
    %vm991 = vweird.f32 %v959
    %vm992 = vweird.f32 %v985
    %vm993 = vmor %vm991, %vm992
    %v994 = vsel %vm993, %v985, %v990
    %v995 = vrsqrt.pop %v960
    %v996 = vmul.f32 %v995, %v960
    %v997 = vmul.f32 %v996, %v995
    %v998 = vmul.f32 0.5, %v997
    %v999 = vsub.f32 1.5, %v998
    %v1000 = vmul.f32 %v995, %v999
    %vm1001 = vweird.f32 %v960
    %vm1002 = vweird.f32 %v995
    %vm1003 = vmor %vm1001, %vm1002
    %v1004 = vsel %vm1003, %v995, %v1000
    %v1005 = vrsqrt.pop %v961
    %v1006 = vmul.f32 %v1005, %v961
    %v1007 = vmul.f32 %v1006, %v1005
    %v1008 = vmul.f32 0.5, %v1007
    %v1009 = vsub.f32 1.5, %v1008
    %v1010 = vmul.f32 %v1005, %v1009
    %vm1011 = vweird.f32 %v961
    %vm1012 = vweird.f32 %v1005
    %vm1013 = vmor %vm1011, %vm1012
    %v1014 = vsel %vm1013, %v1005, %v1010
    %v1015 = vrsqrt.pop %v962
    %v1016 = vmul.f32 %v1015, %v962
    %v1017 = vmul.f32 %v1016, %v1015
    %v1018 = vmul.f32 0.5, %v1017
    %v1019 = vsub.f32 1.5, %v1018
    %v1020 = vmul.f32 %v1015, %v1019
    %vm1021 = vweird.f32 %v962
    %vm1022 = vweird.f32 %v1015
    %vm1023 = vmor %vm1021, %vm1022
    %v1024 = vsel %vm1023, %v1015, %v1020
    %v1025 = vrsqrt.pop %v963
    %v1026 = vmul.f32 %v1025, %v963
    %v1027 = vmul.f32 %v1026, %v1025
    %v1028 = vmul.f32 0.5, %v1027
    %v1029 = vsub.f32 1.5, %v1028
    %v1030 = vmul.f32 %v1025, %v1029
    %vm1031 = vweird.f32 %v963
    %vm1032 = vweird.f32 %v1025
    %vm1033 = vmor %vm1031, %vm1032
    %v1034 = vsel %vm1033, %v1025, %v1030
    %v1035 = vrsqrt.pop %v964
    %v1036 = vmul.f32 %v1035, %v964
    %v1037 = vmul.f32 %v1036, %v1035
    %v1038 = vmul.f32 0.5, %v1037
    %v1039 = vsub.f32 1.5, %v1038
    %v1040 = vmul.f32 %v1035, %v1039
    %vm1041 = vweird.f32 %v964
    %vm1042 = vweird.f32 %v1035
    %vm1043 = vmor %vm1041, %vm1042
    %v1044 = vsel %vm1043, %v1035, %v1040
    %v1045 = vmul.f32 %v893, %v974
    %v1046 = vmul.f32 %v894, %v974
    %v1047 = vmul.f32 %v895, %v984
    %v1048 = vmul.f32 %v896, %v984
    %v1049 = vmul.f32 %v897, %v994
    %v1050 = vmul.f32 %v898, %v994
    %v1051 = vmul.f32 %v899, %v1004
    %v1052 = vmul.f32 %v900, %v1004
    %v1053 = vmul.f32 %v901, %v1014
    %v1054 = vmul.f32 %v902, %v1014
    %v1055 = vmul.f32 %v903, %v1024
    %v1056 = vmul.f32 %v904, %v1024
    %v1057 = vmul.f32 %v905, %v1034
    %v1058 = vmul.f32 %v906, %v1034
    %v1059 = vmul.f32 %v907, %v1044
    %v1060 = vmul.f32 %v908, %v1044
    %v1061 = vld [vmem:[%s3] sm:$0x3]
    %v1063 = vperm.slane %v1061, 0
    %v1064 = vperm.slane %v1061, 1
    %v1067 = vmul.f32 %v1045, %v1063
    %v1068 = vmul.f32 %v1046, %v1064
    %v1069 = vmul.f32 %v1047, %v1063
    %v1070 = vmul.f32 %v1048, %v1064
    %v1071 = vmul.f32 %v1049, %v1063
    %v1072 = vmul.f32 %v1050, %v1064
    %v1073 = vmul.f32 %v1051, %v1063
    %v1074 = vmul.f32 %v1052, %v1064
    %v1075 = vmul.f32 %v1053, %v1063
    %v1076 = vmul.f32 %v1054, %v1064
    %v1077 = vmul.f32 %v1055, %v1063
    %v1078 = vmul.f32 %v1056, %v1064
    %v1079 = vmul.f32 %v1057, %v1063
    %v1080 = vmul.f32 %v1058, %v1064
    %v1081 = vmul.f32 %v1059, %v1063
    %v1082 = vmul.f32 %v1060, %v1064
    %v1083 = vld [vmem:[%s4] sm:$0x3]
    %v1085 = vperm.slane %v1083, 0
    %v1086 = vperm.slane %v1083, 1
    %v1089 = vadd.f32 %v1067, %v1085
    %v1090 = vadd.f32 %v1068, %v1086
    %v1091 = vadd.f32 %v1069, %v1085
    %v1092 = vadd.f32 %v1070, %v1086
    %v1093 = vadd.f32 %v1071, %v1085
    %v1094 = vadd.f32 %v1072, %v1086
    %v1095 = vadd.f32 %v1073, %v1085
    %v1096 = vadd.f32 %v1074, %v1086
    %v1097 = vadd.f32 %v1075, %v1085
    %v1098 = vadd.f32 %v1076, %v1086
    %v1099 = vadd.f32 %v1077, %v1085
    %v1100 = vadd.f32 %v1078, %v1086
    %v1101 = vadd.f32 %v1079, %v1085
    %v1102 = vadd.f32 %v1080, %v1086
    %v1103 = vadd.f32 %v1081, %v1085
    %v1104 = vadd.f32 %v1082, %v1086
    %v1105 = vld [vmem:[%s7] sm:$0xf]
    %v1107 = vperm.slane %v1105, 0
    %v1108 = vperm.slane %v1105, 1
    %v1109 = vperm.slane %v1105, 2
    %v1110 = vperm.slane %v1105, 3
    %1115 = vmatpush.msra.mxu0 %v296
    %1116 = vmatpush.msra.mxu0 %v292
    %1117 = vmatpush.msra.mxu0 %v288
    %1118 = vmatpush.msra.mxu0 %v284
    %1119 = vmatpush.msra.mxu0 %v280
    %1120 = vmatpush.msra.mxu0 %v276
    %1121 = vmatpush.msra.mxu0 %v272
    %1122 = vmatpush.msra.mxu0 %v268
    %1123 = vmatpush.msra.mxu0 %v264
    %1124 = vmatpush.msra.mxu0 %v260
    %1125 = vmatpush.msra.mxu0 %v256
    %1126 = vmatpush.msra.mxu0 %v252
    %1127 = vmatpush.msra.mxu0 %v248
    %1128 = vmatpush.msra.mxu0 %v244
    %1129 = vmatpush.msra.mxu0 %v240
    %1130 = vmatpush.msra.mxu0 %v236
    %1131 = vmatmul.f32.gmra.mxu0 %v1089
    %v1132 = vpop.f32.mrf.mxu0
    %v1133 = vadd.f32 %v1107, %v1132
    %1134 = vmatmul.f32.gmra.mxu0 %v1091
    %v1135 = vpop.f32.mrf.mxu0
    %v1136 = vadd.f32 %v1107, %v1135
    %1137 = vmatmul.f32.gmra.mxu0 %v1093
    %v1138 = vpop.f32.mrf.mxu0
    %v1139 = vadd.f32 %v1107, %v1138
    %1140 = vmatmul.f32.gmra.mxu0 %v1095
    %v1141 = vpop.f32.mrf.mxu0
    %v1142 = vadd.f32 %v1107, %v1141
    %1143 = vmatmul.f32.gmra.mxu0 %v1097
    %v1144 = vpop.f32.mrf.mxu0
    %v1145 = vadd.f32 %v1107, %v1144
    %1146 = vmatmul.f32.gmra.mxu0 %v1099
    %v1147 = vpop.f32.mrf.mxu0
    %v1148 = vadd.f32 %v1107, %v1147
    %1149 = vmatmul.f32.gmra.mxu0 %v1101
    %v1150 = vpop.f32.mrf.mxu0
    %v1151 = vadd.f32 %v1107, %v1150
    %1152 = vmatmul.f32.gmra.mxu0 %v1103
    %v1153 = vpop.f32.mrf.mxu0
    %v1154 = vadd.f32 %v1107, %v1153
    %1155 = vdwg.mxu0
    %1156 = vmatpush.msra.mxu0 %v360
    %1157 = vmatpush.msra.mxu0 %v356
    %1158 = vmatpush.msra.mxu0 %v352
    %1159 = vmatpush.msra.mxu0 %v348
    %1160 = vmatpush.msra.mxu0 %v344
    %1161 = vmatpush.msra.mxu0 %v340
    %1162 = vmatpush.msra.mxu0 %v336
    %1163 = vmatpush.msra.mxu0 %v332
    %1164 = vmatpush.msra.mxu0 %v328
    %1165 = vmatpush.msra.mxu0 %v324
    %1166 = vmatpush.msra.mxu0 %v320
    %1167 = vmatpush.msra.mxu0 %v316
    %1168 = vmatpush.msra.mxu0 %v312
    %1169 = vmatpush.msra.mxu0 %v308
    %1170 = vmatpush.msra.mxu0 %v304
    %1171 = vmatpush.msra.mxu0 %v300
    %1172 = vmatmul.f32.gmra.mxu0 %v1090
    %v1173 = vpop.f32.mrf.mxu0
    %v1174 = vadd.f32 %v1133, %v1173
    %1175 = vmatmul.f32.gmra.mxu0 %v1092
    %v1176 = vpop.f32.mrf.mxu0
    %v1177 = vadd.f32 %v1136, %v1176
    %1178 = vmatmul.f32.gmra.mxu0 %v1094
    %v1179 = vpop.f32.mrf.mxu0
    %v1180 = vadd.f32 %v1139, %v1179
    %1181 = vmatmul.f32.gmra.mxu0 %v1096
    %v1182 = vpop.f32.mrf.mxu0
    %v1183 = vadd.f32 %v1142, %v1182
    %1184 = vmatmul.f32.gmra.mxu0 %v1098
    %v1185 = vpop.f32.mrf.mxu0
    %v1186 = vadd.f32 %v1145, %v1185
    %1187 = vmatmul.f32.gmra.mxu0 %v1100
    %v1188 = vpop.f32.mrf.mxu0
    %v1189 = vadd.f32 %v1148, %v1188
    %1190 = vmatmul.f32.gmra.mxu0 %v1102
    %v1191 = vpop.f32.mrf.mxu0
    %v1192 = vadd.f32 %v1151, %v1191
    %1193 = vmatmul.f32.gmra.mxu0 %v1104
    %v1194 = vpop.f32.mrf.mxu0
    %v1195 = vadd.f32 %v1154, %v1194
    %1196 = vdwg.mxu0
    %1197 = vmatpush.msra.mxu0 %v297
    %1198 = vmatpush.msra.mxu0 %v293
    %1199 = vmatpush.msra.mxu0 %v289
    %1200 = vmatpush.msra.mxu0 %v285
    %1201 = vmatpush.msra.mxu0 %v281
    %1202 = vmatpush.msra.mxu0 %v277
    %1203 = vmatpush.msra.mxu0 %v273
    %1204 = vmatpush.msra.mxu0 %v269
    %1205 = vmatpush.msra.mxu0 %v265
    %1206 = vmatpush.msra.mxu0 %v261
    %1207 = vmatpush.msra.mxu0 %v257
    %1208 = vmatpush.msra.mxu0 %v253
    %1209 = vmatpush.msra.mxu0 %v249
    %1210 = vmatpush.msra.mxu0 %v245
    %1211 = vmatpush.msra.mxu0 %v241
    %1212 = vmatpush.msra.mxu0 %v237
    %1213 = vmatmul.f32.gmra.mxu0 %v1089
    %v1214 = vpop.f32.mrf.mxu0
    %v1215 = vadd.f32 %v1108, %v1214
    %1216 = vmatmul.f32.gmra.mxu0 %v1091
    %v1217 = vpop.f32.mrf.mxu0
    %v1218 = vadd.f32 %v1108, %v1217
    %1219 = vmatmul.f32.gmra.mxu0 %v1093
    %v1220 = vpop.f32.mrf.mxu0
    %v1221 = vadd.f32 %v1108, %v1220
    %1222 = vmatmul.f32.gmra.mxu0 %v1095
    %v1223 = vpop.f32.mrf.mxu0
    %v1224 = vadd.f32 %v1108, %v1223
    %1225 = vmatmul.f32.gmra.mxu0 %v1097
    %v1226 = vpop.f32.mrf.mxu0
    %v1227 = vadd.f32 %v1108, %v1226
    %1228 = vmatmul.f32.gmra.mxu0 %v1099
    %v1229 = vpop.f32.mrf.mxu0
    %v1230 = vadd.f32 %v1108, %v1229
    %1231 = vmatmul.f32.gmra.mxu0 %v1101
    %v1232 = vpop.f32.mrf.mxu0
    %v1233 = vadd.f32 %v1108, %v1232
    %1234 = vmatmul.f32.gmra.mxu0 %v1103
    %v1235 = vpop.f32.mrf.mxu0
    %v1236 = vadd.f32 %v1108, %v1235
    %1237 = vdwg.mxu0
    %1238 = vmatpush.msra.mxu0 %v361
    %1239 = vmatpush.msra.mxu0 %v357
    %1240 = vmatpush.msra.mxu0 %v353
    %1241 = vmatpush.msra.mxu0 %v349
    %1242 = vmatpush.msra.mxu0 %v345
    %1243 = vmatpush.msra.mxu0 %v341
    %1244 = vmatpush.msra.mxu0 %v337
    %1245 = vmatpush.msra.mxu0 %v333
    %1246 = vmatpush.msra.mxu0 %v329
    %1247 = vmatpush.msra.mxu0 %v325
    %1248 = vmatpush.msra.mxu0 %v321
    %1249 = vmatpush.msra.mxu0 %v317
    %1250 = vmatpush.msra.mxu0 %v313
    %1251 = vmatpush.msra.mxu0 %v309
    %1252 = vmatpush.msra.mxu0 %v305
    %1253 = vmatpush.msra.mxu0 %v301
    %1254 = vmatmul.f32.gmra.mxu0 %v1090
    %v1255 = vpop.f32.mrf.mxu0
    %v1256 = vadd.f32 %v1215, %v1255
    %1257 = vmatmul.f32.gmra.mxu0 %v1092
    %v1258 = vpop.f32.mrf.mxu0
    %v1259 = vadd.f32 %v1218, %v1258
    %1260 = vmatmul.f32.gmra.mxu0 %v1094
    %v1261 = vpop.f32.mrf.mxu0
    %v1262 = vadd.f32 %v1221, %v1261
    %1263 = vmatmul.f32.gmra.mxu0 %v1096
    %v1264 = vpop.f32.mrf.mxu0
    %v1265 = vadd.f32 %v1224, %v1264
    %1266 = vmatmul.f32.gmra.mxu0 %v1098
    %v1267 = vpop.f32.mrf.mxu0
    %v1268 = vadd.f32 %v1227, %v1267
    %1269 = vmatmul.f32.gmra.mxu0 %v1100
    %v1270 = vpop.f32.mrf.mxu0
    %v1271 = vadd.f32 %v1230, %v1270
    %1272 = vmatmul.f32.gmra.mxu0 %v1102
    %v1273 = vpop.f32.mrf.mxu0
    %v1274 = vadd.f32 %v1233, %v1273
    %1275 = vmatmul.f32.gmra.mxu0 %v1104
    %v1276 = vpop.f32.mrf.mxu0
    %v1277 = vadd.f32 %v1236, %v1276
    %1278 = vdwg.mxu0
    %1279 = vmatpush.msra.mxu0 %v298
    %1280 = vmatpush.msra.mxu0 %v294
    %1281 = vmatpush.msra.mxu0 %v290
    %1282 = vmatpush.msra.mxu0 %v286
    %1283 = vmatpush.msra.mxu0 %v282
    %1284 = vmatpush.msra.mxu0 %v278
    %1285 = vmatpush.msra.mxu0 %v274
    %1286 = vmatpush.msra.mxu0 %v270
    %1287 = vmatpush.msra.mxu0 %v266
    %1288 = vmatpush.msra.mxu0 %v262
    %1289 = vmatpush.msra.mxu0 %v258
    %1290 = vmatpush.msra.mxu0 %v254
    %1291 = vmatpush.msra.mxu0 %v250
    %1292 = vmatpush.msra.mxu0 %v246
    %1293 = vmatpush.msra.mxu0 %v242
    %1294 = vmatpush.msra.mxu0 %v238
    %1295 = vmatmul.f32.gmra.mxu0 %v1089
    %v1296 = vpop.f32.mrf.mxu0
    %v1297 = vadd.f32 %v1109, %v1296
    %1298 = vmatmul.f32.gmra.mxu0 %v1091
    %v1299 = vpop.f32.mrf.mxu0
    %v1300 = vadd.f32 %v1109, %v1299
    %1301 = vmatmul.f32.gmra.mxu0 %v1093
    %v1302 = vpop.f32.mrf.mxu0
    %v1303 = vadd.f32 %v1109, %v1302
    %1304 = vmatmul.f32.gmra.mxu0 %v1095
    %v1305 = vpop.f32.mrf.mxu0
    %v1306 = vadd.f32 %v1109, %v1305
    %1307 = vmatmul.f32.gmra.mxu0 %v1097
    %v1308 = vpop.f32.mrf.mxu0
    %v1309 = vadd.f32 %v1109, %v1308
    %1310 = vmatmul.f32.gmra.mxu0 %v1099
    %v1311 = vpop.f32.mrf.mxu0
    %v1312 = vadd.f32 %v1109, %v1311
    %1313 = vmatmul.f32.gmra.mxu0 %v1101
    %v1314 = vpop.f32.mrf.mxu0
    %v1315 = vadd.f32 %v1109, %v1314
    %1316 = vmatmul.f32.gmra.mxu0 %v1103
    %v1317 = vpop.f32.mrf.mxu0
    %v1318 = vadd.f32 %v1109, %v1317
    %1319 = vdwg.mxu0
    %1320 = vmatpush.msra.mxu0 %v362
    %1321 = vmatpush.msra.mxu0 %v358
    %1322 = vmatpush.msra.mxu0 %v354
    %1323 = vmatpush.msra.mxu0 %v350
    %1324 = vmatpush.msra.mxu0 %v346
    %1325 = vmatpush.msra.mxu0 %v342
    %1326 = vmatpush.msra.mxu0 %v338
    %1327 = vmatpush.msra.mxu0 %v334
    %1328 = vmatpush.msra.mxu0 %v330
    %1329 = vmatpush.msra.mxu0 %v326
    %1330 = vmatpush.msra.mxu0 %v322
    %1331 = vmatpush.msra.mxu0 %v318
    %1332 = vmatpush.msra.mxu0 %v314
    %1333 = vmatpush.msra.mxu0 %v310
    %1334 = vmatpush.msra.mxu0 %v306
    %1335 = vmatpush.msra.mxu0 %v302
    %1336 = vmatmul.f32.gmra.mxu0 %v1090
    %v1337 = vpop.f32.mrf.mxu0
    %v1338 = vadd.f32 %v1297, %v1337
    %1339 = vmatmul.f32.gmra.mxu0 %v1092
    %v1340 = vpop.f32.mrf.mxu0
    %v1341 = vadd.f32 %v1300, %v1340
    %1342 = vmatmul.f32.gmra.mxu0 %v1094
    %v1343 = vpop.f32.mrf.mxu0
    %v1344 = vadd.f32 %v1303, %v1343
    %1345 = vmatmul.f32.gmra.mxu0 %v1096
    %v1346 = vpop.f32.mrf.mxu0
    %v1347 = vadd.f32 %v1306, %v1346
    %1348 = vmatmul.f32.gmra.mxu0 %v1098
    %v1349 = vpop.f32.mrf.mxu0
    %v1350 = vadd.f32 %v1309, %v1349
    %1351 = vmatmul.f32.gmra.mxu0 %v1100
    %v1352 = vpop.f32.mrf.mxu0
    %v1353 = vadd.f32 %v1312, %v1352
    %1354 = vmatmul.f32.gmra.mxu0 %v1102
    %v1355 = vpop.f32.mrf.mxu0
    %v1356 = vadd.f32 %v1315, %v1355
    %1357 = vmatmul.f32.gmra.mxu0 %v1104
    %v1358 = vpop.f32.mrf.mxu0
    %v1359 = vadd.f32 %v1318, %v1358
    %1360 = vdwg.mxu0
    %1361 = vmatpush.msra.mxu0 %v299
    %1362 = vmatpush.msra.mxu0 %v295
    %1363 = vmatpush.msra.mxu0 %v291
    %1364 = vmatpush.msra.mxu0 %v287
    %1365 = vmatpush.msra.mxu0 %v283
    %1366 = vmatpush.msra.mxu0 %v279
    %1367 = vmatpush.msra.mxu0 %v275
    %1368 = vmatpush.msra.mxu0 %v271
    %1369 = vmatpush.msra.mxu0 %v267
    %1370 = vmatpush.msra.mxu0 %v263
    %1371 = vmatpush.msra.mxu0 %v259
    %1372 = vmatpush.msra.mxu0 %v255
    %1373 = vmatpush.msra.mxu0 %v251
    %1374 = vmatpush.msra.mxu0 %v247
    %1375 = vmatpush.msra.mxu0 %v243
    %1376 = vmatpush.msra.mxu0 %v239
    %1377 = vmatmul.f32.gmra.mxu0 %v1089
    %v1378 = vpop.f32.mrf.mxu0
    %v1379 = vadd.f32 %v1110, %v1378
    %1380 = vmatmul.f32.gmra.mxu0 %v1091
    %v1381 = vpop.f32.mrf.mxu0
    %v1382 = vadd.f32 %v1110, %v1381
    %1383 = vmatmul.f32.gmra.mxu0 %v1093
    %v1384 = vpop.f32.mrf.mxu0
    %v1385 = vadd.f32 %v1110, %v1384
    %1386 = vmatmul.f32.gmra.mxu0 %v1095
    %v1387 = vpop.f32.mrf.mxu0
    %v1388 = vadd.f32 %v1110, %v1387
    %1389 = vmatmul.f32.gmra.mxu0 %v1097
    %v1390 = vpop.f32.mrf.mxu0
    %v1391 = vadd.f32 %v1110, %v1390
    %1392 = vmatmul.f32.gmra.mxu0 %v1099
    %v1393 = vpop.f32.mrf.mxu0
    %v1394 = vadd.f32 %v1110, %v1393
    %1395 = vmatmul.f32.gmra.mxu0 %v1101
    %v1396 = vpop.f32.mrf.mxu0
    %v1397 = vadd.f32 %v1110, %v1396
    %1398 = vmatmul.f32.gmra.mxu0 %v1103
    %v1399 = vpop.f32.mrf.mxu0
    %v1400 = vadd.f32 %v1110, %v1399
    %1401 = vdwg.mxu0
    %1402 = vmatpush.msra.mxu0 %v363
    %1403 = vmatpush.msra.mxu0 %v359
    %1404 = vmatpush.msra.mxu0 %v355
    %1405 = vmatpush.msra.mxu0 %v351
    %1406 = vmatpush.msra.mxu0 %v347
    %1407 = vmatpush.msra.mxu0 %v343
    %1408 = vmatpush.msra.mxu0 %v339
    %1409 = vmatpush.msra.mxu0 %v335
    %1410 = vmatpush.msra.mxu0 %v331
    %1411 = vmatpush.msra.mxu0 %v327
    %1412 = vmatpush.msra.mxu0 %v323
    %1413 = vmatpush.msra.mxu0 %v319
    %1414 = vmatpush.msra.mxu0 %v315
    %1415 = vmatpush.msra.mxu0 %v311
    %1416 = vmatpush.msra.mxu0 %v307
    %1417 = vmatpush.msra.mxu0 %v303
    %1418 = vmatmul.f32.gmra.mxu0 %v1090
    %v1419 = vpop.f32.mrf.mxu0
    %v1420 = vadd.f32 %v1379, %v1419
    %1421 = vmatmul.f32.gmra.mxu0 %v1092
    %v1422 = vpop.f32.mrf.mxu0
    %v1423 = vadd.f32 %v1382, %v1422
    %1424 = vmatmul.f32.gmra.mxu0 %v1094
    %v1425 = vpop.f32.mrf.mxu0
    %v1426 = vadd.f32 %v1385, %v1425
    %1427 = vmatmul.f32.gmra.mxu0 %v1096
    %v1428 = vpop.f32.mrf.mxu0
    %v1429 = vadd.f32 %v1388, %v1428
    %1430 = vmatmul.f32.gmra.mxu0 %v1098
    %v1431 = vpop.f32.mrf.mxu0
    %v1432 = vadd.f32 %v1391, %v1431
    %1433 = vmatmul.f32.gmra.mxu0 %v1100
    %v1434 = vpop.f32.mrf.mxu0
    %v1435 = vadd.f32 %v1394, %v1434
    %1436 = vmatmul.f32.gmra.mxu0 %v1102
    %v1437 = vpop.f32.mrf.mxu0
    %v1438 = vadd.f32 %v1397, %v1437
    %1439 = vmatmul.f32.gmra.mxu0 %v1104
    %v1440 = vpop.f32.mrf.mxu0
    %v1441 = vadd.f32 %v1400, %v1440
    %1442 = vdwg.mxu0
    %v1443 = vld [vmem:[%s9] sm:$0xf]
    %v1445 = vperm.slane %v1443, 0
    %v1446 = vperm.slane %v1443, 1
    %v1447 = vperm.slane %v1443, 2
    %v1448 = vperm.slane %v1443, 3
    %v1453 = vld [vmem:[%s1] sm:$0xff]
    %v1454 = vld [vmem:[%s1 + $0x8] sm:$0xff]
    %v1455 = vld [vmem:[%s1 + $0x10] sm:$0xff]
    %v1456 = vld [vmem:[%s1 + $0x18] sm:$0xff]
    %1457 = vmatpush.msra.mxu0 %v456
    %1458 = vmatpush.msra.mxu0 %v452
    %1459 = vmatpush.msra.mxu0 %v448
    %1460 = vmatpush.msra.mxu0 %v444
    %1461 = vmatpush.msra.mxu0 %v440
    %1462 = vmatpush.msra.mxu0 %v436
    %1463 = vmatpush.msra.mxu0 %v432
    %1464 = vmatpush.msra.mxu0 %v428
    %1465 = vmatpush.msra.mxu0 %v424
    %1466 = vmatpush.msra.mxu0 %v420
    %1467 = vmatpush.msra.mxu0 %v416
    %1468 = vmatpush.msra.mxu0 %v412
    %1469 = vmatpush.msra.mxu0 %v408
    %1470 = vmatpush.msra.mxu0 %v404
    %1471 = vmatpush.msra.mxu0 %v400
    %1472 = vmatpush.msra.mxu0 %v396
    %1473 = vmatmul.f32.gmra.mxu0 %v1453
    %v1474 = vpop.f32.mrf.mxu0
    %v1475 = vadd.f32 0.0, %v1474
    %1476 = vdwg.mxu0
    %1477 = vmatpush.msra.mxu0 %v457
    %1478 = vmatpush.msra.mxu0 %v453
    %1479 = vmatpush.msra.mxu0 %v449
    %1480 = vmatpush.msra.mxu0 %v445
    %1481 = vmatpush.msra.mxu0 %v441
    %1482 = vmatpush.msra.mxu0 %v437
    %1483 = vmatpush.msra.mxu0 %v433
    %1484 = vmatpush.msra.mxu0 %v429
    %1485 = vmatpush.msra.mxu0 %v425
    %1486 = vmatpush.msra.mxu0 %v421
    %1487 = vmatpush.msra.mxu0 %v417
    %1488 = vmatpush.msra.mxu0 %v413
    %1489 = vmatpush.msra.mxu0 %v409
    %1490 = vmatpush.msra.mxu0 %v405
    %1491 = vmatpush.msra.mxu0 %v401
    %1492 = vmatpush.msra.mxu0 %v397
    %1493 = vmatmul.f32.gmra.mxu0 %v1453
    %v1494 = vpop.f32.mrf.mxu0
    %v1495 = vadd.f32 0.0, %v1494
    %1496 = vdwg.mxu0
    %1497 = vmatpush.msra.mxu0 %v458
    %1498 = vmatpush.msra.mxu0 %v454
    %1499 = vmatpush.msra.mxu0 %v450
    %1500 = vmatpush.msra.mxu0 %v446
    %1501 = vmatpush.msra.mxu0 %v442
    %1502 = vmatpush.msra.mxu0 %v438
    %1503 = vmatpush.msra.mxu0 %v434
    %1504 = vmatpush.msra.mxu0 %v430
    %1505 = vmatpush.msra.mxu0 %v426
    %1506 = vmatpush.msra.mxu0 %v422
    %1507 = vmatpush.msra.mxu0 %v418
    %1508 = vmatpush.msra.mxu0 %v414
    %1509 = vmatpush.msra.mxu0 %v410
    %1510 = vmatpush.msra.mxu0 %v406
    %1511 = vmatpush.msra.mxu0 %v402
    %1512 = vmatpush.msra.mxu0 %v398
    %1513 = vmatmul.f32.gmra.mxu0 %v1453
    %v1514 = vpop.f32.mrf.mxu0
    %v1515 = vadd.f32 0.0, %v1514
    %1516 = vdwg.mxu0
    %1517 = vmatpush.msra.mxu0 %v459
    %1518 = vmatpush.msra.mxu0 %v455
    %1519 = vmatpush.msra.mxu0 %v451
    %1520 = vmatpush.msra.mxu0 %v447
    %1521 = vmatpush.msra.mxu0 %v443
    %1522 = vmatpush.msra.mxu0 %v439
    %1523 = vmatpush.msra.mxu0 %v435
    %1524 = vmatpush.msra.mxu0 %v431
    %1525 = vmatpush.msra.mxu0 %v427
    %1526 = vmatpush.msra.mxu0 %v423
    %1527 = vmatpush.msra.mxu0 %v419
    %1528 = vmatpush.msra.mxu0 %v415
    %1529 = vmatpush.msra.mxu0 %v411
    %1530 = vmatpush.msra.mxu0 %v407
    %1531 = vmatpush.msra.mxu0 %v403
    %1532 = vmatpush.msra.mxu0 %v399
    %1533 = vmatmul.f32.gmra.mxu0 %v1453
    %v1534 = vpop.f32.mrf.mxu0
    %v1535 = vadd.f32 0.0, %v1534
    %1536 = vdwg.mxu0
    %v1537 = vadd.f32 %v1174, %v1475
    %v1538 = vadd.f32 %v1256, %v1495
    %v1539 = vadd.f32 %v1338, %v1515
    %v1540 = vadd.f32 %v1420, %v1535
    %v1541 = vxor.u32 %v1537, 2147483648
    %v1542 = vxor.u32 %v1538, 2147483648
    %v1543 = vxor.u32 %v1539, 2147483648
    %v1544 = vmul.f32 %v1541, 1.442695
    %v1545 = vpow.pop %v1544
    %v1546 = vmul.f32 %v1542, 1.442695
    %v1547 = vpow.pop %v1546
    %v1548 = vmul.f32 %v1543, 1.442695
    %v1549 = vpow.pop %v1548
    %v1550 = vadd.f32 %v1545, 1.0
    %v1551 = vadd.f32 %v1547, 1.0
    %v1552 = vadd.f32 %v1549, 1.0
    %v1553 = vrcp.pop %v1550
    %v1554 = vmul.f32 %v1550, %v1553
    %v1555 = vsub.f32 1.0, %v1554
    %v1556 = vmul.f32 %v1553, %v1555
    %v1557 = vadd.f32 %v1553, %v1556
    %vm1558 = vweird.f32 %v1550
    %vm1559 = vweird.f32 %v1553
    %vm1560 = vmor %vm1558, %vm1559
    %v1561 = vsel %vm1560, %v1553, %v1557
    %v1562 = vand.u32 2147483647, %v1550
    %vm1563 = vcmp.eq.f32.partialorder %v1562, 8.507059e+37
    %v1564 = vand.u32 %v1550, 2147483648
    %v1565 = vor.u32 1.1754944e-38, %v1564
    %v1566 = vsel %vm1563, %v1565, %v1561
    %v1567 = vmul.f32 1.0, %v1566
    %v1568 = vrcp.pop %v1551
    %v1569 = vmul.f32 %v1551, %v1568
    %v1570 = vsub.f32 1.0, %v1569
    %v1571 = vmul.f32 %v1568, %v1570
    %v1572 = vadd.f32 %v1568, %v1571
    %vm1573 = vweird.f32 %v1551
    %vm1574 = vweird.f32 %v1568
    %vm1575 = vmor %vm1573, %vm1574
    %v1576 = vsel %vm1575, %v1568, %v1572
    %v1577 = vand.u32 2147483647, %v1551
    %vm1578 = vcmp.eq.f32.partialorder %v1577, 8.507059e+37
    %v1579 = vand.u32 %v1551, 2147483648
    %v1580 = vor.u32 1.1754944e-38, %v1579
    %v1581 = vsel %vm1578, %v1580, %v1576
    %v1582 = vmul.f32 1.0, %v1581
    %v1583 = vrcp.pop %v1552
    %v1584 = vmul.f32 %v1552, %v1583
    %v1585 = vsub.f32 1.0, %v1584
    %v1586 = vmul.f32 %v1583, %v1585
    %v1587 = vadd.f32 %v1583, %v1586
    %vm1588 = vweird.f32 %v1552
    %vm1589 = vweird.f32 %v1583
    %vm1590 = vmor %vm1588, %vm1589
    %v1591 = vsel %vm1590, %v1583, %v1587
    %v1592 = vand.u32 2147483647, %v1552
    %vm1593 = vcmp.eq.f32.partialorder %v1592, 8.507059e+37
    %v1594 = vand.u32 %v1552, 2147483648
    %v1595 = vor.u32 1.1754944e-38, %v1594
    %v1596 = vsel %vm1593, %v1595, %v1591
    %v1597 = vmul.f32 1.0, %v1596
    %v1598 = vtanh.pop %v1540
    %v1599 = vmul.f32 %v1582, %v1454
    %v1600 = vmul.f32 %v1567, %v1598
    %v1601 = vadd.f32 %v1599, %v1600
    %v1602 = vtanh.pop %v1601
    %v1603 = vmul.f32 %v1597, %v1602
    %1604 = vmatpush.msra.mxu0 %v584
    %1605 = vmatpush.msra.mxu0 %v580
    %1606 = vmatpush.msra.mxu0 %v576
    %1607 = vmatpush.msra.mxu0 %v572
    %1608 = vmatpush.msra.mxu0 %v568
    %1609 = vmatpush.msra.mxu0 %v564
    %1610 = vmatpush.msra.mxu0 %v560
    %1611 = vmatpush.msra.mxu0 %v556
    %1612 = vmatpush.msra.mxu0 %v552
    %1613 = vmatpush.msra.mxu0 %v548
    %1614 = vmatpush.msra.mxu0 %v544
    %1615 = vmatpush.msra.mxu0 %v540
    %1616 = vmatpush.msra.mxu0 %v536
    %1617 = vmatpush.msra.mxu0 %v532
    %1618 = vmatpush.msra.mxu0 %v528
    %1619 = vmatpush.msra.mxu0 %v524
    %1620 = vmatmul.f32.gmra.mxu0 %v1603
    %v1621 = vpop.f32.mrf.mxu0
    %v1622 = vadd.f32 %v1445, %v1621
    %1623 = vdwg.mxu0
    %1624 = vmatpush.msra.mxu0 %v648
    %1625 = vmatpush.msra.mxu0 %v644
    %1626 = vmatpush.msra.mxu0 %v640
    %1627 = vmatpush.msra.mxu0 %v636
    %1628 = vmatpush.msra.mxu0 %v632
    %1629 = vmatpush.msra.mxu0 %v628
    %1630 = vmatpush.msra.mxu0 %v624
    %1631 = vmatpush.msra.mxu0 %v620
    %1632 = vmatpush.msra.mxu0 %v616
    %1633 = vmatpush.msra.mxu0 %v612
    %1634 = vmatpush.msra.mxu0 %v608
    %1635 = vmatpush.msra.mxu0 %v604
    %1636 = vmatpush.msra.mxu0 %v600
    %1637 = vmatpush.msra.mxu0 %v596
    %1638 = vmatpush.msra.mxu0 %v592
    %1639 = vmatpush.msra.mxu0 %v588
    %1640 = vmatmul.f32.gmra.mxu0 %v1455
    %v1641 = vpop.f32.mrf.mxu0
    %v1642 = vadd.f32 %v1622, %v1641
    %1643 = vdwg.mxu0
    %1644 = vmatpush.msra.mxu0 %v585
    %1645 = vmatpush.msra.mxu0 %v581
    %1646 = vmatpush.msra.mxu0 %v577
    %1647 = vmatpush.msra.mxu0 %v573
    %1648 = vmatpush.msra.mxu0 %v569
    %1649 = vmatpush.msra.mxu0 %v565
    %1650 = vmatpush.msra.mxu0 %v561
    %1651 = vmatpush.msra.mxu0 %v557
    %1652 = vmatpush.msra.mxu0 %v553
    %1653 = vmatpush.msra.mxu0 %v549
    %1654 = vmatpush.msra.mxu0 %v545
    %1655 = vmatpush.msra.mxu0 %v541
    %1656 = vmatpush.msra.mxu0 %v537
    %1657 = vmatpush.msra.mxu0 %v533
    %1658 = vmatpush.msra.mxu0 %v529
    %1659 = vmatpush.msra.mxu0 %v525
    %1660 = vmatmul.f32.gmra.mxu0 %v1603
    %v1661 = vpop.f32.mrf.mxu0
    %v1662 = vadd.f32 %v1446, %v1661
    %1663 = vdwg.mxu0
    %1664 = vmatpush.msra.mxu0 %v649
    %1665 = vmatpush.msra.mxu0 %v645
    %1666 = vmatpush.msra.mxu0 %v641
    %1667 = vmatpush.msra.mxu0 %v637
    %1668 = vmatpush.msra.mxu0 %v633
    %1669 = vmatpush.msra.mxu0 %v629
    %1670 = vmatpush.msra.mxu0 %v625
    %1671 = vmatpush.msra.mxu0 %v621
    %1672 = vmatpush.msra.mxu0 %v617
    %1673 = vmatpush.msra.mxu0 %v613
    %1674 = vmatpush.msra.mxu0 %v609
    %1675 = vmatpush.msra.mxu0 %v605
    %1676 = vmatpush.msra.mxu0 %v601
    %1677 = vmatpush.msra.mxu0 %v597
    %1678 = vmatpush.msra.mxu0 %v593
    %1679 = vmatpush.msra.mxu0 %v589
    %1680 = vmatmul.f32.gmra.mxu0 %v1455
    %v1681 = vpop.f32.mrf.mxu0
    %v1682 = vadd.f32 %v1662, %v1681
    %1683 = vdwg.mxu0
    %1684 = vmatpush.msra.mxu0 %v586
    %1685 = vmatpush.msra.mxu0 %v582
    %1686 = vmatpush.msra.mxu0 %v578
    %1687 = vmatpush.msra.mxu0 %v574
    %1688 = vmatpush.msra.mxu0 %v570
    %1689 = vmatpush.msra.mxu0 %v566
    %1690 = vmatpush.msra.mxu0 %v562
    %1691 = vmatpush.msra.mxu0 %v558
    %1692 = vmatpush.msra.mxu0 %v554
    %1693 = vmatpush.msra.mxu0 %v550
    %1694 = vmatpush.msra.mxu0 %v546
    %1695 = vmatpush.msra.mxu0 %v542
    %1696 = vmatpush.msra.mxu0 %v538
    %1697 = vmatpush.msra.mxu0 %v534
    %1698 = vmatpush.msra.mxu0 %v530
    %1699 = vmatpush.msra.mxu0 %v526
    %1700 = vmatmul.f32.gmra.mxu0 %v1603
    %v1701 = vpop.f32.mrf.mxu0
    %v1702 = vadd.f32 %v1447, %v1701
    %1703 = vdwg.mxu0
    %1704 = vmatpush.msra.mxu0 %v650
    %1705 = vmatpush.msra.mxu0 %v646
    %1706 = vmatpush.msra.mxu0 %v642
    %1707 = vmatpush.msra.mxu0 %v638
    %1708 = vmatpush.msra.mxu0 %v634
    %1709 = vmatpush.msra.mxu0 %v630
    %1710 = vmatpush.msra.mxu0 %v626
    %1711 = vmatpush.msra.mxu0 %v622
    %1712 = vmatpush.msra.mxu0 %v618
    %1713 = vmatpush.msra.mxu0 %v614
    %1714 = vmatpush.msra.mxu0 %v610
    %1715 = vmatpush.msra.mxu0 %v606
    %1716 = vmatpush.msra.mxu0 %v602
    %1717 = vmatpush.msra.mxu0 %v598
    %1718 = vmatpush.msra.mxu0 %v594
    %1719 = vmatpush.msra.mxu0 %v590
    %1720 = vmatmul.f32.gmra.mxu0 %v1455
    %v1721 = vpop.f32.mrf.mxu0
    %v1722 = vadd.f32 %v1702, %v1721
    %1723 = vdwg.mxu0
    %1724 = vmatpush.msra.mxu0 %v587
    %1725 = vmatpush.msra.mxu0 %v583
    %1726 = vmatpush.msra.mxu0 %v579
    %1727 = vmatpush.msra.mxu0 %v575
    %1728 = vmatpush.msra.mxu0 %v571
    %1729 = vmatpush.msra.mxu0 %v567
    %1730 = vmatpush.msra.mxu0 %v563
    %1731 = vmatpush.msra.mxu0 %v559
    %1732 = vmatpush.msra.mxu0 %v555
    %1733 = vmatpush.msra.mxu0 %v551
    %1734 = vmatpush.msra.mxu0 %v547
    %1735 = vmatpush.msra.mxu0 %v543
    %1736 = vmatpush.msra.mxu0 %v539
    %1737 = vmatpush.msra.mxu0 %v535
    %1738 = vmatpush.msra.mxu0 %v531
    %1739 = vmatpush.msra.mxu0 %v527
    %1740 = vmatmul.f32.gmra.mxu0 %v1603
    %v1741 = vpop.f32.mrf.mxu0
    %v1742 = vadd.f32 %v1448, %v1741
    %1743 = vdwg.mxu0
    %1744 = vmatpush.msra.mxu0 %v651
    %1745 = vmatpush.msra.mxu0 %v647
    %1746 = vmatpush.msra.mxu0 %v643
    %1747 = vmatpush.msra.mxu0 %v639
    %1748 = vmatpush.msra.mxu0 %v635
    %1749 = vmatpush.msra.mxu0 %v631
    %1750 = vmatpush.msra.mxu0 %v627
    %1751 = vmatpush.msra.mxu0 %v623
    %1752 = vmatpush.msra.mxu0 %v619
    %1753 = vmatpush.msra.mxu0 %v615
    %1754 = vmatpush.msra.mxu0 %v611
    %1755 = vmatpush.msra.mxu0 %v607
    %1756 = vmatpush.msra.mxu0 %v603
    %1757 = vmatpush.msra.mxu0 %v599
    %1758 = vmatpush.msra.mxu0 %v595
    %1759 = vmatpush.msra.mxu0 %v591
    %1760 = vmatmul.f32.gmra.mxu0 %v1455
    %v1761 = vpop.f32.mrf.mxu0
    %v1762 = vadd.f32 %v1742, %v1761
    %1763 = vdwg.mxu0
    %v1764 = vxor.u32 %v1642, 2147483648
    %v1765 = vxor.u32 %v1682, 2147483648
    %v1766 = vxor.u32 %v1722, 2147483648
    %v1767 = vmul.f32 %v1764, 1.442695
    %v1768 = vpow.pop %v1767
    %v1769 = vmul.f32 %v1765, 1.442695
    %v1770 = vpow.pop %v1769
    %v1771 = vmul.f32 %v1766, 1.442695
    %v1772 = vpow.pop %v1771
    %v1773 = vadd.f32 %v1768, 1.0
    %v1774 = vadd.f32 %v1770, 1.0
    %v1775 = vadd.f32 %v1772, 1.0
    %v1776 = vrcp.pop %v1773
    %v1777 = vmul.f32 %v1773, %v1776
    %v1778 = vsub.f32 1.0, %v1777
    %v1779 = vmul.f32 %v1776, %v1778
    %v1780 = vadd.f32 %v1776, %v1779
    %vm1781 = vweird.f32 %v1773
    %vm1782 = vweird.f32 %v1776
    %vm1783 = vmor %vm1781, %vm1782
    %v1784 = vsel %vm1783, %v1776, %v1780
    %v1785 = vand.u32 2147483647, %v1773
    %vm1786 = vcmp.eq.f32.partialorder %v1785, 8.507059e+37
    %v1787 = vand.u32 %v1773, 2147483648
    %v1788 = vor.u32 1.1754944e-38, %v1787
    %v1789 = vsel %vm1786, %v1788, %v1784
    %v1790 = vmul.f32 1.0, %v1789
    %v1791 = vrcp.pop %v1774
    %v1792 = vmul.f32 %v1774, %v1791
    %v1793 = vsub.f32 1.0, %v1792
    %v1794 = vmul.f32 %v1791, %v1793
    %v1795 = vadd.f32 %v1791, %v1794
    %vm1796 = vweird.f32 %v1774
    %vm1797 = vweird.f32 %v1791
    %vm1798 = vmor %vm1796, %vm1797
    %v1799 = vsel %vm1798, %v1791, %v1795
    %v1800 = vand.u32 2147483647, %v1774
    %vm1801 = vcmp.eq.f32.partialorder %v1800, 8.507059e+37
    %v1802 = vand.u32 %v1774, 2147483648
    %v1803 = vor.u32 1.1754944e-38, %v1802
    %v1804 = vsel %vm1801, %v1803, %v1799
    %v1805 = vmul.f32 1.0, %v1804
    %v1806 = vrcp.pop %v1775
    %v1807 = vmul.f32 %v1775, %v1806
    %v1808 = vsub.f32 1.0, %v1807
    %v1809 = vmul.f32 %v1806, %v1808
    %v1810 = vadd.f32 %v1806, %v1809
    %vm1811 = vweird.f32 %v1775
    %vm1812 = vweird.f32 %v1806
    %vm1813 = vmor %vm1811, %vm1812
    %v1814 = vsel %vm1813, %v1806, %v1810
    %v1815 = vand.u32 2147483647, %v1775
    %vm1816 = vcmp.eq.f32.partialorder %v1815, 8.507059e+37
    %v1817 = vand.u32 %v1775, 2147483648
    %v1818 = vor.u32 1.1754944e-38, %v1817
    %v1819 = vsel %vm1816, %v1818, %v1814
    %v1820 = vmul.f32 1.0, %v1819
    %v1821 = vtanh.pop %v1762
    %v1822 = vmul.f32 %v1805, %v1456
    %v1823 = vmul.f32 %v1790, %v1821
    %v1824 = vadd.f32 %v1822, %v1823
    %v1825 = vtanh.pop %v1824
    %v1826 = vmul.f32 %v1820, %v1825
    %1827 = vst [vmem:[#allocation2] sm:$0xff] %v1826
    %1828 = vmatpush.msra.mxu0 %v456
    %1829 = vmatpush.msra.mxu0 %v452
    %1830 = vmatpush.msra.mxu0 %v448
    %1831 = vmatpush.msra.mxu0 %v444
    %1832 = vmatpush.msra.mxu0 %v440
    %1833 = vmatpush.msra.mxu0 %v436
    %1834 = vmatpush.msra.mxu0 %v432
    %1835 = vmatpush.msra.mxu0 %v428
    %1836 = vmatpush.msra.mxu0 %v424
    %1837 = vmatpush.msra.mxu0 %v420
    %1838 = vmatpush.msra.mxu0 %v416
    %1839 = vmatpush.msra.mxu0 %v412
    %1840 = vmatpush.msra.mxu0 %v408
    %1841 = vmatpush.msra.mxu0 %v404
    %1842 = vmatpush.msra.mxu0 %v400
    %1843 = vmatpush.msra.mxu0 %v396
    %1844 = vmatmul.f32.gmra.mxu0 %v1603
    %v1845 = vpop.f32.mrf.mxu0
    %v1846 = vadd.f32 0.0, %v1845
    %1847 = vdwg.mxu0
    %1848 = vmatpush.msra.mxu0 %v457
    %1849 = vmatpush.msra.mxu0 %v453
    %1850 = vmatpush.msra.mxu0 %v449
    %1851 = vmatpush.msra.mxu0 %v445
    %1852 = vmatpush.msra.mxu0 %v441
    %1853 = vmatpush.msra.mxu0 %v437
    %1854 = vmatpush.msra.mxu0 %v433
    %1855 = vmatpush.msra.mxu0 %v429
    %1856 = vmatpush.msra.mxu0 %v425
    %1857 = vmatpush.msra.mxu0 %v421
    %1858 = vmatpush.msra.mxu0 %v417
    %1859 = vmatpush.msra.mxu0 %v413
    %1860 = vmatpush.msra.mxu0 %v409
    %1861 = vmatpush.msra.mxu0 %v405
    %1862 = vmatpush.msra.mxu0 %v401
    %1863 = vmatpush.msra.mxu0 %v397
    %1864 = vmatmul.f32.gmra.mxu0 %v1603
    %v1865 = vpop.f32.mrf.mxu0
    %v1866 = vadd.f32 0.0, %v1865
    %1867 = vdwg.mxu0
    %1868 = vmatpush.msra.mxu0 %v458
    %1869 = vmatpush.msra.mxu0 %v454
    %1870 = vmatpush.msra.mxu0 %v450
    %1871 = vmatpush.msra.mxu0 %v446
    %1872 = vmatpush.msra.mxu0 %v442
    %1873 = vmatpush.msra.mxu0 %v438
    %1874 = vmatpush.msra.mxu0 %v434
    %1875 = vmatpush.msra.mxu0 %v430
    %1876 = vmatpush.msra.mxu0 %v426
    %1877 = vmatpush.msra.mxu0 %v422
    %1878 = vmatpush.msra.mxu0 %v418
    %1879 = vmatpush.msra.mxu0 %v414
    %1880 = vmatpush.msra.mxu0 %v410
    %1881 = vmatpush.msra.mxu0 %v406
    %1882 = vmatpush.msra.mxu0 %v402
    %1883 = vmatpush.msra.mxu0 %v398
    %1884 = vmatmul.f32.gmra.mxu0 %v1603
    %v1885 = vpop.f32.mrf.mxu0
    %v1886 = vadd.f32 0.0, %v1885
    %1887 = vdwg.mxu0
    %1888 = vmatpush.msra.mxu0 %v459
    %1889 = vmatpush.msra.mxu0 %v455
    %1890 = vmatpush.msra.mxu0 %v451
    %1891 = vmatpush.msra.mxu0 %v447
    %1892 = vmatpush.msra.mxu0 %v443
    %1893 = vmatpush.msra.mxu0 %v439
    %1894 = vmatpush.msra.mxu0 %v435
    %1895 = vmatpush.msra.mxu0 %v431
    %1896 = vmatpush.msra.mxu0 %v427
    %1897 = vmatpush.msra.mxu0 %v423
    %1898 = vmatpush.msra.mxu0 %v419
    %1899 = vmatpush.msra.mxu0 %v415
    %1900 = vmatpush.msra.mxu0 %v411
    %1901 = vmatpush.msra.mxu0 %v407
    %1902 = vmatpush.msra.mxu0 %v403
    %1903 = vmatpush.msra.mxu0 %v399
    %1904 = vmatmul.f32.gmra.mxu0 %v1603
    %v1905 = vpop.f32.mrf.mxu0
    %v1906 = vadd.f32 0.0, %v1905
    %1907 = vdwg.mxu0
    %v1908 = vadd.f32 %v1177, %v1846
    %v1909 = vadd.f32 %v1259, %v1866
    %v1910 = vadd.f32 %v1341, %v1886
    %v1911 = vadd.f32 %v1423, %v1906
    %v1912 = vxor.u32 %v1908, 2147483648
    %v1913 = vxor.u32 %v1909, 2147483648
    %v1914 = vxor.u32 %v1910, 2147483648
    %v1915 = vmul.f32 %v1912, 1.442695
    %v1916 = vpow.pop %v1915
    %v1917 = vmul.f32 %v1913, 1.442695
    %v1918 = vpow.pop %v1917
    %v1919 = vmul.f32 %v1914, 1.442695
    %v1920 = vpow.pop %v1919
    %v1921 = vadd.f32 %v1916, 1.0
    %v1922 = vadd.f32 %v1918, 1.0
    %v1923 = vadd.f32 %v1920, 1.0
    %v1924 = vrcp.pop %v1921
    %v1925 = vmul.f32 %v1921, %v1924
    %v1926 = vsub.f32 1.0, %v1925
    %v1927 = vmul.f32 %v1924, %v1926
    %v1928 = vadd.f32 %v1924, %v1927
    %vm1929 = vweird.f32 %v1921
    %vm1930 = vweird.f32 %v1924
    %vm1931 = vmor %vm1929, %vm1930
    %v1932 = vsel %vm1931, %v1924, %v1928
    %v1933 = vand.u32 2147483647, %v1921
    %vm1934 = vcmp.eq.f32.partialorder %v1933, 8.507059e+37
    %v1935 = vand.u32 %v1921, 2147483648
    %v1936 = vor.u32 1.1754944e-38, %v1935
    %v1937 = vsel %vm1934, %v1936, %v1932
    %v1938 = vmul.f32 1.0, %v1937
    %v1939 = vrcp.pop %v1922
    %v1940 = vmul.f32 %v1922, %v1939
    %v1941 = vsub.f32 1.0, %v1940
    %v1942 = vmul.f32 %v1939, %v1941
    %v1943 = vadd.f32 %v1939, %v1942
    %vm1944 = vweird.f32 %v1922
    %vm1945 = vweird.f32 %v1939
    %vm1946 = vmor %vm1944, %vm1945
    %v1947 = vsel %vm1946, %v1939, %v1943
    %v1948 = vand.u32 2147483647, %v1922
    %vm1949 = vcmp.eq.f32.partialorder %v1948, 8.507059e+37
    %v1950 = vand.u32 %v1922, 2147483648
    %v1951 = vor.u32 1.1754944e-38, %v1950
    %v1952 = vsel %vm1949, %v1951, %v1947
    %v1953 = vmul.f32 1.0, %v1952
    %v1954 = vrcp.pop %v1923
    %v1955 = vmul.f32 %v1923, %v1954
    %v1956 = vsub.f32 1.0, %v1955
    %v1957 = vmul.f32 %v1954, %v1956
    %v1958 = vadd.f32 %v1954, %v1957
    %vm1959 = vweird.f32 %v1923
    %vm1960 = vweird.f32 %v1954
    %vm1961 = vmor %vm1959, %vm1960
    %v1962 = vsel %vm1961, %v1954, %v1958
    %v1963 = vand.u32 2147483647, %v1923
    %vm1964 = vcmp.eq.f32.partialorder %v1963, 8.507059e+37
    %v1965 = vand.u32 %v1923, 2147483648
    %v1966 = vor.u32 1.1754944e-38, %v1965
    %v1967 = vsel %vm1964, %v1966, %v1962
    %v1968 = vmul.f32 1.0, %v1967
    %v1969 = vtanh.pop %v1911
    %v1970 = vmul.f32 %v1953, %v1601
    %v1971 = vmul.f32 %v1938, %v1969
    %v1972 = vadd.f32 %v1970, %v1971
    %v1973 = vtanh.pop %v1972
    %v1974 = vmul.f32 %v1968, %v1973
    %1975 = vmatpush.msra.mxu0 %v584
    %1976 = vmatpush.msra.mxu0 %v580
    %1977 = vmatpush.msra.mxu0 %v576
    %1978 = vmatpush.msra.mxu0 %v572
    %1979 = vmatpush.msra.mxu0 %v568
    %1980 = vmatpush.msra.mxu0 %v564
    %1981 = vmatpush.msra.mxu0 %v560
    %1982 = vmatpush.msra.mxu0 %v556
    %1983 = vmatpush.msra.mxu0 %v552
    %1984 = vmatpush.msra.mxu0 %v548
    %1985 = vmatpush.msra.mxu0 %v544
    %1986 = vmatpush.msra.mxu0 %v540
    %1987 = vmatpush.msra.mxu0 %v536
    %1988 = vmatpush.msra.mxu0 %v532
    %1989 = vmatpush.msra.mxu0 %v528
    %1990 = vmatpush.msra.mxu0 %v524
    %1991 = vmatmul.f32.gmra.mxu0 %v1974
    %v1992 = vpop.f32.mrf.mxu0
    %v1993 = vadd.f32 %v1445, %v1992
    %1994 = vdwg.mxu0
    %1995 = vmatpush.msra.mxu0 %v648
    %1996 = vmatpush.msra.mxu0 %v644
    %1997 = vmatpush.msra.mxu0 %v640
    %1998 = vmatpush.msra.mxu0 %v636
    %1999 = vmatpush.msra.mxu0 %v632
    %2000 = vmatpush.msra.mxu0 %v628
    %2001 = vmatpush.msra.mxu0 %v624
    %2002 = vmatpush.msra.mxu0 %v620
    %2003 = vmatpush.msra.mxu0 %v616
    %2004 = vmatpush.msra.mxu0 %v612
    %2005 = vmatpush.msra.mxu0 %v608
    %2006 = vmatpush.msra.mxu0 %v604
    %2007 = vmatpush.msra.mxu0 %v600
    %2008 = vmatpush.msra.mxu0 %v596
    %2009 = vmatpush.msra.mxu0 %v592
    %2010 = vmatpush.msra.mxu0 %v588
    %2011 = vmatmul.f32.gmra.mxu0 %v1826
    %v2012 = vpop.f32.mrf.mxu0
    %v2013 = vadd.f32 %v1993, %v2012
    %2014 = vdwg.mxu0
    %2015 = vmatpush.msra.mxu0 %v585
    %2016 = vmatpush.msra.mxu0 %v581
    %2017 = vmatpush.msra.mxu0 %v577
    %2018 = vmatpush.msra.mxu0 %v573
    %2019 = vmatpush.msra.mxu0 %v569
    %2020 = vmatpush.msra.mxu0 %v565
    %2021 = vmatpush.msra.mxu0 %v561
    %2022 = vmatpush.msra.mxu0 %v557
    %2023 = vmatpush.msra.mxu0 %v553
    %2024 = vmatpush.msra.mxu0 %v549
    %2025 = vmatpush.msra.mxu0 %v545
    %2026 = vmatpush.msra.mxu0 %v541
    %2027 = vmatpush.msra.mxu0 %v537
    %2028 = vmatpush.msra.mxu0 %v533
    %2029 = vmatpush.msra.mxu0 %v529
    %2030 = vmatpush.msra.mxu0 %v525
    %2031 = vmatmul.f32.gmra.mxu0 %v1974
    %v2032 = vpop.f32.mrf.mxu0
    %v2033 = vadd.f32 %v1446, %v2032
    %2034 = vdwg.mxu0
    %2035 = vmatpush.msra.mxu0 %v649
    %2036 = vmatpush.msra.mxu0 %v645
    %2037 = vmatpush.msra.mxu0 %v641
    %2038 = vmatpush.msra.mxu0 %v637
    %2039 = vmatpush.msra.mxu0 %v633
    %2040 = vmatpush.msra.mxu0 %v629
    %2041 = vmatpush.msra.mxu0 %v625
    %2042 = vmatpush.msra.mxu0 %v621
    %2043 = vmatpush.msra.mxu0 %v617
    %2044 = vmatpush.msra.mxu0 %v613
    %2045 = vmatpush.msra.mxu0 %v609
    %2046 = vmatpush.msra.mxu0 %v605
    %2047 = vmatpush.msra.mxu0 %v601
    %2048 = vmatpush.msra.mxu0 %v597
    %2049 = vmatpush.msra.mxu0 %v593
    %2050 = vmatpush.msra.mxu0 %v589
    %2051 = vmatmul.f32.gmra.mxu0 %v1826
    %v2052 = vpop.f32.mrf.mxu0
    %v2053 = vadd.f32 %v2033, %v2052
    %2054 = vdwg.mxu0
    %2055 = vmatpush.msra.mxu0 %v586
    %2056 = vmatpush.msra.mxu0 %v582
    %2057 = vmatpush.msra.mxu0 %v578
    %2058 = vmatpush.msra.mxu0 %v574
    %2059 = vmatpush.msra.mxu0 %v570
    %2060 = vmatpush.msra.mxu0 %v566
    %2061 = vmatpush.msra.mxu0 %v562
    %2062 = vmatpush.msra.mxu0 %v558
    %2063 = vmatpush.msra.mxu0 %v554
    %2064 = vmatpush.msra.mxu0 %v550
    %2065 = vmatpush.msra.mxu0 %v546
    %2066 = vmatpush.msra.mxu0 %v542
    %2067 = vmatpush.msra.mxu0 %v538
    %2068 = vmatpush.msra.mxu0 %v534
    %2069 = vmatpush.msra.mxu0 %v530
    %2070 = vmatpush.msra.mxu0 %v526
    %2071 = vmatmul.f32.gmra.mxu0 %v1974
    %v2072 = vpop.f32.mrf.mxu0
    %v2073 = vadd.f32 %v1447, %v2072
    %2074 = vdwg.mxu0
    %2075 = vmatpush.msra.mxu0 %v650
    %2076 = vmatpush.msra.mxu0 %v646
    %2077 = vmatpush.msra.mxu0 %v642
    %2078 = vmatpush.msra.mxu0 %v638
    %2079 = vmatpush.msra.mxu0 %v634
    %2080 = vmatpush.msra.mxu0 %v630
    %2081 = vmatpush.msra.mxu0 %v626
    %2082 = vmatpush.msra.mxu0 %v622
    %2083 = vmatpush.msra.mxu0 %v618
    %2084 = vmatpush.msra.mxu0 %v614
    %2085 = vmatpush.msra.mxu0 %v610
    %2086 = vmatpush.msra.mxu0 %v606
    %2087 = vmatpush.msra.mxu0 %v602
    %2088 = vmatpush.msra.mxu0 %v598
    %2089 = vmatpush.msra.mxu0 %v594
    %2090 = vmatpush.msra.mxu0 %v590
    %2091 = vmatmul.f32.gmra.mxu0 %v1826
    %v2092 = vpop.f32.mrf.mxu0
    %v2093 = vadd.f32 %v2073, %v2092
    %2094 = vdwg.mxu0
    %2095 = vmatpush.msra.mxu0 %v587
    %2096 = vmatpush.msra.mxu0 %v583
    %2097 = vmatpush.msra.mxu0 %v579
    %2098 = vmatpush.msra.mxu0 %v575
    %2099 = vmatpush.msra.mxu0 %v571
    %2100 = vmatpush.msra.mxu0 %v567
    %2101 = vmatpush.msra.mxu0 %v563
    %2102 = vmatpush.msra.mxu0 %v559
    %2103 = vmatpush.msra.mxu0 %v555
    %2104 = vmatpush.msra.mxu0 %v551
    %2105 = vmatpush.msra.mxu0 %v547
    %2106 = vmatpush.msra.mxu0 %v543
    %2107 = vmatpush.msra.mxu0 %v539
    %2108 = vmatpush.msra.mxu0 %v535
    %2109 = vmatpush.msra.mxu0 %v531
    %2110 = vmatpush.msra.mxu0 %v527
    %2111 = vmatmul.f32.gmra.mxu0 %v1974
    %v2112 = vpop.f32.mrf.mxu0
    %v2113 = vadd.f32 %v1448, %v2112
    %2114 = vdwg.mxu0
    %2115 = vmatpush.msra.mxu0 %v651
    %2116 = vmatpush.msra.mxu0 %v647
    %2117 = vmatpush.msra.mxu0 %v643
    %2118 = vmatpush.msra.mxu0 %v639
    %2119 = vmatpush.msra.mxu0 %v635
    %2120 = vmatpush.msra.mxu0 %v631
    %2121 = vmatpush.msra.mxu0 %v627
    %2122 = vmatpush.msra.mxu0 %v623
    %2123 = vmatpush.msra.mxu0 %v619
    %2124 = vmatpush.msra.mxu0 %v615
    %2125 = vmatpush.msra.mxu0 %v611
    %2126 = vmatpush.msra.mxu0 %v607
    %2127 = vmatpush.msra.mxu0 %v603
    %2128 = vmatpush.msra.mxu0 %v599
    %2129 = vmatpush.msra.mxu0 %v595
    %2130 = vmatpush.msra.mxu0 %v591
    %2131 = vmatmul.f32.gmra.mxu0 %v1826
    %v2132 = vpop.f32.mrf.mxu0
    %v2133 = vadd.f32 %v2113, %v2132
    %2134 = vdwg.mxu0
    %v2135 = vxor.u32 %v2013, 2147483648
    %v2136 = vxor.u32 %v2053, 2147483648
    %v2137 = vxor.u32 %v2093, 2147483648
    %v2138 = vmul.f32 %v2135, 1.442695
    %v2139 = vpow.pop %v2138
    %v2140 = vmul.f32 %v2136, 1.442695
    %v2141 = vpow.pop %v2140
    %v2142 = vmul.f32 %v2137, 1.442695
    %v2143 = vpow.pop %v2142
    %v2144 = vadd.f32 %v2139, 1.0
    %v2145 = vadd.f32 %v2141, 1.0
    %v2146 = vadd.f32 %v2143, 1.0
    %v2147 = vrcp.pop %v2144
    %v2148 = vmul.f32 %v2144, %v2147
    %v2149 = vsub.f32 1.0, %v2148
    %v2150 = vmul.f32 %v2147, %v2149
    %v2151 = vadd.f32 %v2147, %v2150
    %vm2152 = vweird.f32 %v2144
    %vm2153 = vweird.f32 %v2147
    %vm2154 = vmor %vm2152, %vm2153
    %v2155 = vsel %vm2154, %v2147, %v2151
    %v2156 = vand.u32 2147483647, %v2144
    %vm2157 = vcmp.eq.f32.partialorder %v2156, 8.507059e+37
    %v2158 = vand.u32 %v2144, 2147483648
    %v2159 = vor.u32 1.1754944e-38, %v2158
    %v2160 = vsel %vm2157, %v2159, %v2155
    %v2161 = vmul.f32 1.0, %v2160
    %v2162 = vrcp.pop %v2145
    %v2163 = vmul.f32 %v2145, %v2162
    %v2164 = vsub.f32 1.0, %v2163
    %v2165 = vmul.f32 %v2162, %v2164
    %v2166 = vadd.f32 %v2162, %v2165
    %vm2167 = vweird.f32 %v2145
    %vm2168 = vweird.f32 %v2162
    %vm2169 = vmor %vm2167, %vm2168
    %v2170 = vsel %vm2169, %v2162, %v2166
    %v2171 = vand.u32 2147483647, %v2145
    %vm2172 = vcmp.eq.f32.partialorder %v2171, 8.507059e+37
    %v2173 = vand.u32 %v2145, 2147483648
    %v2174 = vor.u32 1.1754944e-38, %v2173
    %v2175 = vsel %vm2172, %v2174, %v2170
    %v2176 = vmul.f32 1.0, %v2175
    %v2177 = vrcp.pop %v2146
    %v2178 = vmul.f32 %v2146, %v2177
    %v2179 = vsub.f32 1.0, %v2178
    %v2180 = vmul.f32 %v2177, %v2179
    %v2181 = vadd.f32 %v2177, %v2180
    %vm2182 = vweird.f32 %v2146
    %vm2183 = vweird.f32 %v2177
    %vm2184 = vmor %vm2182, %vm2183
    %v2185 = vsel %vm2184, %v2177, %v2181
    %v2186 = vand.u32 2147483647, %v2146
    %vm2187 = vcmp.eq.f32.partialorder %v2186, 8.507059e+37
    %v2188 = vand.u32 %v2146, 2147483648
    %v2189 = vor.u32 1.1754944e-38, %v2188
    %v2190 = vsel %vm2187, %v2189, %v2185
    %v2191 = vmul.f32 1.0, %v2190
    %v2192 = vtanh.pop %v2133
    %v2193 = vmul.f32 %v2176, %v1824
    %v2194 = vmul.f32 %v2161, %v2192
    %v2195 = vadd.f32 %v2193, %v2194
    %v2196 = vtanh.pop %v2195
    %v2197 = vmul.f32 %v2191, %v2196
    %2198 = vst [vmem:[#allocation2 + $0x8] sm:$0xff] %v2197
    %2199 = vmatpush.msra.mxu0 %v456
    %2200 = vmatpush.msra.mxu0 %v452
    %2201 = vmatpush.msra.mxu0 %v448
    %2202 = vmatpush.msra.mxu0 %v444
    %2203 = vmatpush.msra.mxu0 %v440
    %2204 = vmatpush.msra.mxu0 %v436
    %2205 = vmatpush.msra.mxu0 %v432
    %2206 = vmatpush.msra.mxu0 %v428
    %2207 = vmatpush.msra.mxu0 %v424
    %2208 = vmatpush.msra.mxu0 %v420
    %2209 = vmatpush.msra.mxu0 %v416
    %2210 = vmatpush.msra.mxu0 %v412
    %2211 = vmatpush.msra.mxu0 %v408
    %2212 = vmatpush.msra.mxu0 %v404
    %2213 = vmatpush.msra.mxu0 %v400
    %2214 = vmatpush.msra.mxu0 %v396
    %2215 = vmatmul.f32.gmra.mxu0 %v1974
    %v2216 = vpop.f32.mrf.mxu0
    %v2217 = vadd.f32 0.0, %v2216
    %2218 = vdwg.mxu0
    %2219 = vmatpush.msra.mxu0 %v457
    %2220 = vmatpush.msra.mxu0 %v453
    %2221 = vmatpush.msra.mxu0 %v449
    %2222 = vmatpush.msra.mxu0 %v445
    %2223 = vmatpush.msra.mxu0 %v441
    %2224 = vmatpush.msra.mxu0 %v437
    %2225 = vmatpush.msra.mxu0 %v433
    %2226 = vmatpush.msra.mxu0 %v429
    %2227 = vmatpush.msra.mxu0 %v425
    %2228 = vmatpush.msra.mxu0 %v421
    %2229 = vmatpush.msra.mxu0 %v417
    %2230 = vmatpush.msra.mxu0 %v413
    %2231 = vmatpush.msra.mxu0 %v409
    %2232 = vmatpush.msra.mxu0 %v405
    %2233 = vmatpush.msra.mxu0 %v401
    %2234 = vmatpush.msra.mxu0 %v397
    %2235 = vmatmul.f32.gmra.mxu0 %v1974
    %v2236 = vpop.f32.mrf.mxu0
    %v2237 = vadd.f32 0.0, %v2236
    %2238 = vdwg.mxu0
    %2239 = vmatpush.msra.mxu0 %v458
    %2240 = vmatpush.msra.mxu0 %v454
    %2241 = vmatpush.msra.mxu0 %v450
    %2242 = vmatpush.msra.mxu0 %v446
    %2243 = vmatpush.msra.mxu0 %v442
    %2244 = vmatpush.msra.mxu0 %v438
    %2245 = vmatpush.msra.mxu0 %v434
    %2246 = vmatpush.msra.mxu0 %v430
    %2247 = vmatpush.msra.mxu0 %v426
    %2248 = vmatpush.msra.mxu0 %v422
    %2249 = vmatpush.msra.mxu0 %v418
    %2250 = vmatpush.msra.mxu0 %v414
    %2251 = vmatpush.msra.mxu0 %v410
    %2252 = vmatpush.msra.mxu0 %v406
    %2253 = vmatpush.msra.mxu0 %v402
    %2254 = vmatpush.msra.mxu0 %v398
    %2255 = vmatmul.f32.gmra.mxu0 %v1974
    %v2256 = vpop.f32.mrf.mxu0
    %v2257 = vadd.f32 0.0, %v2256
    %2258 = vdwg.mxu0
    %2259 = vmatpush.msra.mxu0 %v459
    %2260 = vmatpush.msra.mxu0 %v455
    %2261 = vmatpush.msra.mxu0 %v451
    %2262 = vmatpush.msra.mxu0 %v447
    %2263 = vmatpush.msra.mxu0 %v443
    %2264 = vmatpush.msra.mxu0 %v439
    %2265 = vmatpush.msra.mxu0 %v435
    %2266 = vmatpush.msra.mxu0 %v431
    %2267 = vmatpush.msra.mxu0 %v427
    %2268 = vmatpush.msra.mxu0 %v423
    %2269 = vmatpush.msra.mxu0 %v419
    %2270 = vmatpush.msra.mxu0 %v415
    %2271 = vmatpush.msra.mxu0 %v411
    %2272 = vmatpush.msra.mxu0 %v407
    %2273 = vmatpush.msra.mxu0 %v403
    %2274 = vmatpush.msra.mxu0 %v399
    %2275 = vmatmul.f32.gmra.mxu0 %v1974
    %v2276 = vpop.f32.mrf.mxu0
    %v2277 = vadd.f32 0.0, %v2276
    %2278 = vdwg.mxu0
    %v2279 = vadd.f32 %v1180, %v2217
    %v2280 = vadd.f32 %v1262, %v2237
    %v2281 = vadd.f32 %v1344, %v2257
    %v2282 = vadd.f32 %v1426, %v2277
    %v2283 = vxor.u32 %v2279, 2147483648
    %v2284 = vxor.u32 %v2280, 2147483648
    %v2285 = vxor.u32 %v2281, 2147483648
    %v2286 = vmul.f32 %v2283, 1.442695
    %v2287 = vpow.pop %v2286
    %v2288 = vmul.f32 %v2284, 1.442695
    %v2289 = vpow.pop %v2288
    %v2290 = vmul.f32 %v2285, 1.442695
    %v2291 = vpow.pop %v2290
    %v2292 = vadd.f32 %v2287, 1.0
    %v2293 = vadd.f32 %v2289, 1.0
    %v2294 = vadd.f32 %v2291, 1.0
    %v2295 = vrcp.pop %v2292
    %v2296 = vmul.f32 %v2292, %v2295
    %v2297 = vsub.f32 1.0, %v2296
    %v2298 = vmul.f32 %v2295, %v2297
    %v2299 = vadd.f32 %v2295, %v2298
    %vm2300 = vweird.f32 %v2292
    %vm2301 = vweird.f32 %v2295
    %vm2302 = vmor %vm2300, %vm2301
    %v2303 = vsel %vm2302, %v2295, %v2299
    %v2304 = vand.u32 2147483647, %v2292
    %vm2305 = vcmp.eq.f32.partialorder %v2304, 8.507059e+37
    %v2306 = vand.u32 %v2292, 2147483648
    %v2307 = vor.u32 1.1754944e-38, %v2306
    %v2308 = vsel %vm2305, %v2307, %v2303
    %v2309 = vmul.f32 1.0, %v2308
    %v2310 = vrcp.pop %v2293
    %v2311 = vmul.f32 %v2293, %v2310
    %v2312 = vsub.f32 1.0, %v2311
    %v2313 = vmul.f32 %v2310, %v2312
    %v2314 = vadd.f32 %v2310, %v2313
    %vm2315 = vweird.f32 %v2293
    %vm2316 = vweird.f32 %v2310
    %vm2317 = vmor %vm2315, %vm2316
    %v2318 = vsel %vm2317, %v2310, %v2314
    %v2319 = vand.u32 2147483647, %v2293
    %vm2320 = vcmp.eq.f32.partialorder %v2319, 8.507059e+37
    %v2321 = vand.u32 %v2293, 2147483648
    %v2322 = vor.u32 1.1754944e-38, %v2321
    %v2323 = vsel %vm2320, %v2322, %v2318
    %v2324 = vmul.f32 1.0, %v2323
    %v2325 = vrcp.pop %v2294
    %v2326 = vmul.f32 %v2294, %v2325
    %v2327 = vsub.f32 1.0, %v2326
    %v2328 = vmul.f32 %v2325, %v2327
    %v2329 = vadd.f32 %v2325, %v2328
    %vm2330 = vweird.f32 %v2294
    %vm2331 = vweird.f32 %v2325
    %vm2332 = vmor %vm2330, %vm2331
    %v2333 = vsel %vm2332, %v2325, %v2329
    %v2334 = vand.u32 2147483647, %v2294
    %vm2335 = vcmp.eq.f32.partialorder %v2334, 8.507059e+37
    %v2336 = vand.u32 %v2294, 2147483648
    %v2337 = vor.u32 1.1754944e-38, %v2336
    %v2338 = vsel %vm2335, %v2337, %v2333
    %v2339 = vmul.f32 1.0, %v2338
    %v2340 = vtanh.pop %v2282
    %v2341 = vmul.f32 %v2324, %v1972
    %v2342 = vmul.f32 %v2309, %v2340
    %v2343 = vadd.f32 %v2341, %v2342
    %v2344 = vtanh.pop %v2343
    %v2345 = vmul.f32 %v2339, %v2344
    %2346 = vmatpush.msra.mxu0 %v584
    %2347 = vmatpush.msra.mxu0 %v580
    %2348 = vmatpush.msra.mxu0 %v576
    %2349 = vmatpush.msra.mxu0 %v572
    %2350 = vmatpush.msra.mxu0 %v568
    %2351 = vmatpush.msra.mxu0 %v564
    %2352 = vmatpush.msra.mxu0 %v560
    %2353 = vmatpush.msra.mxu0 %v556
    %2354 = vmatpush.msra.mxu0 %v552
    %2355 = vmatpush.msra.mxu0 %v548
    %2356 = vmatpush.msra.mxu0 %v544
    %2357 = vmatpush.msra.mxu0 %v540
    %2358 = vmatpush.msra.mxu0 %v536
    %2359 = vmatpush.msra.mxu0 %v532
    %2360 = vmatpush.msra.mxu0 %v528
    %2361 = vmatpush.msra.mxu0 %v524
    %2362 = vmatmul.f32.gmra.mxu0 %v2345
    %v2363 = vpop.f32.mrf.mxu0
    %v2364 = vadd.f32 %v1445, %v2363
    %2365 = vdwg.mxu0
    %2366 = vmatpush.msra.mxu0 %v648
    %2367 = vmatpush.msra.mxu0 %v644
    %2368 = vmatpush.msra.mxu0 %v640
    %2369 = vmatpush.msra.mxu0 %v636
    %2370 = vmatpush.msra.mxu0 %v632
    %2371 = vmatpush.msra.mxu0 %v628
    %2372 = vmatpush.msra.mxu0 %v624
    %2373 = vmatpush.msra.mxu0 %v620
    %2374 = vmatpush.msra.mxu0 %v616
    %2375 = vmatpush.msra.mxu0 %v612
    %2376 = vmatpush.msra.mxu0 %v608
    %2377 = vmatpush.msra.mxu0 %v604
    %2378 = vmatpush.msra.mxu0 %v600
    %2379 = vmatpush.msra.mxu0 %v596
    %2380 = vmatpush.msra.mxu0 %v592
    %2381 = vmatpush.msra.mxu0 %v588
    %2382 = vmatmul.f32.gmra.mxu0 %v2197
    %v2383 = vpop.f32.mrf.mxu0
    %v2384 = vadd.f32 %v2364, %v2383
    %2385 = vdwg.mxu0
    %2386 = vmatpush.msra.mxu0 %v585
    %2387 = vmatpush.msra.mxu0 %v581
    %2388 = vmatpush.msra.mxu0 %v577
    %2389 = vmatpush.msra.mxu0 %v573
    %2390 = vmatpush.msra.mxu0 %v569
    %2391 = vmatpush.msra.mxu0 %v565
    %2392 = vmatpush.msra.mxu0 %v561
    %2393 = vmatpush.msra.mxu0 %v557
    %2394 = vmatpush.msra.mxu0 %v553
    %2395 = vmatpush.msra.mxu0 %v549
    %2396 = vmatpush.msra.mxu0 %v545
    %2397 = vmatpush.msra.mxu0 %v541
    %2398 = vmatpush.msra.mxu0 %v537
    %2399 = vmatpush.msra.mxu0 %v533
    %2400 = vmatpush.msra.mxu0 %v529
    %2401 = vmatpush.msra.mxu0 %v525
    %2402 = vmatmul.f32.gmra.mxu0 %v2345
    %v2403 = vpop.f32.mrf.mxu0
    %v2404 = vadd.f32 %v1446, %v2403
    %2405 = vdwg.mxu0
    %2406 = vmatpush.msra.mxu0 %v649
    %2407 = vmatpush.msra.mxu0 %v645
    %2408 = vmatpush.msra.mxu0 %v641
    %2409 = vmatpush.msra.mxu0 %v637
    %2410 = vmatpush.msra.mxu0 %v633
    %2411 = vmatpush.msra.mxu0 %v629
    %2412 = vmatpush.msra.mxu0 %v625
    %2413 = vmatpush.msra.mxu0 %v621
    %2414 = vmatpush.msra.mxu0 %v617
    %2415 = vmatpush.msra.mxu0 %v613
    %2416 = vmatpush.msra.mxu0 %v609
    %2417 = vmatpush.msra.mxu0 %v605
    %2418 = vmatpush.msra.mxu0 %v601
    %2419 = vmatpush.msra.mxu0 %v597
    %2420 = vmatpush.msra.mxu0 %v593
    %2421 = vmatpush.msra.mxu0 %v589
    %2422 = vmatmul.f32.gmra.mxu0 %v2197
    %v2423 = vpop.f32.mrf.mxu0
    %v2424 = vadd.f32 %v2404, %v2423
    %2425 = vdwg.mxu0
    %2426 = vmatpush.msra.mxu0 %v586
    %2427 = vmatpush.msra.mxu0 %v582
    %2428 = vmatpush.msra.mxu0 %v578
    %2429 = vmatpush.msra.mxu0 %v574
    %2430 = vmatpush.msra.mxu0 %v570
    %2431 = vmatpush.msra.mxu0 %v566
    %2432 = vmatpush.msra.mxu0 %v562
    %2433 = vmatpush.msra.mxu0 %v558
    %2434 = vmatpush.msra.mxu0 %v554
    %2435 = vmatpush.msra.mxu0 %v550
    %2436 = vmatpush.msra.mxu0 %v546
    %2437 = vmatpush.msra.mxu0 %v542
    %2438 = vmatpush.msra.mxu0 %v538
    %2439 = vmatpush.msra.mxu0 %v534
    %2440 = vmatpush.msra.mxu0 %v530
    %2441 = vmatpush.msra.mxu0 %v526
    %2442 = vmatmul.f32.gmra.mxu0 %v2345
    %v2443 = vpop.f32.mrf.mxu0
    %v2444 = vadd.f32 %v1447, %v2443
    %2445 = vdwg.mxu0
    %2446 = vmatpush.msra.mxu0 %v650
    %2447 = vmatpush.msra.mxu0 %v646
    %2448 = vmatpush.msra.mxu0 %v642
    %2449 = vmatpush.msra.mxu0 %v638
    %2450 = vmatpush.msra.mxu0 %v634
    %2451 = vmatpush.msra.mxu0 %v630
    %2452 = vmatpush.msra.mxu0 %v626
    %2453 = vmatpush.msra.mxu0 %v622
    %2454 = vmatpush.msra.mxu0 %v618
    %2455 = vmatpush.msra.mxu0 %v614
    %2456 = vmatpush.msra.mxu0 %v610
    %2457 = vmatpush.msra.mxu0 %v606
    %2458 = vmatpush.msra.mxu0 %v602
    %2459 = vmatpush.msra.mxu0 %v598
    %2460 = vmatpush.msra.mxu0 %v594
    %2461 = vmatpush.msra.mxu0 %v590
    %2462 = vmatmul.f32.gmra.mxu0 %v2197
    %v2463 = vpop.f32.mrf.mxu0
    %v2464 = vadd.f32 %v2444, %v2463
    %2465 = vdwg.mxu0
    %2466 = vmatpush.msra.mxu0 %v587
    %2467 = vmatpush.msra.mxu0 %v583
    %2468 = vmatpush.msra.mxu0 %v579
    %2469 = vmatpush.msra.mxu0 %v575
    %2470 = vmatpush.msra.mxu0 %v571
    %2471 = vmatpush.msra.mxu0 %v567
    %2472 = vmatpush.msra.mxu0 %v563
    %2473 = vmatpush.msra.mxu0 %v559
    %2474 = vmatpush.msra.mxu0 %v555
    %2475 = vmatpush.msra.mxu0 %v551
    %2476 = vmatpush.msra.mxu0 %v547
    %2477 = vmatpush.msra.mxu0 %v543
    %2478 = vmatpush.msra.mxu0 %v539
    %2479 = vmatpush.msra.mxu0 %v535
    %2480 = vmatpush.msra.mxu0 %v531
    %2481 = vmatpush.msra.mxu0 %v527
    %2482 = vmatmul.f32.gmra.mxu0 %v2345
    %v2483 = vpop.f32.mrf.mxu0
    %v2484 = vadd.f32 %v1448, %v2483
    %2485 = vdwg.mxu0
    %2486 = vmatpush.msra.mxu0 %v651
    %2487 = vmatpush.msra.mxu0 %v647
    %2488 = vmatpush.msra.mxu0 %v643
    %2489 = vmatpush.msra.mxu0 %v639
    %2490 = vmatpush.msra.mxu0 %v635
    %2491 = vmatpush.msra.mxu0 %v631
    %2492 = vmatpush.msra.mxu0 %v627
    %2493 = vmatpush.msra.mxu0 %v623
    %2494 = vmatpush.msra.mxu0 %v619
    %2495 = vmatpush.msra.mxu0 %v615
    %2496 = vmatpush.msra.mxu0 %v611
    %2497 = vmatpush.msra.mxu0 %v607
    %2498 = vmatpush.msra.mxu0 %v603
    %2499 = vmatpush.msra.mxu0 %v599
    %2500 = vmatpush.msra.mxu0 %v595
    %2501 = vmatpush.msra.mxu0 %v591
    %2502 = vmatmul.f32.gmra.mxu0 %v2197
    %v2503 = vpop.f32.mrf.mxu0
    %v2504 = vadd.f32 %v2484, %v2503
    %2505 = vdwg.mxu0
    %v2506 = vxor.u32 %v2384, 2147483648
    %v2507 = vxor.u32 %v2424, 2147483648
    %v2508 = vxor.u32 %v2464, 2147483648
    %v2509 = vmul.f32 %v2506, 1.442695
    %v2510 = vpow.pop %v2509
    %v2511 = vmul.f32 %v2507, 1.442695
    %v2512 = vpow.pop %v2511
    %v2513 = vmul.f32 %v2508, 1.442695
    %v2514 = vpow.pop %v2513
    %v2515 = vadd.f32 %v2510, 1.0
    %v2516 = vadd.f32 %v2512, 1.0
    %v2517 = vadd.f32 %v2514, 1.0
    %v2518 = vrcp.pop %v2515
    %v2519 = vmul.f32 %v2515, %v2518
    %v2520 = vsub.f32 1.0, %v2519
    %v2521 = vmul.f32 %v2518, %v2520
    %v2522 = vadd.f32 %v2518, %v2521
    %vm2523 = vweird.f32 %v2515
    %vm2524 = vweird.f32 %v2518
    %vm2525 = vmor %vm2523, %vm2524
    %v2526 = vsel %vm2525, %v2518, %v2522
    %v2527 = vand.u32 2147483647, %v2515
    %vm2528 = vcmp.eq.f32.partialorder %v2527, 8.507059e+37
    %v2529 = vand.u32 %v2515, 2147483648
    %v2530 = vor.u32 1.1754944e-38, %v2529
    %v2531 = vsel %vm2528, %v2530, %v2526
    %v2532 = vmul.f32 1.0, %v2531
    %v2533 = vrcp.pop %v2516
    %v2534 = vmul.f32 %v2516, %v2533
    %v2535 = vsub.f32 1.0, %v2534
    %v2536 = vmul.f32 %v2533, %v2535
    %v2537 = vadd.f32 %v2533, %v2536
    %vm2538 = vweird.f32 %v2516
    %vm2539 = vweird.f32 %v2533
    %vm2540 = vmor %vm2538, %vm2539
    %v2541 = vsel %vm2540, %v2533, %v2537
    %v2542 = vand.u32 2147483647, %v2516
    %vm2543 = vcmp.eq.f32.partialorder %v2542, 8.507059e+37
    %v2544 = vand.u32 %v2516, 2147483648
    %v2545 = vor.u32 1.1754944e-38, %v2544
    %v2546 = vsel %vm2543, %v2545, %v2541
    %v2547 = vmul.f32 1.0, %v2546
    %v2548 = vrcp.pop %v2517
    %v2549 = vmul.f32 %v2517, %v2548
    %v2550 = vsub.f32 1.0, %v2549
    %v2551 = vmul.f32 %v2548, %v2550
    %v2552 = vadd.f32 %v2548, %v2551
    %vm2553 = vweird.f32 %v2517
    %vm2554 = vweird.f32 %v2548
    %vm2555 = vmor %vm2553, %vm2554
    %v2556 = vsel %vm2555, %v2548, %v2552
    %v2557 = vand.u32 2147483647, %v2517
    %vm2558 = vcmp.eq.f32.partialorder %v2557, 8.507059e+37
    %v2559 = vand.u32 %v2517, 2147483648
    %v2560 = vor.u32 1.1754944e-38, %v2559
    %v2561 = vsel %vm2558, %v2560, %v2556
    %v2562 = vmul.f32 1.0, %v2561
    %v2563 = vtanh.pop %v2504
    %v2564 = vmul.f32 %v2547, %v2195
    %v2565 = vmul.f32 %v2532, %v2563
    %v2566 = vadd.f32 %v2564, %v2565
    %v2567 = vtanh.pop %v2566
    %v2568 = vmul.f32 %v2562, %v2567
    %2569 = vst [vmem:[#allocation2 + $0x10] sm:$0xff] %v2568
    %2570 = vmatpush.msra.mxu0 %v456
    %2571 = vmatpush.msra.mxu0 %v452
    %2572 = vmatpush.msra.mxu0 %v448
    %2573 = vmatpush.msra.mxu0 %v444
    %2574 = vmatpush.msra.mxu0 %v440
    %2575 = vmatpush.msra.mxu0 %v436
    %2576 = vmatpush.msra.mxu0 %v432
    %2577 = vmatpush.msra.mxu0 %v428
    %2578 = vmatpush.msra.mxu0 %v424
    %2579 = vmatpush.msra.mxu0 %v420
    %2580 = vmatpush.msra.mxu0 %v416
    %2581 = vmatpush.msra.mxu0 %v412
    %2582 = vmatpush.msra.mxu0 %v408
    %2583 = vmatpush.msra.mxu0 %v404
    %2584 = vmatpush.msra.mxu0 %v400
    %2585 = vmatpush.msra.mxu0 %v396
    %2586 = vmatmul.f32.gmra.mxu0 %v2345
    %v2587 = vpop.f32.mrf.mxu0
    %v2588 = vadd.f32 0.0, %v2587
    %2589 = vdwg.mxu0
    %2590 = vmatpush.msra.mxu0 %v457
    %2591 = vmatpush.msra.mxu0 %v453
    %2592 = vmatpush.msra.mxu0 %v449
    %2593 = vmatpush.msra.mxu0 %v445
    %2594 = vmatpush.msra.mxu0 %v441
    %2595 = vmatpush.msra.mxu0 %v437
    %2596 = vmatpush.msra.mxu0 %v433
    %2597 = vmatpush.msra.mxu0 %v429
    %2598 = vmatpush.msra.mxu0 %v425
    %2599 = vmatpush.msra.mxu0 %v421
    %2600 = vmatpush.msra.mxu0 %v417
    %2601 = vmatpush.msra.mxu0 %v413
    %2602 = vmatpush.msra.mxu0 %v409
    %2603 = vmatpush.msra.mxu0 %v405
    %2604 = vmatpush.msra.mxu0 %v401
    %2605 = vmatpush.msra.mxu0 %v397
    %2606 = vmatmul.f32.gmra.mxu0 %v2345
    %v2607 = vpop.f32.mrf.mxu0
    %v2608 = vadd.f32 0.0, %v2607
    %2609 = vdwg.mxu0
    %2610 = vmatpush.msra.mxu0 %v458
    %2611 = vmatpush.msra.mxu0 %v454
    %2612 = vmatpush.msra.mxu0 %v450
    %2613 = vmatpush.msra.mxu0 %v446
    %2614 = vmatpush.msra.mxu0 %v442
    %2615 = vmatpush.msra.mxu0 %v438
    %2616 = vmatpush.msra.mxu0 %v434
    %2617 = vmatpush.msra.mxu0 %v430
    %2618 = vmatpush.msra.mxu0 %v426
    %2619 = vmatpush.msra.mxu0 %v422
    %2620 = vmatpush.msra.mxu0 %v418
    %2621 = vmatpush.msra.mxu0 %v414
    %2622 = vmatpush.msra.mxu0 %v410
    %2623 = vmatpush.msra.mxu0 %v406
    %2624 = vmatpush.msra.mxu0 %v402
    %2625 = vmatpush.msra.mxu0 %v398
    %2626 = vmatmul.f32.gmra.mxu0 %v2345
    %v2627 = vpop.f32.mrf.mxu0
    %v2628 = vadd.f32 0.0, %v2627
    %2629 = vdwg.mxu0
    %2630 = vmatpush.msra.mxu0 %v459
    %2631 = vmatpush.msra.mxu0 %v455
    %2632 = vmatpush.msra.mxu0 %v451
    %2633 = vmatpush.msra.mxu0 %v447
    %2634 = vmatpush.msra.mxu0 %v443
    %2635 = vmatpush.msra.mxu0 %v439
    %2636 = vmatpush.msra.mxu0 %v435
    %2637 = vmatpush.msra.mxu0 %v431
    %2638 = vmatpush.msra.mxu0 %v427
    %2639 = vmatpush.msra.mxu0 %v423
    %2640 = vmatpush.msra.mxu0 %v419
    %2641 = vmatpush.msra.mxu0 %v415
    %2642 = vmatpush.msra.mxu0 %v411
    %2643 = vmatpush.msra.mxu0 %v407
    %2644 = vmatpush.msra.mxu0 %v403
    %2645 = vmatpush.msra.mxu0 %v399
    %2646 = vmatmul.f32.gmra.mxu0 %v2345
    %v2647 = vpop.f32.mrf.mxu0
    %v2648 = vadd.f32 0.0, %v2647
    %2649 = vdwg.mxu0
    %v2650 = vadd.f32 %v1183, %v2588
    %v2651 = vadd.f32 %v1265, %v2608
    %v2652 = vadd.f32 %v1347, %v2628
    %v2653 = vadd.f32 %v1429, %v2648
    %v2654 = vxor.u32 %v2650, 2147483648
    %v2655 = vxor.u32 %v2651, 2147483648
    %v2656 = vxor.u32 %v2652, 2147483648
    %v2657 = vmul.f32 %v2654, 1.442695
    %v2658 = vpow.pop %v2657
    %v2659 = vmul.f32 %v2655, 1.442695
    %v2660 = vpow.pop %v2659
    %v2661 = vmul.f32 %v2656, 1.442695
    %v2662 = vpow.pop %v2661
    %v2663 = vadd.f32 %v2658, 1.0
    %v2664 = vadd.f32 %v2660, 1.0
    %v2665 = vadd.f32 %v2662, 1.0
    %v2666 = vrcp.pop %v2663
    %v2667 = vmul.f32 %v2663, %v2666
    %v2668 = vsub.f32 1.0, %v2667
    %v2669 = vmul.f32 %v2666, %v2668
    %v2670 = vadd.f32 %v2666, %v2669
    %vm2671 = vweird.f32 %v2663
    %vm2672 = vweird.f32 %v2666
    %vm2673 = vmor %vm2671, %vm2672
    %v2674 = vsel %vm2673, %v2666, %v2670
    %v2675 = vand.u32 2147483647, %v2663
    %vm2676 = vcmp.eq.f32.partialorder %v2675, 8.507059e+37
    %v2677 = vand.u32 %v2663, 2147483648
    %v2678 = vor.u32 1.1754944e-38, %v2677
    %v2679 = vsel %vm2676, %v2678, %v2674
    %v2680 = vmul.f32 1.0, %v2679
    %v2681 = vrcp.pop %v2664
    %v2682 = vmul.f32 %v2664, %v2681
    %v2683 = vsub.f32 1.0, %v2682
    %v2684 = vmul.f32 %v2681, %v2683
    %v2685 = vadd.f32 %v2681, %v2684
    %vm2686 = vweird.f32 %v2664
    %vm2687 = vweird.f32 %v2681
    %vm2688 = vmor %vm2686, %vm2687
    %v2689 = vsel %vm2688, %v2681, %v2685
    %v2690 = vand.u32 2147483647, %v2664
    %vm2691 = vcmp.eq.f32.partialorder %v2690, 8.507059e+37
    %v2692 = vand.u32 %v2664, 2147483648
    %v2693 = vor.u32 1.1754944e-38, %v2692
    %v2694 = vsel %vm2691, %v2693, %v2689
    %v2695 = vmul.f32 1.0, %v2694
    %v2696 = vrcp.pop %v2665
    %v2697 = vmul.f32 %v2665, %v2696
    %v2698 = vsub.f32 1.0, %v2697
    %v2699 = vmul.f32 %v2696, %v2698
    %v2700 = vadd.f32 %v2696, %v2699
    %vm2701 = vweird.f32 %v2665
    %vm2702 = vweird.f32 %v2696
    %vm2703 = vmor %vm2701, %vm2702
    %v2704 = vsel %vm2703, %v2696, %v2700
    %v2705 = vand.u32 2147483647, %v2665
    %vm2706 = vcmp.eq.f32.partialorder %v2705, 8.507059e+37
    %v2707 = vand.u32 %v2665, 2147483648
    %v2708 = vor.u32 1.1754944e-38, %v2707
    %v2709 = vsel %vm2706, %v2708, %v2704
    %v2710 = vmul.f32 1.0, %v2709
    %v2711 = vtanh.pop %v2653
    %v2712 = vmul.f32 %v2695, %v2343
    %v2713 = vmul.f32 %v2680, %v2711
    %v2714 = vadd.f32 %v2712, %v2713
    %v2715 = vtanh.pop %v2714
    %v2716 = vmul.f32 %v2710, %v2715
    %2717 = vmatpush.msra.mxu0 %v584
    %2718 = vmatpush.msra.mxu0 %v580
    %2719 = vmatpush.msra.mxu0 %v576
    %2720 = vmatpush.msra.mxu0 %v572
    %2721 = vmatpush.msra.mxu0 %v568
    %2722 = vmatpush.msra.mxu0 %v564
    %2723 = vmatpush.msra.mxu0 %v560
    %2724 = vmatpush.msra.mxu0 %v556
    %2725 = vmatpush.msra.mxu0 %v552
    %2726 = vmatpush.msra.mxu0 %v548
    %2727 = vmatpush.msra.mxu0 %v544
    %2728 = vmatpush.msra.mxu0 %v540
    %2729 = vmatpush.msra.mxu0 %v536
    %2730 = vmatpush.msra.mxu0 %v532
    %2731 = vmatpush.msra.mxu0 %v528
    %2732 = vmatpush.msra.mxu0 %v524
    %2733 = vmatmul.f32.gmra.mxu0 %v2716
    %v2734 = vpop.f32.mrf.mxu0
    %v2735 = vadd.f32 %v1445, %v2734
    %2736 = vdwg.mxu0
    %2737 = vmatpush.msra.mxu0 %v648
    %2738 = vmatpush.msra.mxu0 %v644
    %2739 = vmatpush.msra.mxu0 %v640
    %2740 = vmatpush.msra.mxu0 %v636
    %2741 = vmatpush.msra.mxu0 %v632
    %2742 = vmatpush.msra.mxu0 %v628
    %2743 = vmatpush.msra.mxu0 %v624
    %2744 = vmatpush.msra.mxu0 %v620
    %2745 = vmatpush.msra.mxu0 %v616
    %2746 = vmatpush.msra.mxu0 %v612
    %2747 = vmatpush.msra.mxu0 %v608
    %2748 = vmatpush.msra.mxu0 %v604
    %2749 = vmatpush.msra.mxu0 %v600
    %2750 = vmatpush.msra.mxu0 %v596
    %2751 = vmatpush.msra.mxu0 %v592
    %2752 = vmatpush.msra.mxu0 %v588
    %2753 = vmatmul.f32.gmra.mxu0 %v2568
    %v2754 = vpop.f32.mrf.mxu0
    %v2755 = vadd.f32 %v2735, %v2754
    %2756 = vdwg.mxu0
    %2757 = vmatpush.msra.mxu0 %v585
    %2758 = vmatpush.msra.mxu0 %v581
    %2759 = vmatpush.msra.mxu0 %v577
    %2760 = vmatpush.msra.mxu0 %v573
    %2761 = vmatpush.msra.mxu0 %v569
    %2762 = vmatpush.msra.mxu0 %v565
    %2763 = vmatpush.msra.mxu0 %v561
    %2764 = vmatpush.msra.mxu0 %v557
    %2765 = vmatpush.msra.mxu0 %v553
    %2766 = vmatpush.msra.mxu0 %v549
    %2767 = vmatpush.msra.mxu0 %v545
    %2768 = vmatpush.msra.mxu0 %v541
    %2769 = vmatpush.msra.mxu0 %v537
    %2770 = vmatpush.msra.mxu0 %v533
    %2771 = vmatpush.msra.mxu0 %v529
    %2772 = vmatpush.msra.mxu0 %v525
    %2773 = vmatmul.f32.gmra.mxu0 %v2716
    %v2774 = vpop.f32.mrf.mxu0
    %v2775 = vadd.f32 %v1446, %v2774
    %2776 = vdwg.mxu0
    %2777 = vmatpush.msra.mxu0 %v649
    %2778 = vmatpush.msra.mxu0 %v645
    %2779 = vmatpush.msra.mxu0 %v641
    %2780 = vmatpush.msra.mxu0 %v637
    %2781 = vmatpush.msra.mxu0 %v633
    %2782 = vmatpush.msra.mxu0 %v629
    %2783 = vmatpush.msra.mxu0 %v625
    %2784 = vmatpush.msra.mxu0 %v621
    %2785 = vmatpush.msra.mxu0 %v617
    %2786 = vmatpush.msra.mxu0 %v613
    %2787 = vmatpush.msra.mxu0 %v609
    %2788 = vmatpush.msra.mxu0 %v605
    %2789 = vmatpush.msra.mxu0 %v601
    %2790 = vmatpush.msra.mxu0 %v597
    %2791 = vmatpush.msra.mxu0 %v593
    %2792 = vmatpush.msra.mxu0 %v589
    %2793 = vmatmul.f32.gmra.mxu0 %v2568
    %v2794 = vpop.f32.mrf.mxu0
    %v2795 = vadd.f32 %v2775, %v2794
    %2796 = vdwg.mxu0
    %2797 = vmatpush.msra.mxu0 %v586
    %2798 = vmatpush.msra.mxu0 %v582
    %2799 = vmatpush.msra.mxu0 %v578
    %2800 = vmatpush.msra.mxu0 %v574
    %2801 = vmatpush.msra.mxu0 %v570
    %2802 = vmatpush.msra.mxu0 %v566
    %2803 = vmatpush.msra.mxu0 %v562
    %2804 = vmatpush.msra.mxu0 %v558
    %2805 = vmatpush.msra.mxu0 %v554
    %2806 = vmatpush.msra.mxu0 %v550
    %2807 = vmatpush.msra.mxu0 %v546
    %2808 = vmatpush.msra.mxu0 %v542
    %2809 = vmatpush.msra.mxu0 %v538
    %2810 = vmatpush.msra.mxu0 %v534
    %2811 = vmatpush.msra.mxu0 %v530
    %2812 = vmatpush.msra.mxu0 %v526
    %2813 = vmatmul.f32.gmra.mxu0 %v2716
    %v2814 = vpop.f32.mrf.mxu0
    %v2815 = vadd.f32 %v1447, %v2814
    %2816 = vdwg.mxu0
    %2817 = vmatpush.msra.mxu0 %v650
    %2818 = vmatpush.msra.mxu0 %v646
    %2819 = vmatpush.msra.mxu0 %v642
    %2820 = vmatpush.msra.mxu0 %v638
    %2821 = vmatpush.msra.mxu0 %v634
    %2822 = vmatpush.msra.mxu0 %v630
    %2823 = vmatpush.msra.mxu0 %v626
    %2824 = vmatpush.msra.mxu0 %v622
    %2825 = vmatpush.msra.mxu0 %v618
    %2826 = vmatpush.msra.mxu0 %v614
    %2827 = vmatpush.msra.mxu0 %v610
    %2828 = vmatpush.msra.mxu0 %v606
    %2829 = vmatpush.msra.mxu0 %v602
    %2830 = vmatpush.msra.mxu0 %v598
    %2831 = vmatpush.msra.mxu0 %v594
    %2832 = vmatpush.msra.mxu0 %v590
    %2833 = vmatmul.f32.gmra.mxu0 %v2568
    %v2834 = vpop.f32.mrf.mxu0
    %v2835 = vadd.f32 %v2815, %v2834
    %2836 = vdwg.mxu0
    %2837 = vmatpush.msra.mxu0 %v587
    %2838 = vmatpush.msra.mxu0 %v583
    %2839 = vmatpush.msra.mxu0 %v579
    %2840 = vmatpush.msra.mxu0 %v575
    %2841 = vmatpush.msra.mxu0 %v571
    %2842 = vmatpush.msra.mxu0 %v567
    %2843 = vmatpush.msra.mxu0 %v563
    %2844 = vmatpush.msra.mxu0 %v559
    %2845 = vmatpush.msra.mxu0 %v555
    %2846 = vmatpush.msra.mxu0 %v551
    %2847 = vmatpush.msra.mxu0 %v547
    %2848 = vmatpush.msra.mxu0 %v543
    %2849 = vmatpush.msra.mxu0 %v539
    %2850 = vmatpush.msra.mxu0 %v535
    %2851 = vmatpush.msra.mxu0 %v531
    %2852 = vmatpush.msra.mxu0 %v527
    %2853 = vmatmul.f32.gmra.mxu0 %v2716
    %v2854 = vpop.f32.mrf.mxu0
    %v2855 = vadd.f32 %v1448, %v2854
    %2856 = vdwg.mxu0
    %2857 = vmatpush.msra.mxu0 %v651
    %2858 = vmatpush.msra.mxu0 %v647
    %2859 = vmatpush.msra.mxu0 %v643
    %2860 = vmatpush.msra.mxu0 %v639
    %2861 = vmatpush.msra.mxu0 %v635
    %2862 = vmatpush.msra.mxu0 %v631
    %2863 = vmatpush.msra.mxu0 %v627
    %2864 = vmatpush.msra.mxu0 %v623
    %2865 = vmatpush.msra.mxu0 %v619
    %2866 = vmatpush.msra.mxu0 %v615
    %2867 = vmatpush.msra.mxu0 %v611
    %2868 = vmatpush.msra.mxu0 %v607
    %2869 = vmatpush.msra.mxu0 %v603
    %2870 = vmatpush.msra.mxu0 %v599
    %2871 = vmatpush.msra.mxu0 %v595
    %2872 = vmatpush.msra.mxu0 %v591
    %2873 = vmatmul.f32.gmra.mxu0 %v2568
    %v2874 = vpop.f32.mrf.mxu0
    %v2875 = vadd.f32 %v2855, %v2874
    %2876 = vdwg.mxu0
    %v2877 = vxor.u32 %v2755, 2147483648
    %v2878 = vxor.u32 %v2795, 2147483648
    %v2879 = vxor.u32 %v2835, 2147483648
    %v2880 = vmul.f32 %v2877, 1.442695
    %v2881 = vpow.pop %v2880
    %v2882 = vmul.f32 %v2878, 1.442695
    %v2883 = vpow.pop %v2882
    %v2884 = vmul.f32 %v2879, 1.442695
    %v2885 = vpow.pop %v2884
    %v2886 = vadd.f32 %v2881, 1.0
    %v2887 = vadd.f32 %v2883, 1.0
    %v2888 = vadd.f32 %v2885, 1.0
    %v2889 = vrcp.pop %v2886
    %v2890 = vmul.f32 %v2886, %v2889
    %v2891 = vsub.f32 1.0, %v2890
    %v2892 = vmul.f32 %v2889, %v2891
    %v2893 = vadd.f32 %v2889, %v2892
    %vm2894 = vweird.f32 %v2886
    %vm2895 = vweird.f32 %v2889
    %vm2896 = vmor %vm2894, %vm2895
    %v2897 = vsel %vm2896, %v2889, %v2893
    %v2898 = vand.u32 2147483647, %v2886
    %vm2899 = vcmp.eq.f32.partialorder %v2898, 8.507059e+37
    %v2900 = vand.u32 %v2886, 2147483648
    %v2901 = vor.u32 1.1754944e-38, %v2900
    %v2902 = vsel %vm2899, %v2901, %v2897
    %v2903 = vmul.f32 1.0, %v2902
    %v2904 = vrcp.pop %v2887
    %v2905 = vmul.f32 %v2887, %v2904
    %v2906 = vsub.f32 1.0, %v2905
    %v2907 = vmul.f32 %v2904, %v2906
    %v2908 = vadd.f32 %v2904, %v2907
    %vm2909 = vweird.f32 %v2887
    %vm2910 = vweird.f32 %v2904
    %vm2911 = vmor %vm2909, %vm2910
    %v2912 = vsel %vm2911, %v2904, %v2908
    %v2913 = vand.u32 2147483647, %v2887
    %vm2914 = vcmp.eq.f32.partialorder %v2913, 8.507059e+37
    %v2915 = vand.u32 %v2887, 2147483648
    %v2916 = vor.u32 1.1754944e-38, %v2915
    %v2917 = vsel %vm2914, %v2916, %v2912
    %v2918 = vmul.f32 1.0, %v2917
    %v2919 = vrcp.pop %v2888
    %v2920 = vmul.f32 %v2888, %v2919
    %v2921 = vsub.f32 1.0, %v2920
    %v2922 = vmul.f32 %v2919, %v2921
    %v2923 = vadd.f32 %v2919, %v2922
    %vm2924 = vweird.f32 %v2888
    %vm2925 = vweird.f32 %v2919
    %vm2926 = vmor %vm2924, %vm2925
    %v2927 = vsel %vm2926, %v2919, %v2923
    %v2928 = vand.u32 2147483647, %v2888
    %vm2929 = vcmp.eq.f32.partialorder %v2928, 8.507059e+37
    %v2930 = vand.u32 %v2888, 2147483648
    %v2931 = vor.u32 1.1754944e-38, %v2930
    %v2932 = vsel %vm2929, %v2931, %v2927
    %v2933 = vmul.f32 1.0, %v2932
    %v2934 = vtanh.pop %v2875
    %v2935 = vmul.f32 %v2918, %v2566
    %v2936 = vmul.f32 %v2903, %v2934
    %v2937 = vadd.f32 %v2935, %v2936
    %v2938 = vtanh.pop %v2937
    %v2939 = vmul.f32 %v2933, %v2938
    %2940 = vst [vmem:[#allocation2 + $0x18] sm:$0xff] %v2939
    %2941 = vmatpush.msra.mxu0 %v456
    %2942 = vmatpush.msra.mxu0 %v452
    %2943 = vmatpush.msra.mxu0 %v448
    %2944 = vmatpush.msra.mxu0 %v444
    %2945 = vmatpush.msra.mxu0 %v440
    %2946 = vmatpush.msra.mxu0 %v436
    %2947 = vmatpush.msra.mxu0 %v432
    %2948 = vmatpush.msra.mxu0 %v428
    %2949 = vmatpush.msra.mxu0 %v424
    %2950 = vmatpush.msra.mxu0 %v420
    %2951 = vmatpush.msra.mxu0 %v416
    %2952 = vmatpush.msra.mxu0 %v412
    %2953 = vmatpush.msra.mxu0 %v408
    %2954 = vmatpush.msra.mxu0 %v404
    %2955 = vmatpush.msra.mxu0 %v400
    %2956 = vmatpush.msra.mxu0 %v396
    %2957 = vmatmul.f32.gmra.mxu0 %v2716
    %v2958 = vpop.f32.mrf.mxu0
    %v2959 = vadd.f32 0.0, %v2958
    %2960 = vdwg.mxu0
    %2961 = vmatpush.msra.mxu0 %v457
    %2962 = vmatpush.msra.mxu0 %v453
    %2963 = vmatpush.msra.mxu0 %v449
    %2964 = vmatpush.msra.mxu0 %v445
    %2965 = vmatpush.msra.mxu0 %v441
    %2966 = vmatpush.msra.mxu0 %v437
    %2967 = vmatpush.msra.mxu0 %v433
    %2968 = vmatpush.msra.mxu0 %v429
    %2969 = vmatpush.msra.mxu0 %v425
    %2970 = vmatpush.msra.mxu0 %v421
    %2971 = vmatpush.msra.mxu0 %v417
    %2972 = vmatpush.msra.mxu0 %v413
    %2973 = vmatpush.msra.mxu0 %v409
    %2974 = vmatpush.msra.mxu0 %v405
    %2975 = vmatpush.msra.mxu0 %v401
    %2976 = vmatpush.msra.mxu0 %v397
    %2977 = vmatmul.f32.gmra.mxu0 %v2716
    %v2978 = vpop.f32.mrf.mxu0
    %v2979 = vadd.f32 0.0, %v2978
    %2980 = vdwg.mxu0
    %2981 = vmatpush.msra.mxu0 %v458
    %2982 = vmatpush.msra.mxu0 %v454
    %2983 = vmatpush.msra.mxu0 %v450
    %2984 = vmatpush.msra.mxu0 %v446
    %2985 = vmatpush.msra.mxu0 %v442
    %2986 = vmatpush.msra.mxu0 %v438
    %2987 = vmatpush.msra.mxu0 %v434
    %2988 = vmatpush.msra.mxu0 %v430
    %2989 = vmatpush.msra.mxu0 %v426
    %2990 = vmatpush.msra.mxu0 %v422
    %2991 = vmatpush.msra.mxu0 %v418
    %2992 = vmatpush.msra.mxu0 %v414
    %2993 = vmatpush.msra.mxu0 %v410
    %2994 = vmatpush.msra.mxu0 %v406
    %2995 = vmatpush.msra.mxu0 %v402
    %2996 = vmatpush.msra.mxu0 %v398
    %2997 = vmatmul.f32.gmra.mxu0 %v2716
    %v2998 = vpop.f32.mrf.mxu0
    %v2999 = vadd.f32 0.0, %v2998
    %3000 = vdwg.mxu0
    %3001 = vmatpush.msra.mxu0 %v459
    %3002 = vmatpush.msra.mxu0 %v455
    %3003 = vmatpush.msra.mxu0 %v451
    %3004 = vmatpush.msra.mxu0 %v447
    %3005 = vmatpush.msra.mxu0 %v443
    %3006 = vmatpush.msra.mxu0 %v439
    %3007 = vmatpush.msra.mxu0 %v435
    %3008 = vmatpush.msra.mxu0 %v431
    %3009 = vmatpush.msra.mxu0 %v427
    %3010 = vmatpush.msra.mxu0 %v423
    %3011 = vmatpush.msra.mxu0 %v419
    %3012 = vmatpush.msra.mxu0 %v415
    %3013 = vmatpush.msra.mxu0 %v411
    %3014 = vmatpush.msra.mxu0 %v407
    %3015 = vmatpush.msra.mxu0 %v403
    %3016 = vmatpush.msra.mxu0 %v399
    %3017 = vmatmul.f32.gmra.mxu0 %v2716
    %v3018 = vpop.f32.mrf.mxu0
    %v3019 = vadd.f32 0.0, %v3018
    %3020 = vdwg.mxu0
    %v3021 = vadd.f32 %v1186, %v2959
    %v3022 = vadd.f32 %v1268, %v2979
    %v3023 = vadd.f32 %v1350, %v2999
    %v3024 = vadd.f32 %v1432, %v3019
    %v3025 = vxor.u32 %v3021, 2147483648
    %v3026 = vxor.u32 %v3022, 2147483648
    %v3027 = vxor.u32 %v3023, 2147483648
    %v3028 = vmul.f32 %v3025, 1.442695
    %v3029 = vpow.pop %v3028
    %v3030 = vmul.f32 %v3026, 1.442695
    %v3031 = vpow.pop %v3030
    %v3032 = vmul.f32 %v3027, 1.442695
    %v3033 = vpow.pop %v3032
    %v3034 = vadd.f32 %v3029, 1.0
    %v3035 = vadd.f32 %v3031, 1.0
    %v3036 = vadd.f32 %v3033, 1.0
    %v3037 = vrcp.pop %v3034
    %v3038 = vmul.f32 %v3034, %v3037
    %v3039 = vsub.f32 1.0, %v3038
    %v3040 = vmul.f32 %v3037, %v3039
    %v3041 = vadd.f32 %v3037, %v3040
    %vm3042 = vweird.f32 %v3034
    %vm3043 = vweird.f32 %v3037
    %vm3044 = vmor %vm3042, %vm3043
    %v3045 = vsel %vm3044, %v3037, %v3041
    %v3046 = vand.u32 2147483647, %v3034
    %vm3047 = vcmp.eq.f32.partialorder %v3046, 8.507059e+37
    %v3048 = vand.u32 %v3034, 2147483648
    %v3049 = vor.u32 1.1754944e-38, %v3048
    %v3050 = vsel %vm3047, %v3049, %v3045
    %v3051 = vmul.f32 1.0, %v3050
    %v3052 = vrcp.pop %v3035
    %v3053 = vmul.f32 %v3035, %v3052
    %v3054 = vsub.f32 1.0, %v3053
    %v3055 = vmul.f32 %v3052, %v3054
    %v3056 = vadd.f32 %v3052, %v3055
    %vm3057 = vweird.f32 %v3035
    %vm3058 = vweird.f32 %v3052
    %vm3059 = vmor %vm3057, %vm3058
    %v3060 = vsel %vm3059, %v3052, %v3056
    %v3061 = vand.u32 2147483647, %v3035
    %vm3062 = vcmp.eq.f32.partialorder %v3061, 8.507059e+37
    %v3063 = vand.u32 %v3035, 2147483648
    %v3064 = vor.u32 1.1754944e-38, %v3063
    %v3065 = vsel %vm3062, %v3064, %v3060
    %v3066 = vmul.f32 1.0, %v3065
    %v3067 = vrcp.pop %v3036
    %v3068 = vmul.f32 %v3036, %v3067
    %v3069 = vsub.f32 1.0, %v3068
    %v3070 = vmul.f32 %v3067, %v3069
    %v3071 = vadd.f32 %v3067, %v3070
    %vm3072 = vweird.f32 %v3036
    %vm3073 = vweird.f32 %v3067
    %vm3074 = vmor %vm3072, %vm3073
    %v3075 = vsel %vm3074, %v3067, %v3071
    %v3076 = vand.u32 2147483647, %v3036
    %vm3077 = vcmp.eq.f32.partialorder %v3076, 8.507059e+37
    %v3078 = vand.u32 %v3036, 2147483648
    %v3079 = vor.u32 1.1754944e-38, %v3078
    %v3080 = vsel %vm3077, %v3079, %v3075
    %v3081 = vmul.f32 1.0, %v3080
    %v3082 = vtanh.pop %v3024
    %v3083 = vmul.f32 %v3066, %v2714
    %v3084 = vmul.f32 %v3051, %v3082
    %v3085 = vadd.f32 %v3083, %v3084
    %v3086 = vtanh.pop %v3085
    %v3087 = vmul.f32 %v3081, %v3086
    %3088 = vmatpush.msra.mxu0 %v584
    %3089 = vmatpush.msra.mxu0 %v580
    %3090 = vmatpush.msra.mxu0 %v576
    %3091 = vmatpush.msra.mxu0 %v572
    %3092 = vmatpush.msra.mxu0 %v568
    %3093 = vmatpush.msra.mxu0 %v564
    %3094 = vmatpush.msra.mxu0 %v560
    %3095 = vmatpush.msra.mxu0 %v556
    %3096 = vmatpush.msra.mxu0 %v552
    %3097 = vmatpush.msra.mxu0 %v548
    %3098 = vmatpush.msra.mxu0 %v544
    %3099 = vmatpush.msra.mxu0 %v540
    %3100 = vmatpush.msra.mxu0 %v536
    %3101 = vmatpush.msra.mxu0 %v532
    %3102 = vmatpush.msra.mxu0 %v528
    %3103 = vmatpush.msra.mxu0 %v524
    %3104 = vmatmul.f32.gmra.mxu0 %v3087
    %v3105 = vpop.f32.mrf.mxu0
    %v3106 = vadd.f32 %v1445, %v3105
    %3107 = vdwg.mxu0
    %3108 = vmatpush.msra.mxu0 %v648
    %3109 = vmatpush.msra.mxu0 %v644
    %3110 = vmatpush.msra.mxu0 %v640
    %3111 = vmatpush.msra.mxu0 %v636
    %3112 = vmatpush.msra.mxu0 %v632
    %3113 = vmatpush.msra.mxu0 %v628
    %3114 = vmatpush.msra.mxu0 %v624
    %3115 = vmatpush.msra.mxu0 %v620
    %3116 = vmatpush.msra.mxu0 %v616
    %3117 = vmatpush.msra.mxu0 %v612
    %3118 = vmatpush.msra.mxu0 %v608
    %3119 = vmatpush.msra.mxu0 %v604
    %3120 = vmatpush.msra.mxu0 %v600
    %3121 = vmatpush.msra.mxu0 %v596
    %3122 = vmatpush.msra.mxu0 %v592
    %3123 = vmatpush.msra.mxu0 %v588
    %3124 = vmatmul.f32.gmra.mxu0 %v2939
    %v3125 = vpop.f32.mrf.mxu0
    %v3126 = vadd.f32 %v3106, %v3125
    %3127 = vdwg.mxu0
    %3128 = vmatpush.msra.mxu0 %v585
    %3129 = vmatpush.msra.mxu0 %v581
    %3130 = vmatpush.msra.mxu0 %v577
    %3131 = vmatpush.msra.mxu0 %v573
    %3132 = vmatpush.msra.mxu0 %v569
    %3133 = vmatpush.msra.mxu0 %v565
    %3134 = vmatpush.msra.mxu0 %v561
    %3135 = vmatpush.msra.mxu0 %v557
    %3136 = vmatpush.msra.mxu0 %v553
    %3137 = vmatpush.msra.mxu0 %v549
    %3138 = vmatpush.msra.mxu0 %v545
    %3139 = vmatpush.msra.mxu0 %v541
    %3140 = vmatpush.msra.mxu0 %v537
    %3141 = vmatpush.msra.mxu0 %v533
    %3142 = vmatpush.msra.mxu0 %v529
    %3143 = vmatpush.msra.mxu0 %v525
    %3144 = vmatmul.f32.gmra.mxu0 %v3087
    %v3145 = vpop.f32.mrf.mxu0
    %v3146 = vadd.f32 %v1446, %v3145
    %3147 = vdwg.mxu0
    %3148 = vmatpush.msra.mxu0 %v649
    %3149 = vmatpush.msra.mxu0 %v645
    %3150 = vmatpush.msra.mxu0 %v641
    %3151 = vmatpush.msra.mxu0 %v637
    %3152 = vmatpush.msra.mxu0 %v633
    %3153 = vmatpush.msra.mxu0 %v629
    %3154 = vmatpush.msra.mxu0 %v625
    %3155 = vmatpush.msra.mxu0 %v621
    %3156 = vmatpush.msra.mxu0 %v617
    %3157 = vmatpush.msra.mxu0 %v613
    %3158 = vmatpush.msra.mxu0 %v609
    %3159 = vmatpush.msra.mxu0 %v605
    %3160 = vmatpush.msra.mxu0 %v601
    %3161 = vmatpush.msra.mxu0 %v597
    %3162 = vmatpush.msra.mxu0 %v593
    %3163 = vmatpush.msra.mxu0 %v589
    %3164 = vmatmul.f32.gmra.mxu0 %v2939
    %v3165 = vpop.f32.mrf.mxu0
    %v3166 = vadd.f32 %v3146, %v3165
    %3167 = vdwg.mxu0
    %3168 = vmatpush.msra.mxu0 %v586
    %3169 = vmatpush.msra.mxu0 %v582
    %3170 = vmatpush.msra.mxu0 %v578
    %3171 = vmatpush.msra.mxu0 %v574
    %3172 = vmatpush.msra.mxu0 %v570
    %3173 = vmatpush.msra.mxu0 %v566
    %3174 = vmatpush.msra.mxu0 %v562
    %3175 = vmatpush.msra.mxu0 %v558
    %3176 = vmatpush.msra.mxu0 %v554
    %3177 = vmatpush.msra.mxu0 %v550
    %3178 = vmatpush.msra.mxu0 %v546
    %3179 = vmatpush.msra.mxu0 %v542
    %3180 = vmatpush.msra.mxu0 %v538
    %3181 = vmatpush.msra.mxu0 %v534
    %3182 = vmatpush.msra.mxu0 %v530
    %3183 = vmatpush.msra.mxu0 %v526
    %3184 = vmatmul.f32.gmra.mxu0 %v3087
    %v3185 = vpop.f32.mrf.mxu0
    %v3186 = vadd.f32 %v1447, %v3185
    %3187 = vdwg.mxu0
    %3188 = vmatpush.msra.mxu0 %v650
    %3189 = vmatpush.msra.mxu0 %v646
    %3190 = vmatpush.msra.mxu0 %v642
    %3191 = vmatpush.msra.mxu0 %v638
    %3192 = vmatpush.msra.mxu0 %v634
    %3193 = vmatpush.msra.mxu0 %v630
    %3194 = vmatpush.msra.mxu0 %v626
    %3195 = vmatpush.msra.mxu0 %v622
    %3196 = vmatpush.msra.mxu0 %v618
    %3197 = vmatpush.msra.mxu0 %v614
    %3198 = vmatpush.msra.mxu0 %v610
    %3199 = vmatpush.msra.mxu0 %v606
    %3200 = vmatpush.msra.mxu0 %v602
    %3201 = vmatpush.msra.mxu0 %v598
    %3202 = vmatpush.msra.mxu0 %v594
    %3203 = vmatpush.msra.mxu0 %v590
    %3204 = vmatmul.f32.gmra.mxu0 %v2939
    %v3205 = vpop.f32.mrf.mxu0
    %v3206 = vadd.f32 %v3186, %v3205
    %3207 = vdwg.mxu0
    %3208 = vmatpush.msra.mxu0 %v587
    %3209 = vmatpush.msra.mxu0 %v583
    %3210 = vmatpush.msra.mxu0 %v579
    %3211 = vmatpush.msra.mxu0 %v575
    %3212 = vmatpush.msra.mxu0 %v571
    %3213 = vmatpush.msra.mxu0 %v567
    %3214 = vmatpush.msra.mxu0 %v563
    %3215 = vmatpush.msra.mxu0 %v559
    %3216 = vmatpush.msra.mxu0 %v555
    %3217 = vmatpush.msra.mxu0 %v551
    %3218 = vmatpush.msra.mxu0 %v547
    %3219 = vmatpush.msra.mxu0 %v543
    %3220 = vmatpush.msra.mxu0 %v539
    %3221 = vmatpush.msra.mxu0 %v535
    %3222 = vmatpush.msra.mxu0 %v531
    %3223 = vmatpush.msra.mxu0 %v527
    %3224 = vmatmul.f32.gmra.mxu0 %v3087
    %v3225 = vpop.f32.mrf.mxu0
    %v3226 = vadd.f32 %v1448, %v3225
    %3227 = vdwg.mxu0
    %3228 = vmatpush.msra.mxu0 %v651
    %3229 = vmatpush.msra.mxu0 %v647
    %3230 = vmatpush.msra.mxu0 %v643
    %3231 = vmatpush.msra.mxu0 %v639
    %3232 = vmatpush.msra.mxu0 %v635
    %3233 = vmatpush.msra.mxu0 %v631
    %3234 = vmatpush.msra.mxu0 %v627
    %3235 = vmatpush.msra.mxu0 %v623
    %3236 = vmatpush.msra.mxu0 %v619
    %3237 = vmatpush.msra.mxu0 %v615
    %3238 = vmatpush.msra.mxu0 %v611
    %3239 = vmatpush.msra.mxu0 %v607
    %3240 = vmatpush.msra.mxu0 %v603
    %3241 = vmatpush.msra.mxu0 %v599
    %3242 = vmatpush.msra.mxu0 %v595
    %3243 = vmatpush.msra.mxu0 %v591
    %3244 = vmatmul.f32.gmra.mxu0 %v2939
    %v3245 = vpop.f32.mrf.mxu0
    %v3246 = vadd.f32 %v3226, %v3245
    %3247 = vdwg.mxu0
    %v3248 = vxor.u32 %v3126, 2147483648
    %v3249 = vxor.u32 %v3166, 2147483648
    %v3250 = vxor.u32 %v3206, 2147483648
    %v3251 = vmul.f32 %v3248, 1.442695
    %v3252 = vpow.pop %v3251
    %v3253 = vmul.f32 %v3249, 1.442695
    %v3254 = vpow.pop %v3253
    %v3255 = vmul.f32 %v3250, 1.442695
    %v3256 = vpow.pop %v3255
    %v3257 = vadd.f32 %v3252, 1.0
    %v3258 = vadd.f32 %v3254, 1.0
    %v3259 = vadd.f32 %v3256, 1.0
    %v3260 = vrcp.pop %v3257
    %v3261 = vmul.f32 %v3257, %v3260
    %v3262 = vsub.f32 1.0, %v3261
    %v3263 = vmul.f32 %v3260, %v3262
    %v3264 = vadd.f32 %v3260, %v3263
    %vm3265 = vweird.f32 %v3257
    %vm3266 = vweird.f32 %v3260
    %vm3267 = vmor %vm3265, %vm3266
    %v3268 = vsel %vm3267, %v3260, %v3264
    %v3269 = vand.u32 2147483647, %v3257
    %vm3270 = vcmp.eq.f32.partialorder %v3269, 8.507059e+37
    %v3271 = vand.u32 %v3257, 2147483648
    %v3272 = vor.u32 1.1754944e-38, %v3271
    %v3273 = vsel %vm3270, %v3272, %v3268
    %v3274 = vmul.f32 1.0, %v3273
    %v3275 = vrcp.pop %v3258
    %v3276 = vmul.f32 %v3258, %v3275
    %v3277 = vsub.f32 1.0, %v3276
    %v3278 = vmul.f32 %v3275, %v3277
    %v3279 = vadd.f32 %v3275, %v3278
    %vm3280 = vweird.f32 %v3258
    %vm3281 = vweird.f32 %v3275
    %vm3282 = vmor %vm3280, %vm3281
    %v3283 = vsel %vm3282, %v3275, %v3279
    %v3284 = vand.u32 2147483647, %v3258
    %vm3285 = vcmp.eq.f32.partialorder %v3284, 8.507059e+37
    %v3286 = vand.u32 %v3258, 2147483648
    %v3287 = vor.u32 1.1754944e-38, %v3286
    %v3288 = vsel %vm3285, %v3287, %v3283
    %v3289 = vmul.f32 1.0, %v3288
    %v3290 = vrcp.pop %v3259
    %v3291 = vmul.f32 %v3259, %v3290
    %v3292 = vsub.f32 1.0, %v3291
    %v3293 = vmul.f32 %v3290, %v3292
    %v3294 = vadd.f32 %v3290, %v3293
    %vm3295 = vweird.f32 %v3259
    %vm3296 = vweird.f32 %v3290
    %vm3297 = vmor %vm3295, %vm3296
    %v3298 = vsel %vm3297, %v3290, %v3294
    %v3299 = vand.u32 2147483647, %v3259
    %vm3300 = vcmp.eq.f32.partialorder %v3299, 8.507059e+37
    %v3301 = vand.u32 %v3259, 2147483648
    %v3302 = vor.u32 1.1754944e-38, %v3301
    %v3303 = vsel %vm3300, %v3302, %v3298
    %v3304 = vmul.f32 1.0, %v3303
    %v3305 = vtanh.pop %v3246
    %v3306 = vmul.f32 %v3289, %v2937
    %v3307 = vmul.f32 %v3274, %v3305
    %v3308 = vadd.f32 %v3306, %v3307
    %v3309 = vtanh.pop %v3308
    %v3310 = vmul.f32 %v3304, %v3309
    %3311 = vst [vmem:[#allocation2 + $0x20] sm:$0xff] %v3310
    %3312 = vmatpush.msra.mxu0 %v456
    %3313 = vmatpush.msra.mxu0 %v452
    %3314 = vmatpush.msra.mxu0 %v448
    %3315 = vmatpush.msra.mxu0 %v444
    %3316 = vmatpush.msra.mxu0 %v440
    %3317 = vmatpush.msra.mxu0 %v436
    %3318 = vmatpush.msra.mxu0 %v432
    %3319 = vmatpush.msra.mxu0 %v428
    %3320 = vmatpush.msra.mxu0 %v424
    %3321 = vmatpush.msra.mxu0 %v420
    %3322 = vmatpush.msra.mxu0 %v416
    %3323 = vmatpush.msra.mxu0 %v412
    %3324 = vmatpush.msra.mxu0 %v408
    %3325 = vmatpush.msra.mxu0 %v404
    %3326 = vmatpush.msra.mxu0 %v400
    %3327 = vmatpush.msra.mxu0 %v396
    %3328 = vmatmul.f32.gmra.mxu0 %v3087
    %v3329 = vpop.f32.mrf.mxu0
    %v3330 = vadd.f32 0.0, %v3329
    %3331 = vdwg.mxu0
    %3332 = vmatpush.msra.mxu0 %v457
    %3333 = vmatpush.msra.mxu0 %v453
    %3334 = vmatpush.msra.mxu0 %v449
    %3335 = vmatpush.msra.mxu0 %v445
    %3336 = vmatpush.msra.mxu0 %v441
    %3337 = vmatpush.msra.mxu0 %v437
    %3338 = vmatpush.msra.mxu0 %v433
    %3339 = vmatpush.msra.mxu0 %v429
    %3340 = vmatpush.msra.mxu0 %v425
    %3341 = vmatpush.msra.mxu0 %v421
    %3342 = vmatpush.msra.mxu0 %v417
    %3343 = vmatpush.msra.mxu0 %v413
    %3344 = vmatpush.msra.mxu0 %v409
    %3345 = vmatpush.msra.mxu0 %v405
    %3346 = vmatpush.msra.mxu0 %v401
    %3347 = vmatpush.msra.mxu0 %v397
    %3348 = vmatmul.f32.gmra.mxu0 %v3087
    %v3349 = vpop.f32.mrf.mxu0
    %v3350 = vadd.f32 0.0, %v3349
    %3351 = vdwg.mxu0
    %3352 = vmatpush.msra.mxu0 %v458
    %3353 = vmatpush.msra.mxu0 %v454
    %3354 = vmatpush.msra.mxu0 %v450
    %3355 = vmatpush.msra.mxu0 %v446
    %3356 = vmatpush.msra.mxu0 %v442
    %3357 = vmatpush.msra.mxu0 %v438
    %3358 = vmatpush.msra.mxu0 %v434
    %3359 = vmatpush.msra.mxu0 %v430
    %3360 = vmatpush.msra.mxu0 %v426
    %3361 = vmatpush.msra.mxu0 %v422
    %3362 = vmatpush.msra.mxu0 %v418
    %3363 = vmatpush.msra.mxu0 %v414
    %3364 = vmatpush.msra.mxu0 %v410
    %3365 = vmatpush.msra.mxu0 %v406
    %3366 = vmatpush.msra.mxu0 %v402
    %3367 = vmatpush.msra.mxu0 %v398
    %3368 = vmatmul.f32.gmra.mxu0 %v3087
    %v3369 = vpop.f32.mrf.mxu0
    %v3370 = vadd.f32 0.0, %v3369
    %3371 = vdwg.mxu0
    %3372 = vmatpush.msra.mxu0 %v459
    %3373 = vmatpush.msra.mxu0 %v455
    %3374 = vmatpush.msra.mxu0 %v451
    %3375 = vmatpush.msra.mxu0 %v447
    %3376 = vmatpush.msra.mxu0 %v443
    %3377 = vmatpush.msra.mxu0 %v439
    %3378 = vmatpush.msra.mxu0 %v435
    %3379 = vmatpush.msra.mxu0 %v431
    %3380 = vmatpush.msra.mxu0 %v427
    %3381 = vmatpush.msra.mxu0 %v423
    %3382 = vmatpush.msra.mxu0 %v419
    %3383 = vmatpush.msra.mxu0 %v415
    %3384 = vmatpush.msra.mxu0 %v411
    %3385 = vmatpush.msra.mxu0 %v407
    %3386 = vmatpush.msra.mxu0 %v403
    %3387 = vmatpush.msra.mxu0 %v399
    %3388 = vmatmul.f32.gmra.mxu0 %v3087
    %v3389 = vpop.f32.mrf.mxu0
    %v3390 = vadd.f32 0.0, %v3389
    %3391 = vdwg.mxu0
    %v3392 = vadd.f32 %v1189, %v3330
    %v3393 = vadd.f32 %v1271, %v3350
    %v3394 = vadd.f32 %v1353, %v3370
    %v3395 = vadd.f32 %v1435, %v3390
    %v3396 = vxor.u32 %v3392, 2147483648
    %v3397 = vxor.u32 %v3393, 2147483648
    %v3398 = vxor.u32 %v3394, 2147483648
    %v3399 = vmul.f32 %v3396, 1.442695
    %v3400 = vpow.pop %v3399
    %v3401 = vmul.f32 %v3397, 1.442695
    %v3402 = vpow.pop %v3401
    %v3403 = vmul.f32 %v3398, 1.442695
    %v3404 = vpow.pop %v3403
    %v3405 = vadd.f32 %v3400, 1.0
    %v3406 = vadd.f32 %v3402, 1.0
    %v3407 = vadd.f32 %v3404, 1.0
    %v3408 = vrcp.pop %v3405
    %v3409 = vmul.f32 %v3405, %v3408
    %v3410 = vsub.f32 1.0, %v3409
    %v3411 = vmul.f32 %v3408, %v3410
    %v3412 = vadd.f32 %v3408, %v3411
    %vm3413 = vweird.f32 %v3405
    %vm3414 = vweird.f32 %v3408
    %vm3415 = vmor %vm3413, %vm3414
    %v3416 = vsel %vm3415, %v3408, %v3412
    %v3417 = vand.u32 2147483647, %v3405
    %vm3418 = vcmp.eq.f32.partialorder %v3417, 8.507059e+37
    %v3419 = vand.u32 %v3405, 2147483648
    %v3420 = vor.u32 1.1754944e-38, %v3419
    %v3421 = vsel %vm3418, %v3420, %v3416
    %v3422 = vmul.f32 1.0, %v3421
    %v3423 = vrcp.pop %v3406
    %v3424 = vmul.f32 %v3406, %v3423
    %v3425 = vsub.f32 1.0, %v3424
    %v3426 = vmul.f32 %v3423, %v3425
    %v3427 = vadd.f32 %v3423, %v3426
    %vm3428 = vweird.f32 %v3406
    %vm3429 = vweird.f32 %v3423
    %vm3430 = vmor %vm3428, %vm3429
    %v3431 = vsel %vm3430, %v3423, %v3427
    %v3432 = vand.u32 2147483647, %v3406
    %vm3433 = vcmp.eq.f32.partialorder %v3432, 8.507059e+37
    %v3434 = vand.u32 %v3406, 2147483648
    %v3435 = vor.u32 1.1754944e-38, %v3434
    %v3436 = vsel %vm3433, %v3435, %v3431
    %v3437 = vmul.f32 1.0, %v3436
    %v3438 = vrcp.pop %v3407
    %v3439 = vmul.f32 %v3407, %v3438
    %v3440 = vsub.f32 1.0, %v3439
    %v3441 = vmul.f32 %v3438, %v3440
    %v3442 = vadd.f32 %v3438, %v3441
    %vm3443 = vweird.f32 %v3407
    %vm3444 = vweird.f32 %v3438
    %vm3445 = vmor %vm3443, %vm3444
    %v3446 = vsel %vm3445, %v3438, %v3442
    %v3447 = vand.u32 2147483647, %v3407
    %vm3448 = vcmp.eq.f32.partialorder %v3447, 8.507059e+37
    %v3449 = vand.u32 %v3407, 2147483648
    %v3450 = vor.u32 1.1754944e-38, %v3449
    %v3451 = vsel %vm3448, %v3450, %v3446
    %v3452 = vmul.f32 1.0, %v3451
    %v3453 = vtanh.pop %v3395
    %v3454 = vmul.f32 %v3437, %v3085
    %v3455 = vmul.f32 %v3422, %v3453
    %v3456 = vadd.f32 %v3454, %v3455
    %v3457 = vtanh.pop %v3456
    %v3458 = vmul.f32 %v3452, %v3457
    %3459 = vmatpush.msra.mxu0 %v584
    %3460 = vmatpush.msra.mxu0 %v580
    %3461 = vmatpush.msra.mxu0 %v576
    %3462 = vmatpush.msra.mxu0 %v572
    %3463 = vmatpush.msra.mxu0 %v568
    %3464 = vmatpush.msra.mxu0 %v564
    %3465 = vmatpush.msra.mxu0 %v560
    %3466 = vmatpush.msra.mxu0 %v556
    %3467 = vmatpush.msra.mxu0 %v552
    %3468 = vmatpush.msra.mxu0 %v548
    %3469 = vmatpush.msra.mxu0 %v544
    %3470 = vmatpush.msra.mxu0 %v540
    %3471 = vmatpush.msra.mxu0 %v536
    %3472 = vmatpush.msra.mxu0 %v532
    %3473 = vmatpush.msra.mxu0 %v528
    %3474 = vmatpush.msra.mxu0 %v524
    %3475 = vmatmul.f32.gmra.mxu0 %v3458
    %v3476 = vpop.f32.mrf.mxu0
    %v3477 = vadd.f32 %v1445, %v3476
    %3478 = vdwg.mxu0
    %3479 = vmatpush.msra.mxu0 %v648
    %3480 = vmatpush.msra.mxu0 %v644
    %3481 = vmatpush.msra.mxu0 %v640
    %3482 = vmatpush.msra.mxu0 %v636
    %3483 = vmatpush.msra.mxu0 %v632
    %3484 = vmatpush.msra.mxu0 %v628
    %3485 = vmatpush.msra.mxu0 %v624
    %3486 = vmatpush.msra.mxu0 %v620
    %3487 = vmatpush.msra.mxu0 %v616
    %3488 = vmatpush.msra.mxu0 %v612
    %3489 = vmatpush.msra.mxu0 %v608
    %3490 = vmatpush.msra.mxu0 %v604
    %3491 = vmatpush.msra.mxu0 %v600
    %3492 = vmatpush.msra.mxu0 %v596
    %3493 = vmatpush.msra.mxu0 %v592
    %3494 = vmatpush.msra.mxu0 %v588
    %3495 = vmatmul.f32.gmra.mxu0 %v3310
    %v3496 = vpop.f32.mrf.mxu0
    %v3497 = vadd.f32 %v3477, %v3496
    %3498 = vdwg.mxu0
    %3499 = vmatpush.msra.mxu0 %v585
    %3500 = vmatpush.msra.mxu0 %v581
    %3501 = vmatpush.msra.mxu0 %v577
    %3502 = vmatpush.msra.mxu0 %v573
    %3503 = vmatpush.msra.mxu0 %v569
    %3504 = vmatpush.msra.mxu0 %v565
    %3505 = vmatpush.msra.mxu0 %v561
    %3506 = vmatpush.msra.mxu0 %v557
    %3507 = vmatpush.msra.mxu0 %v553
    %3508 = vmatpush.msra.mxu0 %v549
    %3509 = vmatpush.msra.mxu0 %v545
    %3510 = vmatpush.msra.mxu0 %v541
    %3511 = vmatpush.msra.mxu0 %v537
    %3512 = vmatpush.msra.mxu0 %v533
    %3513 = vmatpush.msra.mxu0 %v529
    %3514 = vmatpush.msra.mxu0 %v525
    %3515 = vmatmul.f32.gmra.mxu0 %v3458
    %v3516 = vpop.f32.mrf.mxu0
    %v3517 = vadd.f32 %v1446, %v3516
    %3518 = vdwg.mxu0
    %3519 = vmatpush.msra.mxu0 %v649
    %3520 = vmatpush.msra.mxu0 %v645
    %3521 = vmatpush.msra.mxu0 %v641
    %3522 = vmatpush.msra.mxu0 %v637
    %3523 = vmatpush.msra.mxu0 %v633
    %3524 = vmatpush.msra.mxu0 %v629
    %3525 = vmatpush.msra.mxu0 %v625
    %3526 = vmatpush.msra.mxu0 %v621
    %3527 = vmatpush.msra.mxu0 %v617
    %3528 = vmatpush.msra.mxu0 %v613
    %3529 = vmatpush.msra.mxu0 %v609
    %3530 = vmatpush.msra.mxu0 %v605
    %3531 = vmatpush.msra.mxu0 %v601
    %3532 = vmatpush.msra.mxu0 %v597
    %3533 = vmatpush.msra.mxu0 %v593
    %3534 = vmatpush.msra.mxu0 %v589
    %3535 = vmatmul.f32.gmra.mxu0 %v3310
    %v3536 = vpop.f32.mrf.mxu0
    %v3537 = vadd.f32 %v3517, %v3536
    %3538 = vdwg.mxu0
    %3539 = vmatpush.msra.mxu0 %v586
    %3540 = vmatpush.msra.mxu0 %v582
    %3541 = vmatpush.msra.mxu0 %v578
    %3542 = vmatpush.msra.mxu0 %v574
    %3543 = vmatpush.msra.mxu0 %v570
    %3544 = vmatpush.msra.mxu0 %v566
    %3545 = vmatpush.msra.mxu0 %v562
    %3546 = vmatpush.msra.mxu0 %v558
    %3547 = vmatpush.msra.mxu0 %v554
    %3548 = vmatpush.msra.mxu0 %v550
    %3549 = vmatpush.msra.mxu0 %v546
    %3550 = vmatpush.msra.mxu0 %v542
    %3551 = vmatpush.msra.mxu0 %v538
    %3552 = vmatpush.msra.mxu0 %v534
    %3553 = vmatpush.msra.mxu0 %v530
    %3554 = vmatpush.msra.mxu0 %v526
    %3555 = vmatmul.f32.gmra.mxu0 %v3458
    %v3556 = vpop.f32.mrf.mxu0
    %v3557 = vadd.f32 %v1447, %v3556
    %3558 = vdwg.mxu0
    %3559 = vmatpush.msra.mxu0 %v650
    %3560 = vmatpush.msra.mxu0 %v646
    %3561 = vmatpush.msra.mxu0 %v642
    %3562 = vmatpush.msra.mxu0 %v638
    %3563 = vmatpush.msra.mxu0 %v634
    %3564 = vmatpush.msra.mxu0 %v630
    %3565 = vmatpush.msra.mxu0 %v626
    %3566 = vmatpush.msra.mxu0 %v622
    %3567 = vmatpush.msra.mxu0 %v618
    %3568 = vmatpush.msra.mxu0 %v614
    %3569 = vmatpush.msra.mxu0 %v610
    %3570 = vmatpush.msra.mxu0 %v606
    %3571 = vmatpush.msra.mxu0 %v602
    %3572 = vmatpush.msra.mxu0 %v598
    %3573 = vmatpush.msra.mxu0 %v594
    %3574 = vmatpush.msra.mxu0 %v590
    %3575 = vmatmul.f32.gmra.mxu0 %v3310
    %v3576 = vpop.f32.mrf.mxu0
    %v3577 = vadd.f32 %v3557, %v3576
    %3578 = vdwg.mxu0
    %3579 = vmatpush.msra.mxu0 %v587
    %3580 = vmatpush.msra.mxu0 %v583
    %3581 = vmatpush.msra.mxu0 %v579
    %3582 = vmatpush.msra.mxu0 %v575
    %3583 = vmatpush.msra.mxu0 %v571
    %3584 = vmatpush.msra.mxu0 %v567
    %3585 = vmatpush.msra.mxu0 %v563
    %3586 = vmatpush.msra.mxu0 %v559
    %3587 = vmatpush.msra.mxu0 %v555
    %3588 = vmatpush.msra.mxu0 %v551
    %3589 = vmatpush.msra.mxu0 %v547
    %3590 = vmatpush.msra.mxu0 %v543
    %3591 = vmatpush.msra.mxu0 %v539
    %3592 = vmatpush.msra.mxu0 %v535
    %3593 = vmatpush.msra.mxu0 %v531
    %3594 = vmatpush.msra.mxu0 %v527
    %3595 = vmatmul.f32.gmra.mxu0 %v3458
    %v3596 = vpop.f32.mrf.mxu0
    %v3597 = vadd.f32 %v1448, %v3596
    %3598 = vdwg.mxu0
    %3599 = vmatpush.msra.mxu0 %v651
    %3600 = vmatpush.msra.mxu0 %v647
    %3601 = vmatpush.msra.mxu0 %v643
    %3602 = vmatpush.msra.mxu0 %v639
    %3603 = vmatpush.msra.mxu0 %v635
    %3604 = vmatpush.msra.mxu0 %v631
    %3605 = vmatpush.msra.mxu0 %v627
    %3606 = vmatpush.msra.mxu0 %v623
    %3607 = vmatpush.msra.mxu0 %v619
    %3608 = vmatpush.msra.mxu0 %v615
    %3609 = vmatpush.msra.mxu0 %v611
    %3610 = vmatpush.msra.mxu0 %v607
    %3611 = vmatpush.msra.mxu0 %v603
    %3612 = vmatpush.msra.mxu0 %v599
    %3613 = vmatpush.msra.mxu0 %v595
    %3614 = vmatpush.msra.mxu0 %v591
    %3615 = vmatmul.f32.gmra.mxu0 %v3310
    %v3616 = vpop.f32.mrf.mxu0
    %v3617 = vadd.f32 %v3597, %v3616
    %3618 = vdwg.mxu0
    %v3619 = vxor.u32 %v3497, 2147483648
    %v3620 = vxor.u32 %v3537, 2147483648
    %v3621 = vxor.u32 %v3577, 2147483648
    %v3622 = vmul.f32 %v3619, 1.442695
    %v3623 = vpow.pop %v3622
    %v3624 = vmul.f32 %v3620, 1.442695
    %v3625 = vpow.pop %v3624
    %v3626 = vmul.f32 %v3621, 1.442695
    %v3627 = vpow.pop %v3626
    %v3628 = vadd.f32 %v3623, 1.0
    %v3629 = vadd.f32 %v3625, 1.0
    %v3630 = vadd.f32 %v3627, 1.0
    %v3631 = vrcp.pop %v3628
    %v3632 = vmul.f32 %v3628, %v3631
    %v3633 = vsub.f32 1.0, %v3632
    %v3634 = vmul.f32 %v3631, %v3633
    %v3635 = vadd.f32 %v3631, %v3634
    %vm3636 = vweird.f32 %v3628
    %vm3637 = vweird.f32 %v3631
    %vm3638 = vmor %vm3636, %vm3637
    %v3639 = vsel %vm3638, %v3631, %v3635
    %v3640 = vand.u32 2147483647, %v3628
    %vm3641 = vcmp.eq.f32.partialorder %v3640, 8.507059e+37
    %v3642 = vand.u32 %v3628, 2147483648
    %v3643 = vor.u32 1.1754944e-38, %v3642
    %v3644 = vsel %vm3641, %v3643, %v3639
    %v3645 = vmul.f32 1.0, %v3644
    %v3646 = vrcp.pop %v3629
    %v3647 = vmul.f32 %v3629, %v3646
    %v3648 = vsub.f32 1.0, %v3647
    %v3649 = vmul.f32 %v3646, %v3648
    %v3650 = vadd.f32 %v3646, %v3649
    %vm3651 = vweird.f32 %v3629
    %vm3652 = vweird.f32 %v3646
    %vm3653 = vmor %vm3651, %vm3652
    %v3654 = vsel %vm3653, %v3646, %v3650
    %v3655 = vand.u32 2147483647, %v3629
    %vm3656 = vcmp.eq.f32.partialorder %v3655, 8.507059e+37
    %v3657 = vand.u32 %v3629, 2147483648
    %v3658 = vor.u32 1.1754944e-38, %v3657
    %v3659 = vsel %vm3656, %v3658, %v3654
    %v3660 = vmul.f32 1.0, %v3659
    %v3661 = vrcp.pop %v3630
    %v3662 = vmul.f32 %v3630, %v3661
    %v3663 = vsub.f32 1.0, %v3662
    %v3664 = vmul.f32 %v3661, %v3663
    %v3665 = vadd.f32 %v3661, %v3664
    %vm3666 = vweird.f32 %v3630
    %vm3667 = vweird.f32 %v3661
    %vm3668 = vmor %vm3666, %vm3667
    %v3669 = vsel %vm3668, %v3661, %v3665
    %v3670 = vand.u32 2147483647, %v3630
    %vm3671 = vcmp.eq.f32.partialorder %v3670, 8.507059e+37
    %v3672 = vand.u32 %v3630, 2147483648
    %v3673 = vor.u32 1.1754944e-38, %v3672
    %v3674 = vsel %vm3671, %v3673, %v3669
    %v3675 = vmul.f32 1.0, %v3674
    %v3676 = vtanh.pop %v3617
    %v3677 = vmul.f32 %v3660, %v3308
    %v3678 = vmul.f32 %v3645, %v3676
    %v3679 = vadd.f32 %v3677, %v3678
    %v3680 = vtanh.pop %v3679
    %v3681 = vmul.f32 %v3675, %v3680
    %3682 = vst [vmem:[#allocation2 + $0x28] sm:$0xff] %v3681
    %3683 = vmatpush.msra.mxu0 %v456
    %3684 = vmatpush.msra.mxu0 %v452
    %3685 = vmatpush.msra.mxu0 %v448
    %3686 = vmatpush.msra.mxu0 %v444
    %3687 = vmatpush.msra.mxu0 %v440
    %3688 = vmatpush.msra.mxu0 %v436
    %3689 = vmatpush.msra.mxu0 %v432
    %3690 = vmatpush.msra.mxu0 %v428
    %3691 = vmatpush.msra.mxu0 %v424
    %3692 = vmatpush.msra.mxu0 %v420
    %3693 = vmatpush.msra.mxu0 %v416
    %3694 = vmatpush.msra.mxu0 %v412
    %3695 = vmatpush.msra.mxu0 %v408
    %3696 = vmatpush.msra.mxu0 %v404
    %3697 = vmatpush.msra.mxu0 %v400
    %3698 = vmatpush.msra.mxu0 %v396
    %3699 = vmatmul.f32.gmra.mxu0 %v3458
    %v3700 = vpop.f32.mrf.mxu0
    %v3701 = vadd.f32 0.0, %v3700
    %3702 = vdwg.mxu0
    %3703 = vmatpush.msra.mxu0 %v457
    %3704 = vmatpush.msra.mxu0 %v453
    %3705 = vmatpush.msra.mxu0 %v449
    %3706 = vmatpush.msra.mxu0 %v445
    %3707 = vmatpush.msra.mxu0 %v441
    %3708 = vmatpush.msra.mxu0 %v437
    %3709 = vmatpush.msra.mxu0 %v433
    %3710 = vmatpush.msra.mxu0 %v429
    %3711 = vmatpush.msra.mxu0 %v425
    %3712 = vmatpush.msra.mxu0 %v421
    %3713 = vmatpush.msra.mxu0 %v417
    %3714 = vmatpush.msra.mxu0 %v413
    %3715 = vmatpush.msra.mxu0 %v409
    %3716 = vmatpush.msra.mxu0 %v405
    %3717 = vmatpush.msra.mxu0 %v401
    %3718 = vmatpush.msra.mxu0 %v397
    %3719 = vmatmul.f32.gmra.mxu0 %v3458
    %v3720 = vpop.f32.mrf.mxu0
    %v3721 = vadd.f32 0.0, %v3720
    %3722 = vdwg.mxu0
    %3723 = vmatpush.msra.mxu0 %v458
    %3724 = vmatpush.msra.mxu0 %v454
    %3725 = vmatpush.msra.mxu0 %v450
    %3726 = vmatpush.msra.mxu0 %v446
    %3727 = vmatpush.msra.mxu0 %v442
    %3728 = vmatpush.msra.mxu0 %v438
    %3729 = vmatpush.msra.mxu0 %v434
    %3730 = vmatpush.msra.mxu0 %v430
    %3731 = vmatpush.msra.mxu0 %v426
    %3732 = vmatpush.msra.mxu0 %v422
    %3733 = vmatpush.msra.mxu0 %v418
    %3734 = vmatpush.msra.mxu0 %v414
    %3735 = vmatpush.msra.mxu0 %v410
    %3736 = vmatpush.msra.mxu0 %v406
    %3737 = vmatpush.msra.mxu0 %v402
    %3738 = vmatpush.msra.mxu0 %v398
    %3739 = vmatmul.f32.gmra.mxu0 %v3458
    %v3740 = vpop.f32.mrf.mxu0
    %v3741 = vadd.f32 0.0, %v3740
    %3742 = vdwg.mxu0
    %3743 = vmatpush.msra.mxu0 %v459
    %3744 = vmatpush.msra.mxu0 %v455
    %3745 = vmatpush.msra.mxu0 %v451
    %3746 = vmatpush.msra.mxu0 %v447
    %3747 = vmatpush.msra.mxu0 %v443
    %3748 = vmatpush.msra.mxu0 %v439
    %3749 = vmatpush.msra.mxu0 %v435
    %3750 = vmatpush.msra.mxu0 %v431
    %3751 = vmatpush.msra.mxu0 %v427
    %3752 = vmatpush.msra.mxu0 %v423
    %3753 = vmatpush.msra.mxu0 %v419
    %3754 = vmatpush.msra.mxu0 %v415
    %3755 = vmatpush.msra.mxu0 %v411
    %3756 = vmatpush.msra.mxu0 %v407
    %3757 = vmatpush.msra.mxu0 %v403
    %3758 = vmatpush.msra.mxu0 %v399
    %3759 = vmatmul.f32.gmra.mxu0 %v3458
    %v3760 = vpop.f32.mrf.mxu0
    %v3761 = vadd.f32 0.0, %v3760
    %3762 = vdwg.mxu0
    %v3763 = vadd.f32 %v1192, %v3701
    %v3764 = vadd.f32 %v1274, %v3721
    %v3765 = vadd.f32 %v1356, %v3741
    %v3766 = vadd.f32 %v1438, %v3761
    %v3767 = vxor.u32 %v3763, 2147483648
    %v3768 = vxor.u32 %v3764, 2147483648
    %v3769 = vxor.u32 %v3765, 2147483648
    %v3770 = vmul.f32 %v3767, 1.442695
    %v3771 = vpow.pop %v3770
    %v3772 = vmul.f32 %v3768, 1.442695
    %v3773 = vpow.pop %v3772
    %v3774 = vmul.f32 %v3769, 1.442695
    %v3775 = vpow.pop %v3774
    %v3776 = vadd.f32 %v3771, 1.0
    %v3777 = vadd.f32 %v3773, 1.0
    %v3778 = vadd.f32 %v3775, 1.0
    %v3779 = vrcp.pop %v3776
    %v3780 = vmul.f32 %v3776, %v3779
    %v3781 = vsub.f32 1.0, %v3780
    %v3782 = vmul.f32 %v3779, %v3781
    %v3783 = vadd.f32 %v3779, %v3782
    %vm3784 = vweird.f32 %v3776
    %vm3785 = vweird.f32 %v3779
    %vm3786 = vmor %vm3784, %vm3785
    %v3787 = vsel %vm3786, %v3779, %v3783
    %v3788 = vand.u32 2147483647, %v3776
    %vm3789 = vcmp.eq.f32.partialorder %v3788, 8.507059e+37
    %v3790 = vand.u32 %v3776, 2147483648
    %v3791 = vor.u32 1.1754944e-38, %v3790
    %v3792 = vsel %vm3789, %v3791, %v3787
    %v3793 = vmul.f32 1.0, %v3792
    %v3794 = vrcp.pop %v3777
    %v3795 = vmul.f32 %v3777, %v3794
    %v3796 = vsub.f32 1.0, %v3795
    %v3797 = vmul.f32 %v3794, %v3796
    %v3798 = vadd.f32 %v3794, %v3797
    %vm3799 = vweird.f32 %v3777
    %vm3800 = vweird.f32 %v3794
    %vm3801 = vmor %vm3799, %vm3800
    %v3802 = vsel %vm3801, %v3794, %v3798
    %v3803 = vand.u32 2147483647, %v3777
    %vm3804 = vcmp.eq.f32.partialorder %v3803, 8.507059e+37
    %v3805 = vand.u32 %v3777, 2147483648
    %v3806 = vor.u32 1.1754944e-38, %v3805
    %v3807 = vsel %vm3804, %v3806, %v3802
    %v3808 = vmul.f32 1.0, %v3807
    %v3809 = vrcp.pop %v3778
    %v3810 = vmul.f32 %v3778, %v3809
    %v3811 = vsub.f32 1.0, %v3810
    %v3812 = vmul.f32 %v3809, %v3811
    %v3813 = vadd.f32 %v3809, %v3812
    %vm3814 = vweird.f32 %v3778
    %vm3815 = vweird.f32 %v3809
    %vm3816 = vmor %vm3814, %vm3815
    %v3817 = vsel %vm3816, %v3809, %v3813
    %v3818 = vand.u32 2147483647, %v3778
    %vm3819 = vcmp.eq.f32.partialorder %v3818, 8.507059e+37
    %v3820 = vand.u32 %v3778, 2147483648
    %v3821 = vor.u32 1.1754944e-38, %v3820
    %v3822 = vsel %vm3819, %v3821, %v3817
    %v3823 = vmul.f32 1.0, %v3822
    %v3824 = vtanh.pop %v3766
    %v3825 = vmul.f32 %v3808, %v3456
    %v3826 = vmul.f32 %v3793, %v3824
    %v3827 = vadd.f32 %v3825, %v3826
    %v3828 = vtanh.pop %v3827
    %v3829 = vmul.f32 %v3823, %v3828
    %3830 = vmatpush.msra.mxu0 %v584
    %3831 = vmatpush.msra.mxu0 %v580
    %3832 = vmatpush.msra.mxu0 %v576
    %3833 = vmatpush.msra.mxu0 %v572
    %3834 = vmatpush.msra.mxu0 %v568
    %3835 = vmatpush.msra.mxu0 %v564
    %3836 = vmatpush.msra.mxu0 %v560
    %3837 = vmatpush.msra.mxu0 %v556
    %3838 = vmatpush.msra.mxu0 %v552
    %3839 = vmatpush.msra.mxu0 %v548
    %3840 = vmatpush.msra.mxu0 %v544
    %3841 = vmatpush.msra.mxu0 %v540
    %3842 = vmatpush.msra.mxu0 %v536
    %3843 = vmatpush.msra.mxu0 %v532
    %3844 = vmatpush.msra.mxu0 %v528
    %3845 = vmatpush.msra.mxu0 %v524
    %3846 = vmatmul.f32.gmra.mxu0 %v3829
    %v3847 = vpop.f32.mrf.mxu0
    %v3848 = vadd.f32 %v1445, %v3847
    %3849 = vdwg.mxu0
    %3850 = vmatpush.msra.mxu0 %v648
    %3851 = vmatpush.msra.mxu0 %v644
    %3852 = vmatpush.msra.mxu0 %v640
    %3853 = vmatpush.msra.mxu0 %v636
    %3854 = vmatpush.msra.mxu0 %v632
    %3855 = vmatpush.msra.mxu0 %v628
    %3856 = vmatpush.msra.mxu0 %v624
    %3857 = vmatpush.msra.mxu0 %v620
    %3858 = vmatpush.msra.mxu0 %v616
    %3859 = vmatpush.msra.mxu0 %v612
    %3860 = vmatpush.msra.mxu0 %v608
    %3861 = vmatpush.msra.mxu0 %v604
    %3862 = vmatpush.msra.mxu0 %v600
    %3863 = vmatpush.msra.mxu0 %v596
    %3864 = vmatpush.msra.mxu0 %v592
    %3865 = vmatpush.msra.mxu0 %v588
    %3866 = vmatmul.f32.gmra.mxu0 %v3681
    %v3867 = vpop.f32.mrf.mxu0
    %v3868 = vadd.f32 %v3848, %v3867
    %3869 = vdwg.mxu0
    %3870 = vmatpush.msra.mxu0 %v585
    %3871 = vmatpush.msra.mxu0 %v581
    %3872 = vmatpush.msra.mxu0 %v577
    %3873 = vmatpush.msra.mxu0 %v573
    %3874 = vmatpush.msra.mxu0 %v569
    %3875 = vmatpush.msra.mxu0 %v565
    %3876 = vmatpush.msra.mxu0 %v561
    %3877 = vmatpush.msra.mxu0 %v557
    %3878 = vmatpush.msra.mxu0 %v553
    %3879 = vmatpush.msra.mxu0 %v549
    %3880 = vmatpush.msra.mxu0 %v545
    %3881 = vmatpush.msra.mxu0 %v541
    %3882 = vmatpush.msra.mxu0 %v537
    %3883 = vmatpush.msra.mxu0 %v533
    %3884 = vmatpush.msra.mxu0 %v529
    %3885 = vmatpush.msra.mxu0 %v525
    %3886 = vmatmul.f32.gmra.mxu0 %v3829
    %v3887 = vpop.f32.mrf.mxu0
    %v3888 = vadd.f32 %v1446, %v3887
    %3889 = vdwg.mxu0
    %3890 = vmatpush.msra.mxu0 %v649
    %3891 = vmatpush.msra.mxu0 %v645
    %3892 = vmatpush.msra.mxu0 %v641
    %3893 = vmatpush.msra.mxu0 %v637
    %3894 = vmatpush.msra.mxu0 %v633
    %3895 = vmatpush.msra.mxu0 %v629
    %3896 = vmatpush.msra.mxu0 %v625
    %3897 = vmatpush.msra.mxu0 %v621
    %3898 = vmatpush.msra.mxu0 %v617
    %3899 = vmatpush.msra.mxu0 %v613
    %3900 = vmatpush.msra.mxu0 %v609
    %3901 = vmatpush.msra.mxu0 %v605
    %3902 = vmatpush.msra.mxu0 %v601
    %3903 = vmatpush.msra.mxu0 %v597
    %3904 = vmatpush.msra.mxu0 %v593
    %3905 = vmatpush.msra.mxu0 %v589
    %3906 = vmatmul.f32.gmra.mxu0 %v3681
    %v3907 = vpop.f32.mrf.mxu0
    %v3908 = vadd.f32 %v3888, %v3907
    %3909 = vdwg.mxu0
    %3910 = vmatpush.msra.mxu0 %v586
    %3911 = vmatpush.msra.mxu0 %v582
    %3912 = vmatpush.msra.mxu0 %v578
    %3913 = vmatpush.msra.mxu0 %v574
    %3914 = vmatpush.msra.mxu0 %v570
    %3915 = vmatpush.msra.mxu0 %v566
    %3916 = vmatpush.msra.mxu0 %v562
    %3917 = vmatpush.msra.mxu0 %v558
    %3918 = vmatpush.msra.mxu0 %v554
    %3919 = vmatpush.msra.mxu0 %v550
    %3920 = vmatpush.msra.mxu0 %v546
    %3921 = vmatpush.msra.mxu0 %v542
    %3922 = vmatpush.msra.mxu0 %v538
    %3923 = vmatpush.msra.mxu0 %v534
    %3924 = vmatpush.msra.mxu0 %v530
    %3925 = vmatpush.msra.mxu0 %v526
    %3926 = vmatmul.f32.gmra.mxu0 %v3829
    %v3927 = vpop.f32.mrf.mxu0
    %v3928 = vadd.f32 %v1447, %v3927
    %3929 = vdwg.mxu0
    %3930 = vmatpush.msra.mxu0 %v650
    %3931 = vmatpush.msra.mxu0 %v646
    %3932 = vmatpush.msra.mxu0 %v642
    %3933 = vmatpush.msra.mxu0 %v638
    %3934 = vmatpush.msra.mxu0 %v634
    %3935 = vmatpush.msra.mxu0 %v630
    %3936 = vmatpush.msra.mxu0 %v626
    %3937 = vmatpush.msra.mxu0 %v622
    %3938 = vmatpush.msra.mxu0 %v618
    %3939 = vmatpush.msra.mxu0 %v614
    %3940 = vmatpush.msra.mxu0 %v610
    %3941 = vmatpush.msra.mxu0 %v606
    %3942 = vmatpush.msra.mxu0 %v602
    %3943 = vmatpush.msra.mxu0 %v598
    %3944 = vmatpush.msra.mxu0 %v594
    %3945 = vmatpush.msra.mxu0 %v590
    %3946 = vmatmul.f32.gmra.mxu0 %v3681
    %v3947 = vpop.f32.mrf.mxu0
    %v3948 = vadd.f32 %v3928, %v3947
    %3949 = vdwg.mxu0
    %3950 = vmatpush.msra.mxu0 %v587
    %3951 = vmatpush.msra.mxu0 %v583
    %3952 = vmatpush.msra.mxu0 %v579
    %3953 = vmatpush.msra.mxu0 %v575
    %3954 = vmatpush.msra.mxu0 %v571
    %3955 = vmatpush.msra.mxu0 %v567
    %3956 = vmatpush.msra.mxu0 %v563
    %3957 = vmatpush.msra.mxu0 %v559
    %3958 = vmatpush.msra.mxu0 %v555
    %3959 = vmatpush.msra.mxu0 %v551
    %3960 = vmatpush.msra.mxu0 %v547
    %3961 = vmatpush.msra.mxu0 %v543
    %3962 = vmatpush.msra.mxu0 %v539
    %3963 = vmatpush.msra.mxu0 %v535
    %3964 = vmatpush.msra.mxu0 %v531
    %3965 = vmatpush.msra.mxu0 %v527
    %3966 = vmatmul.f32.gmra.mxu0 %v3829
    %v3967 = vpop.f32.mrf.mxu0
    %v3968 = vadd.f32 %v1448, %v3967
    %3969 = vdwg.mxu0
    %3970 = vmatpush.msra.mxu0 %v651
    %3971 = vmatpush.msra.mxu0 %v647
    %3972 = vmatpush.msra.mxu0 %v643
    %3973 = vmatpush.msra.mxu0 %v639
    %3974 = vmatpush.msra.mxu0 %v635
    %3975 = vmatpush.msra.mxu0 %v631
    %3976 = vmatpush.msra.mxu0 %v627
    %3977 = vmatpush.msra.mxu0 %v623
    %3978 = vmatpush.msra.mxu0 %v619
    %3979 = vmatpush.msra.mxu0 %v615
    %3980 = vmatpush.msra.mxu0 %v611
    %3981 = vmatpush.msra.mxu0 %v607
    %3982 = vmatpush.msra.mxu0 %v603
    %3983 = vmatpush.msra.mxu0 %v599
    %3984 = vmatpush.msra.mxu0 %v595
    %3985 = vmatpush.msra.mxu0 %v591
    %3986 = vmatmul.f32.gmra.mxu0 %v3681
    %v3987 = vpop.f32.mrf.mxu0
    %v3988 = vadd.f32 %v3968, %v3987
    %3989 = vdwg.mxu0
    %v3990 = vxor.u32 %v3868, 2147483648
    %v3991 = vxor.u32 %v3908, 2147483648
    %v3992 = vxor.u32 %v3948, 2147483648
    %v3993 = vmul.f32 %v3990, 1.442695
    %v3994 = vpow.pop %v3993
    %v3995 = vmul.f32 %v3991, 1.442695
    %v3996 = vpow.pop %v3995
    %v3997 = vmul.f32 %v3992, 1.442695
    %v3998 = vpow.pop %v3997
    %v3999 = vadd.f32 %v3994, 1.0
    %v4000 = vadd.f32 %v3996, 1.0
    %v4001 = vadd.f32 %v3998, 1.0
    %v4002 = vrcp.pop %v3999
    %v4003 = vmul.f32 %v3999, %v4002
    %v4004 = vsub.f32 1.0, %v4003
    %v4005 = vmul.f32 %v4002, %v4004
    %v4006 = vadd.f32 %v4002, %v4005
    %vm4007 = vweird.f32 %v3999
    %vm4008 = vweird.f32 %v4002
    %vm4009 = vmor %vm4007, %vm4008
    %v4010 = vsel %vm4009, %v4002, %v4006
    %v4011 = vand.u32 2147483647, %v3999
    %vm4012 = vcmp.eq.f32.partialorder %v4011, 8.507059e+37
    %v4013 = vand.u32 %v3999, 2147483648
    %v4014 = vor.u32 1.1754944e-38, %v4013
    %v4015 = vsel %vm4012, %v4014, %v4010
    %v4016 = vmul.f32 1.0, %v4015
    %v4017 = vrcp.pop %v4000
    %v4018 = vmul.f32 %v4000, %v4017
    %v4019 = vsub.f32 1.0, %v4018
    %v4020 = vmul.f32 %v4017, %v4019
    %v4021 = vadd.f32 %v4017, %v4020
    %vm4022 = vweird.f32 %v4000
    %vm4023 = vweird.f32 %v4017
    %vm4024 = vmor %vm4022, %vm4023
    %v4025 = vsel %vm4024, %v4017, %v4021
    %v4026 = vand.u32 2147483647, %v4000
    %vm4027 = vcmp.eq.f32.partialorder %v4026, 8.507059e+37
    %v4028 = vand.u32 %v4000, 2147483648
    %v4029 = vor.u32 1.1754944e-38, %v4028
    %v4030 = vsel %vm4027, %v4029, %v4025
    %v4031 = vmul.f32 1.0, %v4030
    %v4032 = vrcp.pop %v4001
    %v4033 = vmul.f32 %v4001, %v4032
    %v4034 = vsub.f32 1.0, %v4033
    %v4035 = vmul.f32 %v4032, %v4034
    %v4036 = vadd.f32 %v4032, %v4035
    %vm4037 = vweird.f32 %v4001
    %vm4038 = vweird.f32 %v4032
    %vm4039 = vmor %vm4037, %vm4038
    %v4040 = vsel %vm4039, %v4032, %v4036
    %v4041 = vand.u32 2147483647, %v4001
    %vm4042 = vcmp.eq.f32.partialorder %v4041, 8.507059e+37
    %v4043 = vand.u32 %v4001, 2147483648
    %v4044 = vor.u32 1.1754944e-38, %v4043
    %v4045 = vsel %vm4042, %v4044, %v4040
    %v4046 = vmul.f32 1.0, %v4045
    %v4047 = vtanh.pop %v3988
    %v4048 = vmul.f32 %v4031, %v3679
    %v4049 = vmul.f32 %v4016, %v4047
    %v4050 = vadd.f32 %v4048, %v4049
    %v4051 = vtanh.pop %v4050
    %v4052 = vmul.f32 %v4046, %v4051
    %4053 = vst [vmem:[#allocation2 + $0x30] sm:$0xff] %v4052
    %4054 = vmatpush.msra.mxu0 %v456
    %4055 = vmatpush.msra.mxu0 %v452
    %4056 = vmatpush.msra.mxu0 %v448
    %4057 = vmatpush.msra.mxu0 %v444
    %4058 = vmatpush.msra.mxu0 %v440
    %4059 = vmatpush.msra.mxu0 %v436
    %4060 = vmatpush.msra.mxu0 %v432
    %4061 = vmatpush.msra.mxu0 %v428
    %4062 = vmatpush.msra.mxu0 %v424
    %4063 = vmatpush.msra.mxu0 %v420
    %4064 = vmatpush.msra.mxu0 %v416
    %4065 = vmatpush.msra.mxu0 %v412
    %4066 = vmatpush.msra.mxu0 %v408
    %4067 = vmatpush.msra.mxu0 %v404
    %4068 = vmatpush.msra.mxu0 %v400
    %4069 = vmatpush.msra.mxu0 %v396
    %4070 = vmatmul.f32.gmra.mxu0 %v3829
    %v4071 = vpop.f32.mrf.mxu0
    %v4072 = vadd.f32 0.0, %v4071
    %4073 = vdwg.mxu0
    %4074 = vmatpush.msra.mxu0 %v457
    %4075 = vmatpush.msra.mxu0 %v453
    %4076 = vmatpush.msra.mxu0 %v449
    %4077 = vmatpush.msra.mxu0 %v445
    %4078 = vmatpush.msra.mxu0 %v441
    %4079 = vmatpush.msra.mxu0 %v437
    %4080 = vmatpush.msra.mxu0 %v433
    %4081 = vmatpush.msra.mxu0 %v429
    %4082 = vmatpush.msra.mxu0 %v425
    %4083 = vmatpush.msra.mxu0 %v421
    %4084 = vmatpush.msra.mxu0 %v417
    %4085 = vmatpush.msra.mxu0 %v413
    %4086 = vmatpush.msra.mxu0 %v409
    %4087 = vmatpush.msra.mxu0 %v405
    %4088 = vmatpush.msra.mxu0 %v401
    %4089 = vmatpush.msra.mxu0 %v397
    %4090 = vmatmul.f32.gmra.mxu0 %v3829
    %v4091 = vpop.f32.mrf.mxu0
    %v4092 = vadd.f32 0.0, %v4091
    %4093 = vdwg.mxu0
    %4094 = vmatpush.msra.mxu0 %v458
    %4095 = vmatpush.msra.mxu0 %v454
    %4096 = vmatpush.msra.mxu0 %v450
    %4097 = vmatpush.msra.mxu0 %v446
    %4098 = vmatpush.msra.mxu0 %v442
    %4099 = vmatpush.msra.mxu0 %v438
    %4100 = vmatpush.msra.mxu0 %v434
    %4101 = vmatpush.msra.mxu0 %v430
    %4102 = vmatpush.msra.mxu0 %v426
    %4103 = vmatpush.msra.mxu0 %v422
    %4104 = vmatpush.msra.mxu0 %v418
    %4105 = vmatpush.msra.mxu0 %v414
    %4106 = vmatpush.msra.mxu0 %v410
    %4107 = vmatpush.msra.mxu0 %v406
    %4108 = vmatpush.msra.mxu0 %v402
    %4109 = vmatpush.msra.mxu0 %v398
    %4110 = vmatmul.f32.gmra.mxu0 %v3829
    %v4111 = vpop.f32.mrf.mxu0
    %v4112 = vadd.f32 0.0, %v4111
    %4113 = vdwg.mxu0
    %4114 = vmatpush.msra.mxu0 %v459
    %4115 = vmatpush.msra.mxu0 %v455
    %4116 = vmatpush.msra.mxu0 %v451
    %4117 = vmatpush.msra.mxu0 %v447
    %4118 = vmatpush.msra.mxu0 %v443
    %4119 = vmatpush.msra.mxu0 %v439
    %4120 = vmatpush.msra.mxu0 %v435
    %4121 = vmatpush.msra.mxu0 %v431
    %4122 = vmatpush.msra.mxu0 %v427
    %4123 = vmatpush.msra.mxu0 %v423
    %4124 = vmatpush.msra.mxu0 %v419
    %4125 = vmatpush.msra.mxu0 %v415
    %4126 = vmatpush.msra.mxu0 %v411
    %4127 = vmatpush.msra.mxu0 %v407
    %4128 = vmatpush.msra.mxu0 %v403
    %4129 = vmatpush.msra.mxu0 %v399
    %4130 = vmatmul.f32.gmra.mxu0 %v3829
    %v4131 = vpop.f32.mrf.mxu0
    %v4132 = vadd.f32 0.0, %v4131
    %4133 = vdwg.mxu0
    %v4134 = vadd.f32 %v1195, %v4072
    %v4135 = vadd.f32 %v1277, %v4092
    %v4136 = vadd.f32 %v1359, %v4112
    %v4137 = vadd.f32 %v1441, %v4132
    %v4138 = vxor.u32 %v4134, 2147483648
    %v4139 = vxor.u32 %v4135, 2147483648
    %v4140 = vxor.u32 %v4136, 2147483648
    %v4141 = vmul.f32 %v4138, 1.442695
    %v4142 = vpow.pop %v4141
    %v4143 = vmul.f32 %v4139, 1.442695
    %v4144 = vpow.pop %v4143
    %v4145 = vmul.f32 %v4140, 1.442695
    %v4146 = vpow.pop %v4145
    %v4147 = vadd.f32 %v4142, 1.0
    %v4148 = vadd.f32 %v4144, 1.0
    %v4149 = vadd.f32 %v4146, 1.0
    %v4150 = vrcp.pop %v4147
    %v4151 = vmul.f32 %v4147, %v4150
    %v4152 = vsub.f32 1.0, %v4151
    %v4153 = vmul.f32 %v4150, %v4152
    %v4154 = vadd.f32 %v4150, %v4153
    %vm4155 = vweird.f32 %v4147
    %vm4156 = vweird.f32 %v4150
    %vm4157 = vmor %vm4155, %vm4156
    %v4158 = vsel %vm4157, %v4150, %v4154
    %v4159 = vand.u32 2147483647, %v4147
    %vm4160 = vcmp.eq.f32.partialorder %v4159, 8.507059e+37
    %v4161 = vand.u32 %v4147, 2147483648
    %v4162 = vor.u32 1.1754944e-38, %v4161
    %v4163 = vsel %vm4160, %v4162, %v4158
    %v4164 = vmul.f32 1.0, %v4163
    %v4165 = vrcp.pop %v4148
    %v4166 = vmul.f32 %v4148, %v4165
    %v4167 = vsub.f32 1.0, %v4166
    %v4168 = vmul.f32 %v4165, %v4167
    %v4169 = vadd.f32 %v4165, %v4168
    %vm4170 = vweird.f32 %v4148
    %vm4171 = vweird.f32 %v4165
    %vm4172 = vmor %vm4170, %vm4171
    %v4173 = vsel %vm4172, %v4165, %v4169
    %v4174 = vand.u32 2147483647, %v4148
    %vm4175 = vcmp.eq.f32.partialorder %v4174, 8.507059e+37
    %v4176 = vand.u32 %v4148, 2147483648
    %v4177 = vor.u32 1.1754944e-38, %v4176
    %v4178 = vsel %vm4175, %v4177, %v4173
    %v4179 = vmul.f32 1.0, %v4178
    %v4180 = vrcp.pop %v4149
    %v4181 = vmul.f32 %v4149, %v4180
    %v4182 = vsub.f32 1.0, %v4181
    %v4183 = vmul.f32 %v4180, %v4182
    %v4184 = vadd.f32 %v4180, %v4183
    %vm4185 = vweird.f32 %v4149
    %vm4186 = vweird.f32 %v4180
    %vm4187 = vmor %vm4185, %vm4186
    %v4188 = vsel %vm4187, %v4180, %v4184
    %v4189 = vand.u32 2147483647, %v4149
    %vm4190 = vcmp.eq.f32.partialorder %v4189, 8.507059e+37
    %v4191 = vand.u32 %v4149, 2147483648
    %v4192 = vor.u32 1.1754944e-38, %v4191
    %v4193 = vsel %vm4190, %v4192, %v4188
    %v4194 = vmul.f32 1.0, %v4193
    %v4195 = vtanh.pop %v4137
    %v4196 = vmul.f32 %v4179, %v3827
    %v4197 = vmul.f32 %v4164, %v4195
    %v4198 = vadd.f32 %v4196, %v4197
    %v4199 = vtanh.pop %v4198
    %v4200 = vmul.f32 %v4194, %v4199
    %4201 = vmatpush.msra.mxu0 %v584
    %4202 = vmatpush.msra.mxu0 %v580
    %4203 = vmatpush.msra.mxu0 %v576
    %4204 = vmatpush.msra.mxu0 %v572
    %4205 = vmatpush.msra.mxu0 %v568
    %4206 = vmatpush.msra.mxu0 %v564
    %4207 = vmatpush.msra.mxu0 %v560
    %4208 = vmatpush.msra.mxu0 %v556
    %4209 = vmatpush.msra.mxu0 %v552
    %4210 = vmatpush.msra.mxu0 %v548
    %4211 = vmatpush.msra.mxu0 %v544
    %4212 = vmatpush.msra.mxu0 %v540
    %4213 = vmatpush.msra.mxu0 %v536
    %4214 = vmatpush.msra.mxu0 %v532
    %4215 = vmatpush.msra.mxu0 %v528
    %4216 = vmatpush.msra.mxu0 %v524
    %4217 = vmatmul.f32.gmra.mxu0 %v4200
    %v4218 = vpop.f32.mrf.mxu0
    %v4219 = vadd.f32 %v1445, %v4218
    %4220 = vdwg.mxu0
    %4221 = vmatpush.msra.mxu0 %v648
    %4222 = vmatpush.msra.mxu0 %v644
    %4223 = vmatpush.msra.mxu0 %v640
    %4224 = vmatpush.msra.mxu0 %v636
    %4225 = vmatpush.msra.mxu0 %v632
    %4226 = vmatpush.msra.mxu0 %v628
    %4227 = vmatpush.msra.mxu0 %v624
    %4228 = vmatpush.msra.mxu0 %v620
    %4229 = vmatpush.msra.mxu0 %v616
    %4230 = vmatpush.msra.mxu0 %v612
    %4231 = vmatpush.msra.mxu0 %v608
    %4232 = vmatpush.msra.mxu0 %v604
    %4233 = vmatpush.msra.mxu0 %v600
    %4234 = vmatpush.msra.mxu0 %v596
    %4235 = vmatpush.msra.mxu0 %v592
    %4236 = vmatpush.msra.mxu0 %v588
    %4237 = vmatmul.f32.gmra.mxu0 %v4052
    %v4238 = vpop.f32.mrf.mxu0
    %v4239 = vadd.f32 %v4219, %v4238
    %4240 = vdwg.mxu0
    %4241 = vmatpush.msra.mxu0 %v585
    %4242 = vmatpush.msra.mxu0 %v581
    %4243 = vmatpush.msra.mxu0 %v577
    %4244 = vmatpush.msra.mxu0 %v573
    %4245 = vmatpush.msra.mxu0 %v569
    %4246 = vmatpush.msra.mxu0 %v565
    %4247 = vmatpush.msra.mxu0 %v561
    %4248 = vmatpush.msra.mxu0 %v557
    %4249 = vmatpush.msra.mxu0 %v553
    %4250 = vmatpush.msra.mxu0 %v549
    %4251 = vmatpush.msra.mxu0 %v545
    %4252 = vmatpush.msra.mxu0 %v541
    %4253 = vmatpush.msra.mxu0 %v537
    %4254 = vmatpush.msra.mxu0 %v533
    %4255 = vmatpush.msra.mxu0 %v529
    %4256 = vmatpush.msra.mxu0 %v525
    %4257 = vmatmul.f32.gmra.mxu0 %v4200
    %v4258 = vpop.f32.mrf.mxu0
    %v4259 = vadd.f32 %v1446, %v4258
    %4260 = vdwg.mxu0
    %4261 = vmatpush.msra.mxu0 %v649
    %4262 = vmatpush.msra.mxu0 %v645
    %4263 = vmatpush.msra.mxu0 %v641
    %4264 = vmatpush.msra.mxu0 %v637
    %4265 = vmatpush.msra.mxu0 %v633
    %4266 = vmatpush.msra.mxu0 %v629
    %4267 = vmatpush.msra.mxu0 %v625
    %4268 = vmatpush.msra.mxu0 %v621
    %4269 = vmatpush.msra.mxu0 %v617
    %4270 = vmatpush.msra.mxu0 %v613
    %4271 = vmatpush.msra.mxu0 %v609
    %4272 = vmatpush.msra.mxu0 %v605
    %4273 = vmatpush.msra.mxu0 %v601
    %4274 = vmatpush.msra.mxu0 %v597
    %4275 = vmatpush.msra.mxu0 %v593
    %4276 = vmatpush.msra.mxu0 %v589
    %4277 = vmatmul.f32.gmra.mxu0 %v4052
    %v4278 = vpop.f32.mrf.mxu0
    %v4279 = vadd.f32 %v4259, %v4278
    %4280 = vdwg.mxu0
    %4281 = vmatpush.msra.mxu0 %v586
    %4282 = vmatpush.msra.mxu0 %v582
    %4283 = vmatpush.msra.mxu0 %v578
    %4284 = vmatpush.msra.mxu0 %v574
    %4285 = vmatpush.msra.mxu0 %v570
    %4286 = vmatpush.msra.mxu0 %v566
    %4287 = vmatpush.msra.mxu0 %v562
    %4288 = vmatpush.msra.mxu0 %v558
    %4289 = vmatpush.msra.mxu0 %v554
    %4290 = vmatpush.msra.mxu0 %v550
    %4291 = vmatpush.msra.mxu0 %v546
    %4292 = vmatpush.msra.mxu0 %v542
    %4293 = vmatpush.msra.mxu0 %v538
    %4294 = vmatpush.msra.mxu0 %v534
    %4295 = vmatpush.msra.mxu0 %v530
    %4296 = vmatpush.msra.mxu0 %v526
    %4297 = vmatmul.f32.gmra.mxu0 %v4200
    %v4298 = vpop.f32.mrf.mxu0
    %v4299 = vadd.f32 %v1447, %v4298
    %4300 = vdwg.mxu0
    %4301 = vmatpush.msra.mxu0 %v650
    %4302 = vmatpush.msra.mxu0 %v646
    %4303 = vmatpush.msra.mxu0 %v642
    %4304 = vmatpush.msra.mxu0 %v638
    %4305 = vmatpush.msra.mxu0 %v634
    %4306 = vmatpush.msra.mxu0 %v630
    %4307 = vmatpush.msra.mxu0 %v626
    %4308 = vmatpush.msra.mxu0 %v622
    %4309 = vmatpush.msra.mxu0 %v618
    %4310 = vmatpush.msra.mxu0 %v614
    %4311 = vmatpush.msra.mxu0 %v610
    %4312 = vmatpush.msra.mxu0 %v606
    %4313 = vmatpush.msra.mxu0 %v602
    %4314 = vmatpush.msra.mxu0 %v598
    %4315 = vmatpush.msra.mxu0 %v594
    %4316 = vmatpush.msra.mxu0 %v590
    %4317 = vmatmul.f32.gmra.mxu0 %v4052
    %v4318 = vpop.f32.mrf.mxu0
    %v4319 = vadd.f32 %v4299, %v4318
    %4320 = vdwg.mxu0
    %4321 = vmatpush.msra.mxu0 %v587
    %4322 = vmatpush.msra.mxu0 %v583
    %4323 = vmatpush.msra.mxu0 %v579
    %4324 = vmatpush.msra.mxu0 %v575
    %4325 = vmatpush.msra.mxu0 %v571
    %4326 = vmatpush.msra.mxu0 %v567
    %4327 = vmatpush.msra.mxu0 %v563
    %4328 = vmatpush.msra.mxu0 %v559
    %4329 = vmatpush.msra.mxu0 %v555
    %4330 = vmatpush.msra.mxu0 %v551
    %4331 = vmatpush.msra.mxu0 %v547
    %4332 = vmatpush.msra.mxu0 %v543
    %4333 = vmatpush.msra.mxu0 %v539
    %4334 = vmatpush.msra.mxu0 %v535
    %4335 = vmatpush.msra.mxu0 %v531
    %4336 = vmatpush.msra.mxu0 %v527
    %4337 = vmatmul.f32.gmra.mxu0 %v4200
    %v4338 = vpop.f32.mrf.mxu0
    %v4339 = vadd.f32 %v1448, %v4338
    %4340 = vdwg.mxu0
    %4341 = vmatpush.msra.mxu0 %v651
    %4342 = vmatpush.msra.mxu0 %v647
    %4343 = vmatpush.msra.mxu0 %v643
    %4344 = vmatpush.msra.mxu0 %v639
    %4345 = vmatpush.msra.mxu0 %v635
    %4346 = vmatpush.msra.mxu0 %v631
    %4347 = vmatpush.msra.mxu0 %v627
    %4348 = vmatpush.msra.mxu0 %v623
    %4349 = vmatpush.msra.mxu0 %v619
    %4350 = vmatpush.msra.mxu0 %v615
    %4351 = vmatpush.msra.mxu0 %v611
    %4352 = vmatpush.msra.mxu0 %v607
    %4353 = vmatpush.msra.mxu0 %v603
    %4354 = vmatpush.msra.mxu0 %v599
    %4355 = vmatpush.msra.mxu0 %v595
    %4356 = vmatpush.msra.mxu0 %v591
    %4357 = vmatmul.f32.gmra.mxu0 %v4052
    %v4358 = vpop.f32.mrf.mxu0
    %v4359 = vadd.f32 %v4339, %v4358
    %4360 = vdwg.mxu0
    %v4361 = vxor.u32 %v4239, 2147483648
    %v4362 = vxor.u32 %v4279, 2147483648
    %v4363 = vxor.u32 %v4319, 2147483648
    %v4364 = vmul.f32 %v4361, 1.442695
    %v4365 = vpow.pop %v4364
    %v4366 = vmul.f32 %v4362, 1.442695
    %v4367 = vpow.pop %v4366
    %v4368 = vmul.f32 %v4363, 1.442695
    %v4369 = vpow.pop %v4368
    %v4370 = vadd.f32 %v4365, 1.0
    %v4371 = vadd.f32 %v4367, 1.0
    %v4372 = vadd.f32 %v4369, 1.0
    %v4373 = vrcp.pop %v4370
    %v4374 = vmul.f32 %v4370, %v4373
    %v4375 = vsub.f32 1.0, %v4374
    %v4376 = vmul.f32 %v4373, %v4375
    %v4377 = vadd.f32 %v4373, %v4376
    %vm4378 = vweird.f32 %v4370
    %vm4379 = vweird.f32 %v4373
    %vm4380 = vmor %vm4378, %vm4379
    %v4381 = vsel %vm4380, %v4373, %v4377
    %v4382 = vand.u32 2147483647, %v4370
    %vm4383 = vcmp.eq.f32.partialorder %v4382, 8.507059e+37
    %v4384 = vand.u32 %v4370, 2147483648
    %v4385 = vor.u32 1.1754944e-38, %v4384
    %v4386 = vsel %vm4383, %v4385, %v4381
    %v4387 = vmul.f32 1.0, %v4386
    %v4388 = vrcp.pop %v4371
    %v4389 = vmul.f32 %v4371, %v4388
    %v4390 = vsub.f32 1.0, %v4389
    %v4391 = vmul.f32 %v4388, %v4390
    %v4392 = vadd.f32 %v4388, %v4391
    %vm4393 = vweird.f32 %v4371
    %vm4394 = vweird.f32 %v4388
    %vm4395 = vmor %vm4393, %vm4394
    %v4396 = vsel %vm4395, %v4388, %v4392
    %v4397 = vand.u32 2147483647, %v4371
    %vm4398 = vcmp.eq.f32.partialorder %v4397, 8.507059e+37
    %v4399 = vand.u32 %v4371, 2147483648
    %v4400 = vor.u32 1.1754944e-38, %v4399
    %v4401 = vsel %vm4398, %v4400, %v4396
    %v4402 = vmul.f32 1.0, %v4401
    %v4403 = vrcp.pop %v4372
    %v4404 = vmul.f32 %v4372, %v4403
    %v4405 = vsub.f32 1.0, %v4404
    %v4406 = vmul.f32 %v4403, %v4405
    %v4407 = vadd.f32 %v4403, %v4406
    %vm4408 = vweird.f32 %v4372
    %vm4409 = vweird.f32 %v4403
    %vm4410 = vmor %vm4408, %vm4409
    %v4411 = vsel %vm4410, %v4403, %v4407
    %v4412 = vand.u32 2147483647, %v4372
    %vm4413 = vcmp.eq.f32.partialorder %v4412, 8.507059e+37
    %v4414 = vand.u32 %v4372, 2147483648
    %v4415 = vor.u32 1.1754944e-38, %v4414
    %v4416 = vsel %vm4413, %v4415, %v4411
    %v4417 = vmul.f32 1.0, %v4416
    %v4418 = vtanh.pop %v4359
    %v4419 = vmul.f32 %v4402, %v4050
    %v4420 = vmul.f32 %v4387, %v4418
    %v4421 = vadd.f32 %v4419, %v4420
    %v4422 = vtanh.pop %v4421
    %v4423 = vmul.f32 %v4417, %v4422
    %4424 = vst [vmem:[#allocation2 + $0x38] sm:$0xff] %v4423
    %v4425 = vld [vmem:[#allocation2] sm:$0xff]
    %v4426 = vld [vmem:[#allocation2 + $0x8] sm:$0xff]
    %v4427 = vld [vmem:[#allocation2 + $0x10] sm:$0xff]
    %v4428 = vld [vmem:[#allocation2 + $0x18] sm:$0xff]
    %v4429 = vld [vmem:[#allocation2 + $0x20] sm:$0xff]
    %v4430 = vld [vmem:[#allocation2 + $0x28] sm:$0xff]
    %v4431 = vld [vmem:[#allocation2 + $0x30] sm:$0xff]
    %v4432 = vld [vmem:[#allocation2 + $0x38] sm:$0xff]
    %v4433 = vld [vmem:[%s11] sm:$0x3]
    %v4435 = vperm.slane %v4433, 0
    %v4436 = vperm.slane %v4433, 1
    %4439 = vmatpush.msra.mxu0 %v698
    %4440 = vmatpush.msra.mxu0 %v696
    %4441 = vmatpush.msra.mxu0 %v694
    %4442 = vmatpush.msra.mxu0 %v692
    %4443 = vmatpush.msra.mxu0 %v690
    %4444 = vmatpush.msra.mxu0 %v688
    %4445 = vmatpush.msra.mxu0 %v686
    %4446 = vmatpush.msra.mxu0 %v684
    %4447 = vmatpush.msra.mxu0 %v682
    %4448 = vmatpush.msra.mxu0 %v680
    %4449 = vmatpush.msra.mxu0 %v678
    %4450 = vmatpush.msra.mxu0 %v676
    %4451 = vmatpush.msra.mxu0 %v674
    %4452 = vmatpush.msra.mxu0 %v672
    %4453 = vmatpush.msra.mxu0 %v670
    %4454 = vmatpush.msra.mxu0 %v668
    %4455 = vmatmul.f32.gmra.mxu0 %v4425
    %v4456 = vpop.f32.mrf.mxu0
    %v4457 = vadd.f32 %v4435, %v4456
    %4458 = vmatmul.f32.gmra.mxu0 %v4426
    %v4459 = vpop.f32.mrf.mxu0
    %v4460 = vadd.f32 %v4435, %v4459
    %4461 = vmatmul.f32.gmra.mxu0 %v4427
    %v4462 = vpop.f32.mrf.mxu0
    %v4463 = vadd.f32 %v4435, %v4462
    %4464 = vmatmul.f32.gmra.mxu0 %v4428
    %v4465 = vpop.f32.mrf.mxu0
    %v4466 = vadd.f32 %v4435, %v4465
    %4467 = vmatmul.f32.gmra.mxu0 %v4429
    %v4468 = vpop.f32.mrf.mxu0
    %v4469 = vadd.f32 %v4435, %v4468
    %4470 = vmatmul.f32.gmra.mxu0 %v4430
    %v4471 = vpop.f32.mrf.mxu0
    %v4472 = vadd.f32 %v4435, %v4471
    %4473 = vmatmul.f32.gmra.mxu0 %v4431
    %v4474 = vpop.f32.mrf.mxu0
    %v4475 = vadd.f32 %v4435, %v4474
    %4476 = vmatmul.f32.gmra.mxu0 %v4432
    %v4477 = vpop.f32.mrf.mxu0
    %v4478 = vadd.f32 %v4435, %v4477
    %4479 = vdwg.mxu0
    %4480 = vmatpush.msra.mxu0 %v699
    %4481 = vmatpush.msra.mxu0 %v697
    %4482 = vmatpush.msra.mxu0 %v695
    %4483 = vmatpush.msra.mxu0 %v693
    %4484 = vmatpush.msra.mxu0 %v691
    %4485 = vmatpush.msra.mxu0 %v689
    %4486 = vmatpush.msra.mxu0 %v687
    %4487 = vmatpush.msra.mxu0 %v685
    %4488 = vmatpush.msra.mxu0 %v683
    %4489 = vmatpush.msra.mxu0 %v681
    %4490 = vmatpush.msra.mxu0 %v679
    %4491 = vmatpush.msra.mxu0 %v677
    %4492 = vmatpush.msra.mxu0 %v675
    %4493 = vmatpush.msra.mxu0 %v673
    %4494 = vmatpush.msra.mxu0 %v671
    %4495 = vmatpush.msra.mxu0 %v669
    %4496 = vmatmul.f32.gmra.mxu0 %v4425
    %v4497 = vpop.f32.mrf.mxu0
    %v4498 = vadd.f32 %v4436, %v4497
    %4499 = vmatmul.f32.gmra.mxu0 %v4426
    %v4500 = vpop.f32.mrf.mxu0
    %v4501 = vadd.f32 %v4436, %v4500
    %4502 = vmatmul.f32.gmra.mxu0 %v4427
    %v4503 = vpop.f32.mrf.mxu0
    %v4504 = vadd.f32 %v4436, %v4503
    %4505 = vmatmul.f32.gmra.mxu0 %v4428
    %v4506 = vpop.f32.mrf.mxu0
    %v4507 = vadd.f32 %v4436, %v4506
    %4508 = vmatmul.f32.gmra.mxu0 %v4429
    %v4509 = vpop.f32.mrf.mxu0
    %v4510 = vadd.f32 %v4436, %v4509
    %4511 = vmatmul.f32.gmra.mxu0 %v4430
    %v4512 = vpop.f32.mrf.mxu0
    %v4513 = vadd.f32 %v4436, %v4512
    %4514 = vmatmul.f32.gmra.mxu0 %v4431
    %v4515 = vpop.f32.mrf.mxu0
    %v4516 = vadd.f32 %v4436, %v4515
    %4517 = vmatmul.f32.gmra.mxu0 %v4432
    %v4518 = vpop.f32.mrf.mxu0
    %v4519 = vadd.f32 %v4436, %v4518
    %4520 = vdwg.mxu0
    %v4521 = vxor.u32 %v4457, 2147483648
    %v4522 = vxor.u32 %v4498, 2147483648
    %v4523 = vxor.u32 %v4460, 2147483648
    %v4524 = vxor.u32 %v4501, 2147483648
    %v4525 = vxor.u32 %v4463, 2147483648
    %v4526 = vxor.u32 %v4504, 2147483648
    %v4527 = vxor.u32 %v4466, 2147483648
    %v4528 = vxor.u32 %v4507, 2147483648
    %v4529 = vxor.u32 %v4469, 2147483648
    %v4530 = vxor.u32 %v4510, 2147483648
    %v4531 = vxor.u32 %v4472, 2147483648
    %v4532 = vxor.u32 %v4513, 2147483648
    %v4533 = vxor.u32 %v4475, 2147483648
    %v4534 = vxor.u32 %v4516, 2147483648
    %v4535 = vxor.u32 %v4478, 2147483648
    %v4536 = vxor.u32 %v4519, 2147483648
    %v4537 = vmul.f32 %v4521, 1.442695
    %v4538 = vpow.pop %v4537
    %v4539 = vmul.f32 %v4522, 1.442695
    %v4540 = vpow.pop %v4539
    %v4541 = vmul.f32 %v4523, 1.442695
    %v4542 = vpow.pop %v4541
    %v4543 = vmul.f32 %v4524, 1.442695
    %v4544 = vpow.pop %v4543
    %v4545 = vmul.f32 %v4525, 1.442695
    %v4546 = vpow.pop %v4545
    %v4547 = vmul.f32 %v4526, 1.442695
    %v4548 = vpow.pop %v4547
    %v4549 = vmul.f32 %v4527, 1.442695
    %v4550 = vpow.pop %v4549
    %v4551 = vmul.f32 %v4528, 1.442695
    %v4552 = vpow.pop %v4551
    %v4553 = vmul.f32 %v4529, 1.442695
    %v4554 = vpow.pop %v4553
    %v4555 = vmul.f32 %v4530, 1.442695
    %v4556 = vpow.pop %v4555
    %v4557 = vmul.f32 %v4531, 1.442695
    %v4558 = vpow.pop %v4557
    %v4559 = vmul.f32 %v4532, 1.442695
    %v4560 = vpow.pop %v4559
    %v4561 = vmul.f32 %v4533, 1.442695
    %v4562 = vpow.pop %v4561
    %v4563 = vmul.f32 %v4534, 1.442695
    %v4564 = vpow.pop %v4563
    %v4565 = vmul.f32 %v4535, 1.442695
    %v4566 = vpow.pop %v4565
    %v4567 = vmul.f32 %v4536, 1.442695
    %v4568 = vpow.pop %v4567
    %v4569 = vadd.f32 %v4538, 1.0
    %v4570 = vadd.f32 %v4540, 1.0
    %v4571 = vadd.f32 %v4542, 1.0
    %v4572 = vadd.f32 %v4544, 1.0
    %v4573 = vadd.f32 %v4546, 1.0
    %v4574 = vadd.f32 %v4548, 1.0
    %v4575 = vadd.f32 %v4550, 1.0
    %v4576 = vadd.f32 %v4552, 1.0
    %v4577 = vadd.f32 %v4554, 1.0
    %v4578 = vadd.f32 %v4556, 1.0
    %v4579 = vadd.f32 %v4558, 1.0
    %v4580 = vadd.f32 %v4560, 1.0
    %v4581 = vadd.f32 %v4562, 1.0
    %v4582 = vadd.f32 %v4564, 1.0
    %v4583 = vadd.f32 %v4566, 1.0
    %v4584 = vadd.f32 %v4568, 1.0
    %v4585 = vrcp.pop %v4569
    %v4586 = vmul.f32 %v4569, %v4585
    %v4587 = vsub.f32 1.0, %v4586
    %v4588 = vmul.f32 %v4585, %v4587
    %v4589 = vadd.f32 %v4585, %v4588
    %vm4590 = vweird.f32 %v4569
    %vm4591 = vweird.f32 %v4585
    %vm4592 = vmor %vm4590, %vm4591
    %v4593 = vsel %vm4592, %v4585, %v4589
    %v4594 = vand.u32 2147483647, %v4569
    %vm4595 = vcmp.eq.f32.partialorder %v4594, 8.507059e+37
    %v4596 = vand.u32 %v4569, 2147483648
    %v4597 = vor.u32 1.1754944e-38, %v4596
    %v4598 = vsel %vm4595, %v4597, %v4593
    %v4599 = vmul.f32 1.0, %v4598
    %v4600 = vrcp.pop %v4570
    %v4601 = vmul.f32 %v4570, %v4600
    %v4602 = vsub.f32 1.0, %v4601
    %v4603 = vmul.f32 %v4600, %v4602
    %v4604 = vadd.f32 %v4600, %v4603
    %vm4605 = vweird.f32 %v4570
    %vm4606 = vweird.f32 %v4600
    %vm4607 = vmor %vm4605, %vm4606
    %v4608 = vsel %vm4607, %v4600, %v4604
    %v4609 = vand.u32 2147483647, %v4570
    %vm4610 = vcmp.eq.f32.partialorder %v4609, 8.507059e+37
    %v4611 = vand.u32 %v4570, 2147483648
    %v4612 = vor.u32 1.1754944e-38, %v4611
    %v4613 = vsel %vm4610, %v4612, %v4608
    %v4614 = vmul.f32 1.0, %v4613
    %v4615 = vrcp.pop %v4571
    %v4616 = vmul.f32 %v4571, %v4615
    %v4617 = vsub.f32 1.0, %v4616
    %v4618 = vmul.f32 %v4615, %v4617
    %v4619 = vadd.f32 %v4615, %v4618
    %vm4620 = vweird.f32 %v4571
    %vm4621 = vweird.f32 %v4615
    %vm4622 = vmor %vm4620, %vm4621
    %v4623 = vsel %vm4622, %v4615, %v4619
    %v4624 = vand.u32 2147483647, %v4571
    %vm4625 = vcmp.eq.f32.partialorder %v4624, 8.507059e+37
    %v4626 = vand.u32 %v4571, 2147483648
    %v4627 = vor.u32 1.1754944e-38, %v4626
    %v4628 = vsel %vm4625, %v4627, %v4623
    %v4629 = vmul.f32 1.0, %v4628
    %v4630 = vrcp.pop %v4572
    %v4631 = vmul.f32 %v4572, %v4630
    %v4632 = vsub.f32 1.0, %v4631
    %v4633 = vmul.f32 %v4630, %v4632
    %v4634 = vadd.f32 %v4630, %v4633
    %vm4635 = vweird.f32 %v4572
    %vm4636 = vweird.f32 %v4630
    %vm4637 = vmor %vm4635, %vm4636
    %v4638 = vsel %vm4637, %v4630, %v4634
    %v4639 = vand.u32 2147483647, %v4572
    %vm4640 = vcmp.eq.f32.partialorder %v4639, 8.507059e+37
    %v4641 = vand.u32 %v4572, 2147483648
    %v4642 = vor.u32 1.1754944e-38, %v4641
    %v4643 = vsel %vm4640, %v4642, %v4638
    %v4644 = vmul.f32 1.0, %v4643
    %v4645 = vrcp.pop %v4573
    %v4646 = vmul.f32 %v4573, %v4645
    %v4647 = vsub.f32 1.0, %v4646
    %v4648 = vmul.f32 %v4645, %v4647
    %v4649 = vadd.f32 %v4645, %v4648
    %vm4650 = vweird.f32 %v4573
    %vm4651 = vweird.f32 %v4645
    %vm4652 = vmor %vm4650, %vm4651
    %v4653 = vsel %vm4652, %v4645, %v4649
    %v4654 = vand.u32 2147483647, %v4573
    %vm4655 = vcmp.eq.f32.partialorder %v4654, 8.507059e+37
    %v4656 = vand.u32 %v4573, 2147483648
    %v4657 = vor.u32 1.1754944e-38, %v4656
    %v4658 = vsel %vm4655, %v4657, %v4653
    %v4659 = vmul.f32 1.0, %v4658
    %v4660 = vrcp.pop %v4574
    %v4661 = vmul.f32 %v4574, %v4660
    %v4662 = vsub.f32 1.0, %v4661
    %v4663 = vmul.f32 %v4660, %v4662
    %v4664 = vadd.f32 %v4660, %v4663
    %vm4665 = vweird.f32 %v4574
    %vm4666 = vweird.f32 %v4660
    %vm4667 = vmor %vm4665, %vm4666
    %v4668 = vsel %vm4667, %v4660, %v4664
    %v4669 = vand.u32 2147483647, %v4574
    %vm4670 = vcmp.eq.f32.partialorder %v4669, 8.507059e+37
    %v4671 = vand.u32 %v4574, 2147483648
    %v4672 = vor.u32 1.1754944e-38, %v4671
    %v4673 = vsel %vm4670, %v4672, %v4668
    %v4674 = vmul.f32 1.0, %v4673
    %v4675 = vrcp.pop %v4575
    %v4676 = vmul.f32 %v4575, %v4675
    %v4677 = vsub.f32 1.0, %v4676
    %v4678 = vmul.f32 %v4675, %v4677
    %v4679 = vadd.f32 %v4675, %v4678
    %vm4680 = vweird.f32 %v4575
    %vm4681 = vweird.f32 %v4675
    %vm4682 = vmor %vm4680, %vm4681
    %v4683 = vsel %vm4682, %v4675, %v4679
    %v4684 = vand.u32 2147483647, %v4575
    %vm4685 = vcmp.eq.f32.partialorder %v4684, 8.507059e+37
    %v4686 = vand.u32 %v4575, 2147483648
    %v4687 = vor.u32 1.1754944e-38, %v4686
    %v4688 = vsel %vm4685, %v4687, %v4683
    %v4689 = vmul.f32 1.0, %v4688
    %v4690 = vrcp.pop %v4576
    %v4691 = vmul.f32 %v4576, %v4690
    %v4692 = vsub.f32 1.0, %v4691
    %v4693 = vmul.f32 %v4690, %v4692
    %v4694 = vadd.f32 %v4690, %v4693
    %vm4695 = vweird.f32 %v4576
    %vm4696 = vweird.f32 %v4690
    %vm4697 = vmor %vm4695, %vm4696
    %v4698 = vsel %vm4697, %v4690, %v4694
    %v4699 = vand.u32 2147483647, %v4576
    %vm4700 = vcmp.eq.f32.partialorder %v4699, 8.507059e+37
    %v4701 = vand.u32 %v4576, 2147483648
    %v4702 = vor.u32 1.1754944e-38, %v4701
    %v4703 = vsel %vm4700, %v4702, %v4698
    %v4704 = vmul.f32 1.0, %v4703
    %v4705 = vrcp.pop %v4577
    %v4706 = vmul.f32 %v4577, %v4705
    %v4707 = vsub.f32 1.0, %v4706
    %v4708 = vmul.f32 %v4705, %v4707
    %v4709 = vadd.f32 %v4705, %v4708
    %vm4710 = vweird.f32 %v4577
    %vm4711 = vweird.f32 %v4705
    %vm4712 = vmor %vm4710, %vm4711
    %v4713 = vsel %vm4712, %v4705, %v4709
    %v4714 = vand.u32 2147483647, %v4577
    %vm4715 = vcmp.eq.f32.partialorder %v4714, 8.507059e+37
    %v4716 = vand.u32 %v4577, 2147483648
    %v4717 = vor.u32 1.1754944e-38, %v4716
    %v4718 = vsel %vm4715, %v4717, %v4713
    %v4719 = vmul.f32 1.0, %v4718
    %v4720 = vrcp.pop %v4578
    %v4721 = vmul.f32 %v4578, %v4720
    %v4722 = vsub.f32 1.0, %v4721
    %v4723 = vmul.f32 %v4720, %v4722
    %v4724 = vadd.f32 %v4720, %v4723
    %vm4725 = vweird.f32 %v4578
    %vm4726 = vweird.f32 %v4720
    %vm4727 = vmor %vm4725, %vm4726
    %v4728 = vsel %vm4727, %v4720, %v4724
    %v4729 = vand.u32 2147483647, %v4578
    %vm4730 = vcmp.eq.f32.partialorder %v4729, 8.507059e+37
    %v4731 = vand.u32 %v4578, 2147483648
    %v4732 = vor.u32 1.1754944e-38, %v4731
    %v4733 = vsel %vm4730, %v4732, %v4728
    %v4734 = vmul.f32 1.0, %v4733
    %v4735 = vrcp.pop %v4579
    %v4736 = vmul.f32 %v4579, %v4735
    %v4737 = vsub.f32 1.0, %v4736
    %v4738 = vmul.f32 %v4735, %v4737
    %v4739 = vadd.f32 %v4735, %v4738
    %vm4740 = vweird.f32 %v4579
    %vm4741 = vweird.f32 %v4735
    %vm4742 = vmor %vm4740, %vm4741
    %v4743 = vsel %vm4742, %v4735, %v4739
    %v4744 = vand.u32 2147483647, %v4579
    %vm4745 = vcmp.eq.f32.partialorder %v4744, 8.507059e+37
    %v4746 = vand.u32 %v4579, 2147483648
    %v4747 = vor.u32 1.1754944e-38, %v4746
    %v4748 = vsel %vm4745, %v4747, %v4743
    %v4749 = vmul.f32 1.0, %v4748
    %v4750 = vrcp.pop %v4580
    %v4751 = vmul.f32 %v4580, %v4750
    %v4752 = vsub.f32 1.0, %v4751
    %v4753 = vmul.f32 %v4750, %v4752
    %v4754 = vadd.f32 %v4750, %v4753
    %vm4755 = vweird.f32 %v4580
    %vm4756 = vweird.f32 %v4750
    %vm4757 = vmor %vm4755, %vm4756
    %v4758 = vsel %vm4757, %v4750, %v4754
    %v4759 = vand.u32 2147483647, %v4580
    %vm4760 = vcmp.eq.f32.partialorder %v4759, 8.507059e+37
    %v4761 = vand.u32 %v4580, 2147483648
    %v4762 = vor.u32 1.1754944e-38, %v4761
    %v4763 = vsel %vm4760, %v4762, %v4758
    %v4764 = vmul.f32 1.0, %v4763
    %v4765 = vrcp.pop %v4581
    %v4766 = vmul.f32 %v4581, %v4765
    %v4767 = vsub.f32 1.0, %v4766
    %v4768 = vmul.f32 %v4765, %v4767
    %v4769 = vadd.f32 %v4765, %v4768
    %vm4770 = vweird.f32 %v4581
    %vm4771 = vweird.f32 %v4765
    %vm4772 = vmor %vm4770, %vm4771
    %v4773 = vsel %vm4772, %v4765, %v4769
    %v4774 = vand.u32 2147483647, %v4581
    %vm4775 = vcmp.eq.f32.partialorder %v4774, 8.507059e+37
    %v4776 = vand.u32 %v4581, 2147483648
    %v4777 = vor.u32 1.1754944e-38, %v4776
    %v4778 = vsel %vm4775, %v4777, %v4773
    %v4779 = vmul.f32 1.0, %v4778
    %v4780 = vrcp.pop %v4582
    %v4781 = vmul.f32 %v4582, %v4780
    %v4782 = vsub.f32 1.0, %v4781
    %v4783 = vmul.f32 %v4780, %v4782
    %v4784 = vadd.f32 %v4780, %v4783
    %vm4785 = vweird.f32 %v4582
    %vm4786 = vweird.f32 %v4780
    %vm4787 = vmor %vm4785, %vm4786
    %v4788 = vsel %vm4787, %v4780, %v4784
    %v4789 = vand.u32 2147483647, %v4582
    %vm4790 = vcmp.eq.f32.partialorder %v4789, 8.507059e+37
    %v4791 = vand.u32 %v4582, 2147483648
    %v4792 = vor.u32 1.1754944e-38, %v4791
    %v4793 = vsel %vm4790, %v4792, %v4788
    %v4794 = vmul.f32 1.0, %v4793
    %v4795 = vrcp.pop %v4583
    %v4796 = vmul.f32 %v4583, %v4795
    %v4797 = vsub.f32 1.0, %v4796
    %v4798 = vmul.f32 %v4795, %v4797
    %v4799 = vadd.f32 %v4795, %v4798
    %vm4800 = vweird.f32 %v4583
    %vm4801 = vweird.f32 %v4795
    %vm4802 = vmor %vm4800, %vm4801
    %v4803 = vsel %vm4802, %v4795, %v4799
    %v4804 = vand.u32 2147483647, %v4583
    %vm4805 = vcmp.eq.f32.partialorder %v4804, 8.507059e+37
    %v4806 = vand.u32 %v4583, 2147483648
    %v4807 = vor.u32 1.1754944e-38, %v4806
    %v4808 = vsel %vm4805, %v4807, %v4803
    %v4809 = vmul.f32 1.0, %v4808
    %v4810 = vrcp.pop %v4584
    %v4811 = vmul.f32 %v4584, %v4810
    %v4812 = vsub.f32 1.0, %v4811
    %v4813 = vmul.f32 %v4810, %v4812
    %v4814 = vadd.f32 %v4810, %v4813
    %vm4815 = vweird.f32 %v4584
    %vm4816 = vweird.f32 %v4810
    %vm4817 = vmor %vm4815, %vm4816
    %v4818 = vsel %vm4817, %v4810, %v4814
    %v4819 = vand.u32 2147483647, %v4584
    %vm4820 = vcmp.eq.f32.partialorder %v4819, 8.507059e+37
    %v4821 = vand.u32 %v4584, 2147483648
    %v4822 = vor.u32 1.1754944e-38, %v4821
    %v4823 = vsel %vm4820, %v4822, %v4818
    %v4824 = vmul.f32 1.0, %v4823
    %v4825 = vmul.f32 %v4599, %v790
    %v4826 = vmul.f32 %v4614, %v831
    %v4827 = vmul.f32 %v4629, %v793
    %v4828 = vmul.f32 %v4644, %v834
    %v4829 = vmul.f32 %v4659, %v796
    %v4830 = vmul.f32 %v4674, %v837
    %v4831 = vmul.f32 %v4689, %v799
    %v4832 = vmul.f32 %v4704, %v840
    %v4833 = vmul.f32 %v4719, %v802
    %v4834 = vmul.f32 %v4734, %v843
    %v4835 = vmul.f32 %v4749, %v805
    %v4836 = vmul.f32 %v4764, %v846
    %v4837 = vmul.f32 %v4779, %v808
    %v4838 = vmul.f32 %v4794, %v849
    %v4839 = vmul.f32 %v4809, %v811
    %v4840 = vmul.f32 %v4824, %v852
    %4841 = vmatpush.msra.mxu0 %v747
    %4842 = vmatpush.msra.mxu0 %v746
    %4843 = vmatpush.msra.mxu0 %v745
    %4844 = vmatpush.msra.mxu0 %v744
    %4845 = vmatpush.msra.mxu0 %v743
    %4846 = vmatpush.msra.mxu0 %v742
    %4847 = vmatpush.msra.mxu0 %v741
    %4848 = vmatpush.msra.mxu0 %v740
    %4849 = vmatpush.msra.mxu0 %v739
    %4850 = vmatpush.msra.mxu0 %v738
    %4851 = vmatpush.msra.mxu0 %v737
    %4852 = vmatpush.msra.mxu0 %v736
    %4853 = vmatpush.msra.mxu0 %v735
    %4854 = vmatpush.msra.mxu0 %v734
    %4855 = vmatpush.msra.mxu0 %v733
    %4856 = vmatpush.msra.mxu0 %v732
    %4857 = vmatmul.f32.gmra.mxu0 %v4825
    %v4858 = vpop.f32.mrf.mxu0
    %v4859 = vadd.f32 0.0, %v4858
    %4860 = vmatmul.f32.gmra.mxu0 %v4827
    %v4861 = vpop.f32.mrf.mxu0
    %v4862 = vadd.f32 0.0, %v4861
    %4863 = vmatmul.f32.gmra.mxu0 %v4829
    %v4864 = vpop.f32.mrf.mxu0
    %v4865 = vadd.f32 0.0, %v4864
    %4866 = vmatmul.f32.gmra.mxu0 %v4831
    %v4867 = vpop.f32.mrf.mxu0
    %v4868 = vadd.f32 0.0, %v4867
    %4869 = vmatmul.f32.gmra.mxu0 %v4833
    %v4870 = vpop.f32.mrf.mxu0
    %v4871 = vadd.f32 0.0, %v4870
    %4872 = vmatmul.f32.gmra.mxu0 %v4835
    %v4873 = vpop.f32.mrf.mxu0
    %v4874 = vadd.f32 0.0, %v4873
    %4875 = vmatmul.f32.gmra.mxu0 %v4837
    %v4876 = vpop.f32.mrf.mxu0
    %v4877 = vadd.f32 0.0, %v4876
    %4878 = vmatmul.f32.gmra.mxu0 %v4839
    %v4879 = vpop.f32.mrf.mxu0
    %v4880 = vadd.f32 0.0, %v4879
    %4881 = vdwg.mxu0
    %4882 = vmatpush.msra.mxu0 %v763
    %4883 = vmatpush.msra.mxu0 %v762
    %4884 = vmatpush.msra.mxu0 %v761
    %4885 = vmatpush.msra.mxu0 %v760
    %4886 = vmatpush.msra.mxu0 %v759
    %4887 = vmatpush.msra.mxu0 %v758
    %4888 = vmatpush.msra.mxu0 %v757
    %4889 = vmatpush.msra.mxu0 %v756
    %4890 = vmatpush.msra.mxu0 %v755
    %4891 = vmatpush.msra.mxu0 %v754
    %4892 = vmatpush.msra.mxu0 %v753
    %4893 = vmatpush.msra.mxu0 %v752
    %4894 = vmatpush.msra.mxu0 %v751
    %4895 = vmatpush.msra.mxu0 %v750
    %4896 = vmatpush.msra.mxu0 %v749
    %4897 = vmatpush.msra.mxu0 %v748
    %4898 = vmatmul.f32.gmra.mxu0 %v4826
    %v4899 = vpop.f32.mrf.mxu0
    %v4900 = vadd.f32 %v4859, %v4899
    %4901 = vmatmul.f32.gmra.mxu0 %v4828
    %v4902 = vpop.f32.mrf.mxu0
    %v4903 = vadd.f32 %v4862, %v4902
    %4904 = vmatmul.f32.gmra.mxu0 %v4830
    %v4905 = vpop.f32.mrf.mxu0
    %v4906 = vadd.f32 %v4865, %v4905
    %4907 = vmatmul.f32.gmra.mxu0 %v4832
    %v4908 = vpop.f32.mrf.mxu0
    %v4909 = vadd.f32 %v4868, %v4908
    %4910 = vmatmul.f32.gmra.mxu0 %v4834
    %v4911 = vpop.f32.mrf.mxu0
    %v4912 = vadd.f32 %v4871, %v4911
    %4913 = vmatmul.f32.gmra.mxu0 %v4836
    %v4914 = vpop.f32.mrf.mxu0
    %v4915 = vadd.f32 %v4874, %v4914
    %4916 = vmatmul.f32.gmra.mxu0 %v4838
    %v4917 = vpop.f32.mrf.mxu0
    %v4918 = vadd.f32 %v4877, %v4917
    %4919 = vmatmul.f32.gmra.mxu0 %v4840
    %v4920 = vpop.f32.mrf.mxu0
    %v4921 = vadd.f32 %v4880, %v4920
    %4922 = vdwg.mxu0
    %4923 = vst [vmem:[%s13] sm:$0xff] %v4900
    %4924 = vst [vmem:[%s13 + $0x8] sm:$0xff] %v4903
    %4925 = vst [vmem:[%s13 + $0x10] sm:$0xff] %v4906
    %4926 = vst [vmem:[%s13 + $0x18] sm:$0xff] %v4909
    %4927 = vst [vmem:[%s13 + $0x20] sm:$0xff] %v4912
    %4928 = vst [vmem:[%s13 + $0x28] sm:$0xff] %v4915
    %4929 = vst [vmem:[%s13 + $0x30] sm:$0xff] %v4918
    %4930 = vst [vmem:[%s13 + $0x38] sm:$0xff] %v4921
    %4931 = vst [vmem:[%s14] sm:$0xff] %v4200
    %4932 = vst [vmem:[%s14 + $0x8] sm:$0xff] %v4198
    %4933 = vst [vmem:[%s14 + $0x10] sm:$0xff] %v4423
    %4934 = vst [vmem:[%s14 + $0x18] sm:$0xff] %v4421
    // Predicated region
    $region74: #{dtln_p2_forward.1} parent=1 // pred_check
      _
    $region75: #{dtln_p2_forward.1} parent=1 // pred_check_branch
      %4936 = sbr.rel (0) target = $region77
    $region76: #{dtln_p2_forward.1} parent=1 // pred_region
      _
    $region77: #{dtln_p2_forward.1} parent=1 // pred_fallthru
      _
    // Predicated region
    $region78: #{dtln_p2_forward.1} parent=1 // pred_check
      _
    $region79: #{dtln_p2_forward.1} parent=1 // pred_check_branch
      %4938 = sbr.rel (0) target = $region81
    $region80: #{dtln_p2_forward.1} parent=1 // pred_region
      _
    $region81: #{dtln_p2_forward.1} parent=1 // pred_fallthru
      _
    // Predicated region
    $region82: #{dtln_p2_forward.1} parent=1 // pred_check
      _
    $region83: #{dtln_p2_forward.1} parent=1 // pred_check_branch
      %4940 = sbr.rel (0) target = $region85
    $region84: #{dtln_p2_forward.1} parent=1 // pred_region
      _
    $region85: #{dtln_p2_forward.1} parent=1 // pred_fallthru
      _
    // Predicated region
    $region86: #{dtln_p2_forward.1} parent=1 // pred_check
      _
    $region87: #{dtln_p2_forward.1} parent=1 // pred_check_branch
      %4942 = sbr.rel (0) target = $region89
    $region88: #{dtln_p2_forward.1} parent=1 // pred_region
      _
    $region89: #{dtln_p2_forward.1} parent=1 // pred_fallthru
      _
    %4943 = vsyncpa [#allocation4], 1
    %4944 = vsyncpa [#allocation6], 1
    %4945 = vsyncpa [#allocation9], 1

</llo_original>
